<compile_context>
chip_gen: v7x
topology: tpu7x:2x2x1
jax: 0.10.0
libtpu: 0.0.40
codegen_flags: <defaults>
</compile_context>

<pallas_src>
import functools
from typing import NamedTuple

import jax
import jax.numpy as jnp
from jax.experimental import pallas as pl
from jax.experimental.pallas import tpu as pltpu


def _round_up(x, m):
    return ((x + m - 1) // m) * m


class PreppedParams(NamedTuple):
    w1: jax.Array        # (d_img, hidden)   bf16 (image rows of W1 only)
    emb_proj: jax.Array  # (ncp, hidden)     bf16 == emb_table @ W1[d_img:] + b1, zero rows >= n_classes
    w2: jax.Array        # (hidden, hidden)  bf16
    b2: jax.Array        # (1, hidden)       f32
    w3: jax.Array        # (hidden, hidden)  bf16
    b3: jax.Array        # (1, hidden)       f32
    w4: jax.Array        # (hidden, op)      bf16, zero cols past d_out
    b4: jax.Array        # (1, op)           f32


def prepare_params(params):
    """One-time weight prep. Call once (outside the per-step jit)."""
    emb_table, w1, b1, w2, b2, w3, b3, w4, b4 = params
    n_classes = emb_table.shape[0]
    d_img = w1.shape[0] - n_classes
    hidden = w1.shape[1]
    d_out = w4.shape[1]
    ncp = _round_up(n_classes, 128)            # lane-dense one-hot / emb table
    op = _round_up(max(d_out, 128), 128)       # lane-dense output

    # Fold the label-embedding path AND b1 through W1:
    #   concat(x, emb) @ W1 + b1 == x @ W1[:d_img] + (emb_table @ W1[d_img:] + b1)[labels]
    emb_proj = (emb_table.astype(jnp.float32) @ w1[d_img:].astype(jnp.float32)
                + b1.reshape(1, hidden).astype(jnp.float32))
    embp = jnp.zeros((ncp, hidden), jnp.bfloat16).at[:n_classes].set(
        emb_proj.astype(jnp.bfloat16))

    w4p = jnp.zeros((hidden, op), jnp.bfloat16).at[:, :d_out].set(
        w4.astype(jnp.bfloat16))
    b4p = jnp.zeros((1, op), jnp.float32).at[0, :d_out].set(b4.astype(jnp.float32))

    prepped = PreppedParams(
        w1=w1[:d_img].astype(jnp.bfloat16),
        emb_proj=embp,
        w2=w2.astype(jnp.bfloat16), b2=b2.reshape(1, hidden).astype(jnp.float32),
        w3=w3.astype(jnp.bfloat16), b3=b3.reshape(1, hidden).astype(jnp.float32),
        w4=w4p, b4=b4p)
    return prepped, d_out


def _pick_tile_b(B, block_b):
    """Batch tile: one full-batch tile for small/medium B (no padding copies);
    for B >= 512, >=2 tiles of >=256 rows (multiple of 16 for bf16 packing) so
    the MXU M-dim stays full on v6e and both v7x TensorCores get work."""
    if B < 512:
        return min(B, block_b)
    return min(block_b, _round_up(-(-B // 2), 16))


def _vmem_limit_bytes(tile_b, d_img, hidden, ncp, op):
    """Config-derived VMEM budget (replaces the previous hard-coded 24 MiB)."""
    bf16, f32, i32 = 2, 4, 4
    # Constant weight/bias blocks (auto-pipeliner allocates 2 buffers each even
    # though their block index never changes).
    w = 2 * (d_img * hidden * bf16 + ncp * hidden * bf16
             + 2 * hidden * hidden * bf16 + hidden * op * bf16
             + 2 * hidden * f32 + op * f32)
    # Streamed per-tile blocks (double-buffered) + f32 intermediates.
    a = 2 * (tile_b * d_img * f32 + tile_b * i32 + tile_b * op * f32) \
        + 4 * tile_b * hidden * f32
    need = w + a + (4 << 20)                   # + slack for compiler scratch
    limit = max(need, 32 << 20)
    # Stay under v7x's 64 MiB physical VMEM whenever possible; see K-tiling TODO.
    return int(min(limit, 48 << 20)) if need <= (48 << 20) else int(need)


def _mlp_kernel(x_ref, lab_ref, w1_ref, embp_ref, w2_ref, b2_ref,
                w3_ref, b3_ref, w4_ref, b4_ref, o_ref):
    """Full discriminator MLP on one batch tile; weights stay VMEM-resident."""
    def leaky(v):                              # f32 VPU math (v5e has no bf16 VPU path)
        return jnp.where(v > 0, v, 0.2 * v)

    tb = x_ref.shape[0]
    ncp = embp_ref.shape[0]

    # Layer 1: image streamed as f32 and cast to bf16 here (single HBM pass);
    # label path is a one-hot built in-kernel from a 4 B/row label column, then
    # an MXU dot against the resident bf16 emb_proj table (b1 already folded in).
    x_bf16 = x_ref[...].astype(jnp.bfloat16)
    iota = jax.lax.broadcasted_iota(jnp.int32, (tb, ncp), 1)
    one_hot = jnp.where(lab_ref[...] == iota, 1.0, 0.0).astype(jnp.bfloat16)
    h = jnp.dot(x_bf16, w1_ref[...], preferred_element_type=jnp.float32)
    h = h + jnp.dot(one_hot, embp_ref[...], preferred_element_type=jnp.float32)
    h = leaky(h)

    # TODO(synk): Dropout(0.4) is identity at inference; training-mode masking
    # is not implemented.
    h = jnp.dot(h.astype(jnp.bfloat16), w2_ref[...],
                preferred_element_type=jnp.float32)
    h = leaky(h + b2_ref[...])

    h = jnp.dot(h.astype(jnp.bfloat16), w3_ref[...],
                preferred_element_type=jnp.float32)
    h = leaky(h + b3_ref[...])

    out = jnp.dot(h.astype(jnp.bfloat16), w4_ref[...],
                  preferred_element_type=jnp.float32)
    o_ref[...] = out + b4_ref[...]


@functools.partial(jax.jit, static_argnames=("d_out", "block_b"))
def discriminator_forward(img, labels, prepped, *, d_out=1, block_b=512):
    """img: (B, C, H, W) float32, labels: (B,) int32. Returns (B, d_out) float32."""
    B = img.shape[0]
    d_img, hidden = prepped.w1.shape
    ncp = prepped.emb_proj.shape[0]
    op = prepped.w4.shape[1]

    # No wrapper-side cast / zero-pad / gather passes: pass the raw f32 image
    # rows and the int32 labels directly; the kernel does the rest.
    x = img.reshape(B, d_img)                         # f32
    lab = labels.reshape(B, 1).astype(jnp.int32)      # 4 bytes/row

    tile_b = _pick_tile_b(B, block_b)
    grid = (pl.cdiv(B, tile_b),)

    row_spec = lambda w: pl.BlockSpec((tile_b, w), lambda i: (i, 0))
    const_spec = lambda arr: pl.BlockSpec(arr.shape, lambda i: (0, 0))

    out_padded = pl.pallas_call(
        _mlp_kernel,
        out_shape=jax.ShapeDtypeStruct((B, op), jnp.float32),
        grid=grid,
        in_specs=[
            row_spec(d_img),                 # image activations (stream, f32)
            row_spec(1),                     # labels (stream, int32)
            const_spec(prepped.w1), const_spec(prepped.emb_proj),
            const_spec(prepped.w2), const_spec(prepped.b2),
            const_spec(prepped.w3), const_spec(prepped.b3),
            const_spec(prepped.w4), const_spec(prepped.b4),
        ],
        out_specs=row_spec(op),              # lane-dense (128) output
        compiler_params=pltpu.CompilerParams(
            dimension_semantics=("parallel",),   # shard batch tiles across TCs (v7x)
            vmem_limit_bytes=_vmem_limit_bytes(tile_b, d_img, hidden, ncp, op),
        ),
    )(x, lab, prepped.w1, prepped.emb_proj, prepped.w2, prepped.b2,
      prepped.w3, prepped.b3, prepped.w4, prepped.b4)

    return out_padded[:, :d_out]


def init_params(key, channels, input_shape, n_classes, hidden=512):
    d_img = channels * input_shape * input_shape
    d_in = d_img + n_classes
    ks = jax.random.split(key, 9)

    def lin(kw, fan_in, fan_out):
        # PyTorch nn.Linear default init: U(-1/sqrt(fan_in), 1/sqrt(fan_in))
        bound = 1.0 / jnp.sqrt(fan_in)
        return jax.random.uniform(kw, (fan_in, fan_out), jnp.float32, -bound, bound)

    emb_table = jax.random.normal(ks[0], (n_classes, n_classes), jnp.float32)
    w1 = lin(ks[1], d_in, hidden)
    b1 = jax.random.uniform(ks[2], (hidden,), jnp.float32,
                            -1.0 / jnp.sqrt(d_in), 1.0 / jnp.sqrt(d_in))
    w2 = lin(ks[3], hidden, hidden)
    b2 = jax.random.uniform(ks[4], (hidden,), jnp.float32,
                            -1.0 / jnp.sqrt(hidden), 1.0 / jnp.sqrt(hidden))
    w3 = lin(ks[5], hidden, hidden)
    b3 = jax.random.uniform(ks[6], (hidden,), jnp.float32,
                            -1.0 / jnp.sqrt(hidden), 1.0 / jnp.sqrt(hidden))
    w4 = lin(ks[7], hidden, 1)
    b4 = jax.random.uniform(ks[8], (1,), jnp.float32,
                            -1.0 / jnp.sqrt(hidden), 1.0 / jnp.sqrt(hidden))
    return (emb_table, w1, b1, w2, b2, w3, b3, w4, b4)


def _reference_forward(img, labels, params):
    """Pure-f32 reference matching the PyTorch module (eval mode)."""
    emb_table, w1, b1, w2, b2, w3, b3, w4, b4 = params
    B = img.shape[0]
    x = jnp.concatenate([img.reshape(B, -1), emb_table[labels]], axis=-1)
    leaky = lambda v: jnp.where(v > 0, v, 0.2 * v)
    h = leaky(x @ w1 + b1)
    h = leaky(h @ w2 + b2)
    h = leaky(h @ w3 + b3)
    return h @ w4 + b4


def _reference_forward_prepared(img, labels, prepped, d_out):
    """Plain-JAX model using the exact same bf16 weights / f32 accumulation as the kernel."""
    B = img.shape[0]
    d_img, hidden = prepped.w1.shape
    x = img.reshape(B, d_img).astype(jnp.bfloat16)
    leaky = lambda v: jnp.where(v > 0, v, 0.2 * v)
    h = jnp.dot(x, prepped.w1, preferred_element_type=jnp.float32)
    # The in-kernel one-hot MXU dot selects exactly one bf16 row, accumulated in
    # f32, so a plain gather of the bf16 table is numerically identical.
    h = h + prepped.emb_proj[labels].astype(jnp.float32)
    h = leaky(h)
    h = leaky(jnp.dot(h.astype(jnp.bfloat16), prepped.w2,
                      preferred_element_type=jnp.float32) + prepped.b2)
    h = leaky(jnp.dot(h.astype(jnp.bfloat16), prepped.w3,
                      preferred_element_type=jnp.float32) + prepped.b3)
    out = jnp.dot(h.astype(jnp.bfloat16), prepped.w4,
                  preferred_element_type=jnp.float32) + prepped.b4
    return out[:, :d_out]


if __name__ == "__main__":
    # Small config: channels=4, input_shape=16, n_classes=10, batch=2.
    B, C, H, N_CLASSES = 2, 4, 16, 10

    key = jax.random.PRNGKey(0)
    k_img, k_lab, k_par = jax.random.split(key, 3)

    img = jax.random.normal(k_img, (B, C, H, H), jnp.float32)          # NCHW
    labels = jax.random.randint(k_lab, (B,), 0, N_CLASSES, jnp.int32)
    params = init_params(k_par, C, H, N_CLASSES)

    prepped, d_out = prepare_params(params)       # one-time weight prep (outside jit)

    validity = discriminator_forward(img, labels, prepped, d_out=d_out)
    validity = jax.block_until_ready(validity)
    assert validity.shape == (B, 1)

    # Tight check vs. a plain-JAX model using identical bf16 weights (verifies the kernel).
    ref_bf16 = _reference_forward_prepared(img, labels, prepped, d_out)
    assert jnp.allclose(validity, ref_bf16, atol=1e-3, rtol=1e-3), (validity, ref_bf16)

    # Loose check vs. the full-f32 PyTorch-equivalent forward (bf16 quantization noise only;
    # intentional precision change for the MXU path).
    ref_f32 = _reference_forward(img, labels, params)
    assert jnp.allclose(validity, ref_f32, atol=5e-2, rtol=5e-2), (validity, ref_f32)

    print("KERNEL_OK")
</pallas_src>

<mosaic_0001>
module attributes {stable_mosaic.version = 11 : i64} {
  func.func @_mlp_kernel(%arg0: i32, %arg1: memref<2x1024xf32, #tpu.memory_space<vmem>>, %arg2: memref<2x1xi32, #tpu.memory_space<vmem>>, %arg3: memref<1024x512xbf16, #tpu.memory_space<vmem>>, %arg4: memref<128x512xbf16, #tpu.memory_space<vmem>>, %arg5: memref<512x512xbf16, #tpu.memory_space<vmem>>, %arg6: memref<1x512xf32, #tpu.memory_space<vmem>>, %arg7: memref<512x512xbf16, #tpu.memory_space<vmem>>, %arg8: memref<1x512xf32, #tpu.memory_space<vmem>>, %arg9: memref<512x128xbf16, #tpu.memory_space<vmem>>, %arg10: memref<1x128xf32, #tpu.memory_space<vmem>>, %arg11: memref<2x128xf32, #tpu.memory_space<vmem>>) attributes {dimension_semantics = [#tpu.dimension_semantics<parallel>], iteration_bounds = array<i64: 1>, scalar_prefetch = 0 : i64, scratch_operands = 0 : i64, tpu.core_type = #tpu.core_type<tc>, window_params = [{transform_indices = @transform_0, window_bounds = array<i64: 2, 1024>}, {transform_indices = @transform_1, window_bounds = array<i64: 2, 1>}, {pipeline_mode = #tpu.pipeline_mode<synchronous>, transform_indices = @transform_2, window_bounds = array<i64: 1024, 512>}, {pipeline_mode = #tpu.pipeline_mode<synchronous>, transform_indices = @transform_3, window_bounds = array<i64: 128, 512>}, {pipeline_mode = #tpu.pipeline_mode<synchronous>, transform_indices = @transform_4, window_bounds = array<i64: 512, 512>}, {pipeline_mode = #tpu.pipeline_mode<synchronous>, transform_indices = @transform_5, window_bounds = array<i64: 1, 512>}, {pipeline_mode = #tpu.pipeline_mode<synchronous>, transform_indices = @transform_6, window_bounds = array<i64: 512, 512>}, {pipeline_mode = #tpu.pipeline_mode<synchronous>, transform_indices = @transform_7, window_bounds = array<i64: 1, 512>}, {pipeline_mode = #tpu.pipeline_mode<synchronous>, transform_indices = @transform_8, window_bounds = array<i64: 512, 128>}, {pipeline_mode = #tpu.pipeline_mode<synchronous>, transform_indices = @transform_9, window_bounds = array<i64: 1, 128>}, {transform_indices = @transform_10, window_bounds = array<i64: 2, 128>}]} {
    %c0 = arith.constant 0 : index
    %c0_0 = arith.constant 0 : index
    %0 = vector.load %arg1[%c0, %c0_0] : memref<2x1024xf32, #tpu.memory_space<vmem>>, vector<2x1024xf32>
    %1 = arith.truncf %0 : vector<2x1024xf32> to vector<2x1024xbf16>
    %2 = tpu.iota {dimensions = array<i32: 1>} : vector<2x128xi32>
    %c0_1 = arith.constant 0 : index
    %c0_2 = arith.constant 0 : index
    %3 = vector.load %arg2[%c0_1, %c0_2] : memref<2x1xi32, #tpu.memory_space<vmem>>, vector<2x1xi32>
    %4 = vector.broadcast %3 : vector<2x1xi32> to vector<2x128xi32>
    %5 = arith.cmpi eq, %4, %2 : vector<2x128xi32>
    %cst = arith.constant 1.000000e+00 : f32
    %cst_3 = arith.constant 0.000000e+00 : f32
    %6 = vector.broadcast %cst : f32 to vector<2x128xf32>
    %7 = vector.broadcast %cst_3 : f32 to vector<2x128xf32>
    %8 = arith.select %5, %6, %7 : vector<2x128xi1>, vector<2x128xf32>
    %9 = arith.truncf %8 : vector<2x128xf32> to vector<2x128xbf16>
    %c0_4 = arith.constant 0 : index
    %c0_5 = arith.constant 0 : index
    %10 = vector.load %arg3[%c0_4, %c0_5] : memref<1024x512xbf16, #tpu.memory_space<vmem>>, vector<1024x512xbf16>
    %cst_6 = arith.constant dense<0.000000e+00> : vector<2x512xf32>
    %11 = tpu.matmul %1, %10, %cst_6 {dimension_numbers = #tpu.dot_dimension_numbers<[1], [0], [0], [1], [0, 0, 1, 1], [], []>} : vector<2x1024xbf16>, vector<1024x512xbf16>, vector<2x512xf32> -> vector<2x512xf32>
    %c0_7 = arith.constant 0 : index
    %c0_8 = arith.constant 0 : index
    %12 = vector.load %arg4[%c0_7, %c0_8] : memref<128x512xbf16, #tpu.memory_space<vmem>>, vector<128x512xbf16>
    %cst_9 = arith.constant dense<0.000000e+00> : vector<2x512xf32>
    %13 = tpu.matmul %9, %12, %cst_9 {dimension_numbers = #tpu.dot_dimension_numbers<[1], [0], [0], [1], [0, 0, 1, 1], [], []>} : vector<2x128xbf16>, vector<128x512xbf16>, vector<2x512xf32> -> vector<2x512xf32>
    %14 = arith.addf %11, %13 : vector<2x512xf32>
    %cst_10 = arith.constant 0.000000e+00 : f32
    %15 = vector.broadcast %cst_10 : f32 to vector<2x512xf32>
    %16 = arith.cmpf ogt, %14, %15 : vector<2x512xf32>
    %cst_11 = arith.constant 2.000000e-01 : f32
    %17 = vector.broadcast %cst_11 : f32 to vector<2x512xf32>
    %18 = arith.mulf %17, %14 : vector<2x512xf32>
    %19 = arith.select %16, %14, %18 : vector<2x512xi1>, vector<2x512xf32>
    %20 = arith.truncf %19 : vector<2x512xf32> to vector<2x512xbf16>
    %c0_12 = arith.constant 0 : index
    %c0_13 = arith.constant 0 : index
    %21 = vector.load %arg5[%c0_12, %c0_13] : memref<512x512xbf16, #tpu.memory_space<vmem>>, vector<512x512xbf16>
    %cst_14 = arith.constant dense<0.000000e+00> : vector<2x512xf32>
    %22 = tpu.matmul %20, %21, %cst_14 {dimension_numbers = #tpu.dot_dimension_numbers<[1], [0], [0], [1], [0, 0, 1, 1], [], []>} : vector<2x512xbf16>, vector<512x512xbf16>, vector<2x512xf32> -> vector<2x512xf32>
    %c0_15 = arith.constant 0 : index
    %c0_16 = arith.constant 0 : index
    %23 = vector.load %arg6[%c0_15, %c0_16] : memref<1x512xf32, #tpu.memory_space<vmem>>, vector<1x512xf32>
    %24 = vector.broadcast %23 : vector<1x512xf32> to vector<2x512xf32>
    %25 = arith.addf %22, %24 : vector<2x512xf32>
    %cst_17 = arith.constant 0.000000e+00 : f32
    %26 = vector.broadcast %cst_17 : f32 to vector<2x512xf32>
    %27 = arith.cmpf ogt, %25, %26 : vector<2x512xf32>
    %cst_18 = arith.constant 2.000000e-01 : f32
    %28 = vector.broadcast %cst_18 : f32 to vector<2x512xf32>
    %29 = arith.mulf %28, %25 : vector<2x512xf32>
    %30 = arith.select %27, %25, %29 : vector<2x512xi1>, vector<2x512xf32>
    %31 = arith.truncf %30 : vector<2x512xf32> to vector<2x512xbf16>
    %c0_19 = arith.constant 0 : index
    %c0_20 = arith.constant 0 : index
    %32 = vector.load %arg7[%c0_19, %c0_20] : memref<512x512xbf16, #tpu.memory_space<vmem>>, vector<512x512xbf16>
    %cst_21 = arith.constant dense<0.000000e+00> : vector<2x512xf32>
    %33 = tpu.matmul %31, %32, %cst_21 {dimension_numbers = #tpu.dot_dimension_numbers<[1], [0], [0], [1], [0, 0, 1, 1], [], []>} : vector<2x512xbf16>, vector<512x512xbf16>, vector<2x512xf32> -> vector<2x512xf32>
    %c0_22 = arith.constant 0 : index
    %c0_23 = arith.constant 0 : index
    %34 = vector.load %arg8[%c0_22, %c0_23] : memref<1x512xf32, #tpu.memory_space<vmem>>, vector<1x512xf32>
    %35 = vector.broadcast %34 : vector<1x512xf32> to vector<2x512xf32>
    %36 = arith.addf %33, %35 : vector<2x512xf32>
    %cst_24 = arith.constant 0.000000e+00 : f32
    %37 = vector.broadcast %cst_24 : f32 to vector<2x512xf32>
    %38 = arith.cmpf ogt, %36, %37 : vector<2x512xf32>
    %cst_25 = arith.constant 2.000000e-01 : f32
    %39 = vector.broadcast %cst_25 : f32 to vector<2x512xf32>
    %40 = arith.mulf %39, %36 : vector<2x512xf32>
    %41 = arith.select %38, %36, %40 : vector<2x512xi1>, vector<2x512xf32>
    %42 = arith.truncf %41 : vector<2x512xf32> to vector<2x512xbf16>
    %c0_26 = arith.constant 0 : index
    %c0_27 = arith.constant 0 : index
    %43 = vector.load %arg9[%c0_26, %c0_27] : memref<512x128xbf16, #tpu.memory_space<vmem>>, vector<512x128xbf16>
    %cst_28 = arith.constant dense<0.000000e+00> : vector<2x128xf32>
    %44 = tpu.matmul %42, %43, %cst_28 {dimension_numbers = #tpu.dot_dimension_numbers<[1], [0], [0], [1], [0, 0, 1, 1], [], []>} : vector<2x512xbf16>, vector<512x128xbf16>, vector<2x128xf32> -> vector<2x128xf32>
    %c0_29 = arith.constant 0 : index
    %c0_30 = arith.constant 0 : index
    %45 = vector.load %arg10[%c0_29, %c0_30] : memref<1x128xf32, #tpu.memory_space<vmem>>, vector<1x128xf32>
    %46 = vector.broadcast %45 : vector<1x128xf32> to vector<2x128xf32>
    %47 = arith.addf %44, %46 : vector<2x128xf32>
    %c0_31 = arith.constant 0 : index
    %c0_32 = arith.constant 0 : index
    %48 = vector.load %arg11[%c0_31, %c0_32] : memref<2x128xf32, #tpu.memory_space<vmem>>, vector<2x128xf32>
    tpu.vector_store %arg11[%c0_31, %c0_32], %47 {strides = array<i32>} : memref<2x128xf32, #tpu.memory_space<vmem>>, vector<2x128xf32>,
    return
  }
  func.func @transform_0(%arg0: i32) -> (i32, i32) {
    %c0_i32 = arith.constant 0 : i32
    %c0_i32_0 = arith.constant 0 : i32
    return %arg0, %c0_i32 : i32, i32
  }
  func.func @transform_1(%arg0: i32) -> (i32, i32) {
    %c0_i32 = arith.constant 0 : i32
    %c0_i32_0 = arith.constant 0 : i32
    return %arg0, %c0_i32 : i32, i32
  }
  func.func @transform_2(%arg0: i32) -> (i32, i32) {
    %c0_i32 = arith.constant 0 : i32
    %c0_i32_0 = arith.constant 0 : i32
    %c0_i32_1 = arith.constant 0 : i32
    return %c0_i32, %c0_i32_0 : i32, i32
  }
  func.func @transform_3(%arg0: i32) -> (i32, i32) {
    %c0_i32 = arith.constant 0 : i32
    %c0_i32_0 = arith.constant 0 : i32
    %c0_i32_1 = arith.constant 0 : i32
    return %c0_i32, %c0_i32_0 : i32, i32
  }
  func.func @transform_4(%arg0: i32) -> (i32, i32) {
    %c0_i32 = arith.constant 0 : i32
    %c0_i32_0 = arith.constant 0 : i32
    %c0_i32_1 = arith.constant 0 : i32
    return %c0_i32, %c0_i32_0 : i32, i32
  }
  func.func @transform_5(%arg0: i32) -> (i32, i32) {
    %c0_i32 = arith.constant 0 : i32
    %c0_i32_0 = arith.constant 0 : i32
    %c0_i32_1 = arith.constant 0 : i32
    return %c0_i32, %c0_i32_0 : i32, i32
  }
  func.func @transform_6(%arg0: i32) -> (i32, i32) {
    %c0_i32 = arith.constant 0 : i32
    %c0_i32_0 = arith.constant 0 : i32
    %c0_i32_1 = arith.constant 0 : i32
    return %c0_i32, %c0_i32_0 : i32, i32
  }
  func.func @transform_7(%arg0: i32) -> (i32, i32) {
    %c0_i32 = arith.constant 0 : i32
    %c0_i32_0 = arith.constant 0 : i32
    %c0_i32_1 = arith.constant 0 : i32
    return %c0_i32, %c0_i32_0 : i32, i32
  }
  func.func @transform_8(%arg0: i32) -> (i32, i32) {
    %c0_i32 = arith.constant 0 : i32
    %c0_i32_0 = arith.constant 0 : i32
    %c0_i32_1 = arith.constant 0 : i32
    return %c0_i32, %c0_i32_0 : i32, i32
  }
  func.func @transform_9(%arg0: i32) -> (i32, i32) {
    %c0_i32 = arith.constant 0 : i32
    %c0_i32_0 = arith.constant 0 : i32
    %c0_i32_1 = arith.constant 0 : i32
    return %c0_i32, %c0_i32_0 : i32, i32
  }
  func.func @transform_10(%arg0: i32) -> (i32, i32) {
    %c0_i32 = arith.constant 0 : i32
    %c0_i32_0 = arith.constant 0 : i32
    return %arg0, %c0_i32 : i32, i32
  }
}

</mosaic_0001>

<llo_original>
// kernel: discriminator_forward.1
$region0: #{discriminator_forward.1}
  #allocation0 [shape = 'u32[]', space=smem, size = 0x4, offset = 0x4, fixed_abs, tag = 'smem constant byte address 0x4 - core index']
  #allocation1 [shape = 'u32[144,128]{1,0:T(1,128)}', space=vmem, size = 0x12000, scoped, tag = 'internal scratch']
  %s0 = inlined_call_operand.vmem [shape: f32[2,1024], index: 0, kind: input, shape index: {}]
  %s1 = inlined_call_operand.vmem [shape: s32[2,1], index: 1, kind: input, shape index: {}]
  %s2 = inlined_call_operand.hbm [shape: bf16[1024,512], index: 2, kind: input, shape index: {}]
  %s3 = inlined_call_operand.hbm [shape: bf16[128,512], index: 3, kind: input, shape index: {}]
  %s4 = inlined_call_operand.hbm [shape: bf16[512,512], index: 4, kind: input, shape index: {}]
  %s5 = inlined_call_operand.vmem [shape: f32[1,512], index: 5, kind: input, shape index: {}]
  %s6 = inlined_call_operand.hbm [shape: bf16[512,512], index: 6, kind: input, shape index: {}]
  %s7 = inlined_call_operand.vmem [shape: f32[1,512], index: 7, kind: input, shape index: {}]
  %s8 = inlined_call_operand.hbm [shape: bf16[512,128], index: 8, kind: input, shape index: {}]
  %s9 = inlined_call_operand.vmem [shape: f32[1,128], index: 9, kind: input, shape index: {}]
  %s10 = inlined_call_operand.vmem [shape: f32[2,128], index: 10, kind: output, shape index: {}]
  %s11 = sld [smem:[#allocation0]]
  $region70: #{discriminator_forward.1} parent=0
    _
  %s13 = ssub.s32 1, %s11
  %s14 = scalar_select 0, %s13, %s11
  $region1: #{discriminator_forward.1} parent=0
    #allocation2 [shape = 'u8[1048576]{0}', space=vmem, size = 0x100000, scoped, tag = 'input window, operand 2, single buffered']
    #allocation3 [shape = 's32[1]{0}', space=sflag, size = 0x4, scoped, tag = 'scoped memory for discriminator_forward.1']
    #allocation4 [shape = 'u8[131072]{0}', space=vmem, size = 0x20000, scoped, tag = 'input window, operand 3, single buffered']
    #allocation5 [shape = 's32[1]{0}', space=sflag, size = 0x4, scoped, tag = 'scoped memory for discriminator_forward.1']
    #allocation6 [shape = 'u8[524288]{0}', space=vmem, size = 0x80000, scoped, tag = 'input window, operand 4, single buffered']
    #allocation7 [shape = 'u8[524288]{0}', space=vmem, size = 0x80000, scoped, tag = 'input window, operand 6, single buffered']
    #allocation8 [shape = 's32[1]{0}', space=sflag, size = 0x4, scoped, tag = 'scoped memory for discriminator_forward.1']
    #allocation9 [shape = 'u8[131072]{0}', space=vmem, size = 0x20000, scoped, tag = 'input window, operand 8, single buffered']
    %15 = vsyncpa [#allocation3], 0
    %16 = vsyncpa [#allocation5], 0
    %17 = vsyncpa [#allocation8], 0
    // Predicated region
    $region2: #{discriminator_forward.1} parent=1 // pred_check
      _
    $region3: #{discriminator_forward.1} parent=1 // pred_check_branch
      %19 = sbr.rel (0) target = $region5
    $region4: #{discriminator_forward.1} parent=1 // pred_region
      _
    $region5: #{discriminator_forward.1} parent=1 // pred_fallthru
      _
    // Predicated region
    $region6: #{discriminator_forward.1} parent=1 // pred_check
      _
    $region7: #{discriminator_forward.1} parent=1 // pred_check_branch
      %21 = sbr.rel (0) target = $region9
    $region8: #{discriminator_forward.1} parent=1 // pred_region
      _
    $region9: #{discriminator_forward.1} parent=1 // pred_fallthru
      _
    // Predicated region
    $region10: #{discriminator_forward.1} parent=1 // pred_check
      _
    $region11: #{discriminator_forward.1} parent=1 // pred_check_branch
      %23 = sbr.rel (0) target = $region13
    $region12: #{discriminator_forward.1} parent=1 // pred_region
      %s25 = ssub.s32 32768, 32768
      %26 = vsyncadd [#allocation3], %s25
      %s27 = sshll.u32 [#allocation2], 4
      %s28 = int_to_ptr.vmem [resolvable:$true] %s27
      %33 = dma.hbm_to_vmem [thread:$0]  %s2, 32768, %s28, [#allocation3], 256, 256, 16
    $region13: #{discriminator_forward.1} parent=1 // pred_fallthru
      _
    // Predicated region
    $region14: #{discriminator_forward.1} parent=1 // pred_check
      _
    $region15: #{discriminator_forward.1} parent=1 // pred_check_branch
      %35 = sbr.rel (0) target = $region17
    $region16: #{discriminator_forward.1} parent=1 // pred_region
      %s37 = ssub.s32 4096, 4096
      %38 = vsyncadd [#allocation5], %s37
      %s39 = sshll.u32 [#allocation4], 4
      %s40 = int_to_ptr.vmem [resolvable:$true] %s39
      %45 = dma.hbm_to_vmem [thread:$0]  %s3, 4096, %s40, [#allocation5], 256, 256, 16
    $region17: #{discriminator_forward.1} parent=1 // pred_fallthru
      _
    // Predicated region
    $region18: #{discriminator_forward.1} parent=1 // pred_check
      _
    $region19: #{discriminator_forward.1} parent=1 // pred_check_branch
      %47 = sbr.rel (0) target = $region21
    $region20: #{discriminator_forward.1} parent=1 // pred_region
      %s49 = ssub.s32 16384, 16384
      %50 = vsyncadd [#allocation5], %s49
      %s51 = sshll.u32 [#allocation6], 4
      %s52 = int_to_ptr.vmem [resolvable:$true] %s51
      %57 = dma.hbm_to_vmem [thread:$0]  %s4, 16384, %s52, [#allocation5], 256, 256, 16
    $region21: #{discriminator_forward.1} parent=1 // pred_fallthru
      _
    // Predicated region
    $region22: #{discriminator_forward.1} parent=1 // pred_check
      _
    $region23: #{discriminator_forward.1} parent=1 // pred_check_branch
      %59 = sbr.rel (0) target = $region25
    $region24: #{discriminator_forward.1} parent=1 // pred_region
      _
    $region25: #{discriminator_forward.1} parent=1 // pred_fallthru
      _
    // Predicated region
    $region26: #{discriminator_forward.1} parent=1 // pred_check
      _
    $region27: #{discriminator_forward.1} parent=1 // pred_check_branch
      %61 = sbr.rel (0) target = $region29
    $region28: #{discriminator_forward.1} parent=1 // pred_region
      %s63 = ssub.s32 16384, 16384
      %64 = vsyncadd [#allocation8], %s63
      %s65 = sshll.u32 [#allocation7], 4
      %s66 = int_to_ptr.vmem [resolvable:$true] %s65
      %71 = dma.hbm_to_vmem [thread:$0]  %s6, 16384, %s66, [#allocation8], 256, 256, 16
    $region29: #{discriminator_forward.1} parent=1 // pred_fallthru
      _
    // Predicated region
    $region30: #{discriminator_forward.1} parent=1 // pred_check
      _
    $region31: #{discriminator_forward.1} parent=1 // pred_check_branch
      %73 = sbr.rel (0) target = $region33
    $region32: #{discriminator_forward.1} parent=1 // pred_region
      _
    $region33: #{discriminator_forward.1} parent=1 // pred_fallthru
      _
    // Predicated region
    $region34: #{discriminator_forward.1} parent=1 // pred_check
      _
    $region35: #{discriminator_forward.1} parent=1 // pred_check_branch
      %75 = sbr.rel (0) target = $region37
    $region36: #{discriminator_forward.1} parent=1 // pred_region
      %s77 = ssub.s32 4096, 4096
      %78 = vsyncadd [#allocation8], %s77
      %s79 = sshll.u32 [#allocation9], 4
      %s80 = int_to_ptr.vmem [resolvable:$true] %s79
      %85 = dma.hbm_to_vmem [thread:$0]  %s8, 4096, %s80, [#allocation8], 64, 64, 4
    $region37: #{discriminator_forward.1} parent=1 // pred_fallthru
      _
    // Predicated region
    $region38: #{discriminator_forward.1} parent=1 // pred_check
      _
    $region39: #{discriminator_forward.1} parent=1 // pred_check_branch
      %87 = sbr.rel (0) target = $region41
    $region40: #{discriminator_forward.1} parent=1 // pred_region
      _
    $region41: #{discriminator_forward.1} parent=1 // pred_fallthru
      _
    // Predicated region
    $region42: #{discriminator_forward.1} parent=1 // pred_check
      _
    $region43: #{discriminator_forward.1} parent=1 // pred_check_branch
      %89 = sbr.rel (0) target = $region45
    $region44: #{discriminator_forward.1} parent=1 // pred_region
      %90 = dma.done [#allocation3], 32768
    $region45: #{discriminator_forward.1} parent=1 // pred_fallthru
      _
    // Predicated region
    $region46: #{discriminator_forward.1} parent=1 // pred_check
      _
    $region47: #{discriminator_forward.1} parent=1 // pred_check_branch
      %92 = sbr.rel (0) target = $region49
    $region48: #{discriminator_forward.1} parent=1 // pred_region
      %93 = dma.done [#allocation5], 4096
    $region49: #{discriminator_forward.1} parent=1 // pred_fallthru
      _
    // Predicated region
    $region50: #{discriminator_forward.1} parent=1 // pred_check
      _
    $region51: #{discriminator_forward.1} parent=1 // pred_check_branch
      %95 = sbr.rel (0) target = $region53
    $region52: #{discriminator_forward.1} parent=1 // pred_region
      %96 = dma.done [#allocation5], 16384
    $region53: #{discriminator_forward.1} parent=1 // pred_fallthru
      _
    // Predicated region
    $region54: #{discriminator_forward.1} parent=1 // pred_check
      _
    $region55: #{discriminator_forward.1} parent=1 // pred_check_branch
      %98 = sbr.rel (0) target = $region57
    $region56: #{discriminator_forward.1} parent=1 // pred_region
      %99 = dma.done [#allocation8], 16384
    $region57: #{discriminator_forward.1} parent=1 // pred_fallthru
      _
    // Predicated region
    $region58: #{discriminator_forward.1} parent=1 // pred_check
      _
    $region59: #{discriminator_forward.1} parent=1 // pred_check_branch
      %101 = sbr.rel (0) target = $region61
    $region60: #{discriminator_forward.1} parent=1 // pred_region
      %102 = dma.done [#allocation8], 4096
    $region61: #{discriminator_forward.1} parent=1 // pred_fallthru
      _
    %v104 = vld [vmem:[%s0] sm:$0xff]
    %v105 = vld [vmem:[%s0 + $0x8] sm:$0xff]
    %v108 = vcombine.high %v104, %v104
    %v110 = vunpack.c.l.s4 1983009808
    %v111 = vunpack.c.0.s8 %v110
    %v112 = vlaneseq
    %v113 = vshrl.u32 %v112, 7
    %v114 = vsub.s32 %v111, %v113
    %v115 = vrot.slane %v104, %v114
    %v117 = vunpack.c.l.s4 1983009808
    %v118 = vunpack.c.0.s8 %v117
    %v119 = vlaneseq
    %v120 = vshrl.u32 %v119, 7
    %v121 = vsub.s32 %v118, %v120
    %v122 = vrot.slane %v108, %v121
    %v123 = vcombine.high %v115, %v115
    %v124 = vcombine.high %v122, %v122
    %v125 = vcombine.high %v105, %v105
    %v127 = vunpack.c.l.s4 1983009808
    %v128 = vunpack.c.0.s8 %v127
    %v129 = vlaneseq
    %v130 = vshrl.u32 %v129, 7
    %v131 = vsub.s32 %v128, %v130
    %v132 = vrot.slane %v105, %v131
    %v134 = vunpack.c.l.s4 1983009808
    %v135 = vunpack.c.0.s8 %v134
    %v136 = vlaneseq
    %v137 = vshrl.u32 %v136, 7
    %v138 = vsub.s32 %v135, %v137
    %v139 = vrot.slane %v125, %v138
    %v140 = vcombine.high %v132, %v132
    %v141 = vcombine.high %v139, %v139
    %v150 = vpack.c.bf16 %v115, %v115
    %v151 = vpack.c.bf16 %v123, %v123
    %v152 = vpack.c.bf16 %v122, %v122
    %v153 = vpack.c.bf16 %v124, %v124
    %v154 = vpack.c.bf16 %v132, %v132
    %v155 = vpack.c.bf16 %v140, %v140
    %v156 = vpack.c.bf16 %v139, %v139
    %v157 = vpack.c.bf16 %v141, %v141
    %v158 = vlaneseq
    %v159 = vand.u32 %v158, 127
    %v160 = vld [vmem:[%s1] sm:$0x3]
    %161 = vset.pattern.permute.xlu0 0
    %162 = vperm.xlu0 %161, %v160
    %v163 = vpop.permute.xlu0 %162
    %vm164 = vcmp.eq.s32.totalorder %v163, %v159
    %v165 = vsel %vm164, 1.0, 0.0
    %v166 = vpack.c.bf16 %v165, %v165
    %v167 = vld [vmem:[#allocation2] sm:$0xff]
    %v168 = vld [vmem:[#allocation2 + $0x8] sm:$0xff]
    %v169 = vld [vmem:[#allocation2 + $0x10] sm:$0xff]
    %v170 = vld [vmem:[#allocation2 + $0x18] sm:$0xff]
    %v171 = vld [vmem:[#allocation2 + $0x20] sm:$0xff]
    %v172 = vld [vmem:[#allocation2 + $0x28] sm:$0xff]
    %v173 = vld [vmem:[#allocation2 + $0x30] sm:$0xff]
    %v174 = vld [vmem:[#allocation2 + $0x38] sm:$0xff]
    %v175 = vld [vmem:[#allocation2 + $0x40] sm:$0xff]
    %v176 = vld [vmem:[#allocation2 + $0x48] sm:$0xff]
    %v177 = vld [vmem:[#allocation2 + $0x50] sm:$0xff]
    %v178 = vld [vmem:[#allocation2 + $0x58] sm:$0xff]
    %v179 = vld [vmem:[#allocation2 + $0x60] sm:$0xff]
    %v180 = vld [vmem:[#allocation2 + $0x68] sm:$0xff]
    %v181 = vld [vmem:[#allocation2 + $0x70] sm:$0xff]
    %v182 = vld [vmem:[#allocation2 + $0x78] sm:$0xff]
    %v183 = vld [vmem:[#allocation2 + $0x80] sm:$0xff]
    %v184 = vld [vmem:[#allocation2 + $0x88] sm:$0xff]
    %v185 = vld [vmem:[#allocation2 + $0x90] sm:$0xff]
    %v186 = vld [vmem:[#allocation2 + $0x98] sm:$0xff]
    %v187 = vld [vmem:[#allocation2 + $0xa0] sm:$0xff]
    %v188 = vld [vmem:[#allocation2 + $0xa8] sm:$0xff]
    %v189 = vld [vmem:[#allocation2 + $0xb0] sm:$0xff]
    %v190 = vld [vmem:[#allocation2 + $0xb8] sm:$0xff]
    %v191 = vld [vmem:[#allocation2 + $0xc0] sm:$0xff]
    %v192 = vld [vmem:[#allocation2 + $0xc8] sm:$0xff]
    %v193 = vld [vmem:[#allocation2 + $0xd0] sm:$0xff]
    %v194 = vld [vmem:[#allocation2 + $0xd8] sm:$0xff]
    %v195 = vld [vmem:[#allocation2 + $0xe0] sm:$0xff]
    %v196 = vld [vmem:[#allocation2 + $0xe8] sm:$0xff]
    %v197 = vld [vmem:[#allocation2 + $0xf0] sm:$0xff]
    %v198 = vld [vmem:[#allocation2 + $0xf8] sm:$0xff]
    %v199 = vld [vmem:[#allocation2 + $0x100] sm:$0xff]
    %v200 = vld [vmem:[#allocation2 + $0x108] sm:$0xff]
    %v201 = vld [vmem:[#allocation2 + $0x110] sm:$0xff]
    %v202 = vld [vmem:[#allocation2 + $0x118] sm:$0xff]
    %v203 = vld [vmem:[#allocation2 + $0x120] sm:$0xff]
    %v204 = vld [vmem:[#allocation2 + $0x128] sm:$0xff]
    %v205 = vld [vmem:[#allocation2 + $0x130] sm:$0xff]
    %v206 = vld [vmem:[#allocation2 + $0x138] sm:$0xff]
    %v207 = vld [vmem:[#allocation2 + $0x140] sm:$0xff]
    %v208 = vld [vmem:[#allocation2 + $0x148] sm:$0xff]
    %v209 = vld [vmem:[#allocation2 + $0x150] sm:$0xff]
    %v210 = vld [vmem:[#allocation2 + $0x158] sm:$0xff]
    %v211 = vld [vmem:[#allocation2 + $0x160] sm:$0xff]
    %v212 = vld [vmem:[#allocation2 + $0x168] sm:$0xff]
    %v213 = vld [vmem:[#allocation2 + $0x170] sm:$0xff]
    %v214 = vld [vmem:[#allocation2 + $0x178] sm:$0xff]
    %v215 = vld [vmem:[#allocation2 + $0x180] sm:$0xff]
    %v216 = vld [vmem:[#allocation2 + $0x188] sm:$0xff]
    %v217 = vld [vmem:[#allocation2 + $0x190] sm:$0xff]
    %v218 = vld [vmem:[#allocation2 + $0x198] sm:$0xff]
    %v219 = vld [vmem:[#allocation2 + $0x1a0] sm:$0xff]
    %v220 = vld [vmem:[#allocation2 + $0x1a8] sm:$0xff]
    %v221 = vld [vmem:[#allocation2 + $0x1b0] sm:$0xff]
    %v222 = vld [vmem:[#allocation2 + $0x1b8] sm:$0xff]
    %v223 = vld [vmem:[#allocation2 + $0x1c0] sm:$0xff]
    %v224 = vld [vmem:[#allocation2 + $0x1c8] sm:$0xff]
    %v225 = vld [vmem:[#allocation2 + $0x1d0] sm:$0xff]
    %v226 = vld [vmem:[#allocation2 + $0x1d8] sm:$0xff]
    %v227 = vld [vmem:[#allocation2 + $0x1e0] sm:$0xff]
    %v228 = vld [vmem:[#allocation2 + $0x1e8] sm:$0xff]
    %v229 = vld [vmem:[#allocation2 + $0x1f0] sm:$0xff]
    %v230 = vld [vmem:[#allocation2 + $0x1f8] sm:$0xff]
    %v231 = vld [vmem:[#allocation2 + $0x200] sm:$0xff]
    %v232 = vld [vmem:[#allocation2 + $0x208] sm:$0xff]
    %v233 = vld [vmem:[#allocation2 + $0x210] sm:$0xff]
    %v234 = vld [vmem:[#allocation2 + $0x218] sm:$0xff]
    %v235 = vld [vmem:[#allocation2 + $0x220] sm:$0xff]
    %v236 = vld [vmem:[#allocation2 + $0x228] sm:$0xff]
    %v237 = vld [vmem:[#allocation2 + $0x230] sm:$0xff]
    %v238 = vld [vmem:[#allocation2 + $0x238] sm:$0xff]
    %v239 = vld [vmem:[#allocation2 + $0x240] sm:$0xff]
    %v240 = vld [vmem:[#allocation2 + $0x248] sm:$0xff]
    %v241 = vld [vmem:[#allocation2 + $0x250] sm:$0xff]
    %v242 = vld [vmem:[#allocation2 + $0x258] sm:$0xff]
    %v243 = vld [vmem:[#allocation2 + $0x260] sm:$0xff]
    %v244 = vld [vmem:[#allocation2 + $0x268] sm:$0xff]
    %v245 = vld [vmem:[#allocation2 + $0x270] sm:$0xff]
    %v246 = vld [vmem:[#allocation2 + $0x278] sm:$0xff]
    %v247 = vld [vmem:[#allocation2 + $0x280] sm:$0xff]
    %v248 = vld [vmem:[#allocation2 + $0x288] sm:$0xff]
    %v249 = vld [vmem:[#allocation2 + $0x290] sm:$0xff]
    %v250 = vld [vmem:[#allocation2 + $0x298] sm:$0xff]
    %v251 = vld [vmem:[#allocation2 + $0x2a0] sm:$0xff]
    %v252 = vld [vmem:[#allocation2 + $0x2a8] sm:$0xff]
    %v253 = vld [vmem:[#allocation2 + $0x2b0] sm:$0xff]
    %v254 = vld [vmem:[#allocation2 + $0x2b8] sm:$0xff]
    %v255 = vld [vmem:[#allocation2 + $0x2c0] sm:$0xff]
    %v256 = vld [vmem:[#allocation2 + $0x2c8] sm:$0xff]
    %v257 = vld [vmem:[#allocation2 + $0x2d0] sm:$0xff]
    %v258 = vld [vmem:[#allocation2 + $0x2d8] sm:$0xff]
    %v259 = vld [vmem:[#allocation2 + $0x2e0] sm:$0xff]
    %v260 = vld [vmem:[#allocation2 + $0x2e8] sm:$0xff]
    %v261 = vld [vmem:[#allocation2 + $0x2f0] sm:$0xff]
    %v262 = vld [vmem:[#allocation2 + $0x2f8] sm:$0xff]
    %v263 = vld [vmem:[#allocation2 + $0x300] sm:$0xff]
    %v264 = vld [vmem:[#allocation2 + $0x308] sm:$0xff]
    %v265 = vld [vmem:[#allocation2 + $0x310] sm:$0xff]
    %v266 = vld [vmem:[#allocation2 + $0x318] sm:$0xff]
    %v267 = vld [vmem:[#allocation2 + $0x320] sm:$0xff]
    %v268 = vld [vmem:[#allocation2 + $0x328] sm:$0xff]
    %v269 = vld [vmem:[#allocation2 + $0x330] sm:$0xff]
    %v270 = vld [vmem:[#allocation2 + $0x338] sm:$0xff]
    %v271 = vld [vmem:[#allocation2 + $0x340] sm:$0xff]
    %v272 = vld [vmem:[#allocation2 + $0x348] sm:$0xff]
    %v273 = vld [vmem:[#allocation2 + $0x350] sm:$0xff]
    %v274 = vld [vmem:[#allocation2 + $0x358] sm:$0xff]
    %v275 = vld [vmem:[#allocation2 + $0x360] sm:$0xff]
    %v276 = vld [vmem:[#allocation2 + $0x368] sm:$0xff]
    %v277 = vld [vmem:[#allocation2 + $0x370] sm:$0xff]
    %v278 = vld [vmem:[#allocation2 + $0x378] sm:$0xff]
    %v279 = vld [vmem:[#allocation2 + $0x380] sm:$0xff]
    %v280 = vld [vmem:[#allocation2 + $0x388] sm:$0xff]
    %v281 = vld [vmem:[#allocation2 + $0x390] sm:$0xff]
    %v282 = vld [vmem:[#allocation2 + $0x398] sm:$0xff]
    %v283 = vld [vmem:[#allocation2 + $0x3a0] sm:$0xff]
    %v284 = vld [vmem:[#allocation2 + $0x3a8] sm:$0xff]
    %v285 = vld [vmem:[#allocation2 + $0x3b0] sm:$0xff]
    %v286 = vld [vmem:[#allocation2 + $0x3b8] sm:$0xff]
    %v287 = vld [vmem:[#allocation2 + $0x3c0] sm:$0xff]
    %v288 = vld [vmem:[#allocation2 + $0x3c8] sm:$0xff]
    %v289 = vld [vmem:[#allocation2 + $0x3d0] sm:$0xff]
    %v290 = vld [vmem:[#allocation2 + $0x3d8] sm:$0xff]
    %v291 = vld [vmem:[#allocation2 + $0x3e0] sm:$0xff]
    %v292 = vld [vmem:[#allocation2 + $0x3e8] sm:$0xff]
    %v293 = vld [vmem:[#allocation2 + $0x3f0] sm:$0xff]
    %v294 = vld [vmem:[#allocation2 + $0x3f8] sm:$0xff]
    %v295 = vld [vmem:[#allocation2 + $0x400] sm:$0xff]
    %v296 = vld [vmem:[#allocation2 + $0x408] sm:$0xff]
    %v297 = vld [vmem:[#allocation2 + $0x410] sm:$0xff]
    %v298 = vld [vmem:[#allocation2 + $0x418] sm:$0xff]
    %v299 = vld [vmem:[#allocation2 + $0x420] sm:$0xff]
    %v300 = vld [vmem:[#allocation2 + $0x428] sm:$0xff]
    %v301 = vld [vmem:[#allocation2 + $0x430] sm:$0xff]
    %v302 = vld [vmem:[#allocation2 + $0x438] sm:$0xff]
    %v303 = vld [vmem:[#allocation2 + $0x440] sm:$0xff]
    %v304 = vld [vmem:[#allocation2 + $0x448] sm:$0xff]
    %v305 = vld [vmem:[#allocation2 + $0x450] sm:$0xff]
    %v306 = vld [vmem:[#allocation2 + $0x458] sm:$0xff]
    %v307 = vld [vmem:[#allocation2 + $0x460] sm:$0xff]
    %v308 = vld [vmem:[#allocation2 + $0x468] sm:$0xff]
    %v309 = vld [vmem:[#allocation2 + $0x470] sm:$0xff]
    %v310 = vld [vmem:[#allocation2 + $0x478] sm:$0xff]
    %v311 = vld [vmem:[#allocation2 + $0x480] sm:$0xff]
    %v312 = vld [vmem:[#allocation2 + $0x488] sm:$0xff]
    %v313 = vld [vmem:[#allocation2 + $0x490] sm:$0xff]
    %v314 = vld [vmem:[#allocation2 + $0x498] sm:$0xff]
    %v315 = vld [vmem:[#allocation2 + $0x4a0] sm:$0xff]
    %v316 = vld [vmem:[#allocation2 + $0x4a8] sm:$0xff]
    %v317 = vld [vmem:[#allocation2 + $0x4b0] sm:$0xff]
    %v318 = vld [vmem:[#allocation2 + $0x4b8] sm:$0xff]
    %v319 = vld [vmem:[#allocation2 + $0x4c0] sm:$0xff]
    %v320 = vld [vmem:[#allocation2 + $0x4c8] sm:$0xff]
    %v321 = vld [vmem:[#allocation2 + $0x4d0] sm:$0xff]
    %v322 = vld [vmem:[#allocation2 + $0x4d8] sm:$0xff]
    %v323 = vld [vmem:[#allocation2 + $0x4e0] sm:$0xff]
    %v324 = vld [vmem:[#allocation2 + $0x4e8] sm:$0xff]
    %v325 = vld [vmem:[#allocation2 + $0x4f0] sm:$0xff]
    %v326 = vld [vmem:[#allocation2 + $0x4f8] sm:$0xff]
    %v327 = vld [vmem:[#allocation2 + $0x500] sm:$0xff]
    %v328 = vld [vmem:[#allocation2 + $0x508] sm:$0xff]
    %v329 = vld [vmem:[#allocation2 + $0x510] sm:$0xff]
    %v330 = vld [vmem:[#allocation2 + $0x518] sm:$0xff]
    %v331 = vld [vmem:[#allocation2 + $0x520] sm:$0xff]
    %v332 = vld [vmem:[#allocation2 + $0x528] sm:$0xff]
    %v333 = vld [vmem:[#allocation2 + $0x530] sm:$0xff]
    %v334 = vld [vmem:[#allocation2 + $0x538] sm:$0xff]
    %v335 = vld [vmem:[#allocation2 + $0x540] sm:$0xff]
    %v336 = vld [vmem:[#allocation2 + $0x548] sm:$0xff]
    %v337 = vld [vmem:[#allocation2 + $0x550] sm:$0xff]
    %v338 = vld [vmem:[#allocation2 + $0x558] sm:$0xff]
    %v339 = vld [vmem:[#allocation2 + $0x560] sm:$0xff]
    %v340 = vld [vmem:[#allocation2 + $0x568] sm:$0xff]
    %v341 = vld [vmem:[#allocation2 + $0x570] sm:$0xff]
    %v342 = vld [vmem:[#allocation2 + $0x578] sm:$0xff]
    %v343 = vld [vmem:[#allocation2 + $0x580] sm:$0xff]
    %v344 = vld [vmem:[#allocation2 + $0x588] sm:$0xff]
    %v345 = vld [vmem:[#allocation2 + $0x590] sm:$0xff]
    %v346 = vld [vmem:[#allocation2 + $0x598] sm:$0xff]
    %v347 = vld [vmem:[#allocation2 + $0x5a0] sm:$0xff]
    %v348 = vld [vmem:[#allocation2 + $0x5a8] sm:$0xff]
    %v349 = vld [vmem:[#allocation2 + $0x5b0] sm:$0xff]
    %v350 = vld [vmem:[#allocation2 + $0x5b8] sm:$0xff]
    %v351 = vld [vmem:[#allocation2 + $0x5c0] sm:$0xff]
    %v352 = vld [vmem:[#allocation2 + $0x5c8] sm:$0xff]
    %v353 = vld [vmem:[#allocation2 + $0x5d0] sm:$0xff]
    %v354 = vld [vmem:[#allocation2 + $0x5d8] sm:$0xff]
    %v355 = vld [vmem:[#allocation2 + $0x5e0] sm:$0xff]
    %v356 = vld [vmem:[#allocation2 + $0x5e8] sm:$0xff]
    %v357 = vld [vmem:[#allocation2 + $0x5f0] sm:$0xff]
    %v358 = vld [vmem:[#allocation2 + $0x5f8] sm:$0xff]
    %v359 = vld [vmem:[#allocation2 + $0x600] sm:$0xff]
    %v360 = vld [vmem:[#allocation2 + $0x608] sm:$0xff]
    %v361 = vld [vmem:[#allocation2 + $0x610] sm:$0xff]
    %v362 = vld [vmem:[#allocation2 + $0x618] sm:$0xff]
    %v363 = vld [vmem:[#allocation2 + $0x620] sm:$0xff]
    %v364 = vld [vmem:[#allocation2 + $0x628] sm:$0xff]
    %v365 = vld [vmem:[#allocation2 + $0x630] sm:$0xff]
    %v366 = vld [vmem:[#allocation2 + $0x638] sm:$0xff]
    %v367 = vld [vmem:[#allocation2 + $0x640] sm:$0xff]
    %v368 = vld [vmem:[#allocation2 + $0x648] sm:$0xff]
    %v369 = vld [vmem:[#allocation2 + $0x650] sm:$0xff]
    %v370 = vld [vmem:[#allocation2 + $0x658] sm:$0xff]
    %v371 = vld [vmem:[#allocation2 + $0x660] sm:$0xff]
    %v372 = vld [vmem:[#allocation2 + $0x668] sm:$0xff]
    %v373 = vld [vmem:[#allocation2 + $0x670] sm:$0xff]
    %v374 = vld [vmem:[#allocation2 + $0x678] sm:$0xff]
    %v375 = vld [vmem:[#allocation2 + $0x680] sm:$0xff]
    %v376 = vld [vmem:[#allocation2 + $0x688] sm:$0xff]
    %v377 = vld [vmem:[#allocation2 + $0x690] sm:$0xff]
    %v378 = vld [vmem:[#allocation2 + $0x698] sm:$0xff]
    %v379 = vld [vmem:[#allocation2 + $0x6a0] sm:$0xff]
    %v380 = vld [vmem:[#allocation2 + $0x6a8] sm:$0xff]
    %v381 = vld [vmem:[#allocation2 + $0x6b0] sm:$0xff]
    %v382 = vld [vmem:[#allocation2 + $0x6b8] sm:$0xff]
    %v383 = vld [vmem:[#allocation2 + $0x6c0] sm:$0xff]
    %v384 = vld [vmem:[#allocation2 + $0x6c8] sm:$0xff]
    %v385 = vld [vmem:[#allocation2 + $0x6d0] sm:$0xff]
    %v386 = vld [vmem:[#allocation2 + $0x6d8] sm:$0xff]
    %v387 = vld [vmem:[#allocation2 + $0x6e0] sm:$0xff]
    %v388 = vld [vmem:[#allocation2 + $0x6e8] sm:$0xff]
    %v389 = vld [vmem:[#allocation2 + $0x6f0] sm:$0xff]
    %v390 = vld [vmem:[#allocation2 + $0x6f8] sm:$0xff]
    %v391 = vld [vmem:[#allocation2 + $0x700] sm:$0xff]
    %v392 = vld [vmem:[#allocation2 + $0x708] sm:$0xff]
    %v393 = vld [vmem:[#allocation2 + $0x710] sm:$0xff]
    %v394 = vld [vmem:[#allocation2 + $0x718] sm:$0xff]
    %v395 = vld [vmem:[#allocation2 + $0x720] sm:$0xff]
    %v396 = vld [vmem:[#allocation2 + $0x728] sm:$0xff]
    %v397 = vld [vmem:[#allocation2 + $0x730] sm:$0xff]
    %v398 = vld [vmem:[#allocation2 + $0x738] sm:$0xff]
    %v399 = vld [vmem:[#allocation2 + $0x740] sm:$0xff]
    %v400 = vld [vmem:[#allocation2 + $0x748] sm:$0xff]
    %v401 = vld [vmem:[#allocation2 + $0x750] sm:$0xff]
    %v402 = vld [vmem:[#allocation2 + $0x758] sm:$0xff]
    %v403 = vld [vmem:[#allocation2 + $0x760] sm:$0xff]
    %v404 = vld [vmem:[#allocation2 + $0x768] sm:$0xff]
    %v405 = vld [vmem:[#allocation2 + $0x770] sm:$0xff]
    %v406 = vld [vmem:[#allocation2 + $0x778] sm:$0xff]
    %v407 = vld [vmem:[#allocation2 + $0x780] sm:$0xff]
    %v408 = vld [vmem:[#allocation2 + $0x788] sm:$0xff]
    %v409 = vld [vmem:[#allocation2 + $0x790] sm:$0xff]
    %v410 = vld [vmem:[#allocation2 + $0x798] sm:$0xff]
    %v411 = vld [vmem:[#allocation2 + $0x7a0] sm:$0xff]
    %v412 = vld [vmem:[#allocation2 + $0x7a8] sm:$0xff]
    %v413 = vld [vmem:[#allocation2 + $0x7b0] sm:$0xff]
    %v414 = vld [vmem:[#allocation2 + $0x7b8] sm:$0xff]
    %v415 = vld [vmem:[#allocation2 + $0x7c0] sm:$0xff]
    %v416 = vld [vmem:[#allocation2 + $0x7c8] sm:$0xff]
    %v417 = vld [vmem:[#allocation2 + $0x7d0] sm:$0xff]
    %v418 = vld [vmem:[#allocation2 + $0x7d8] sm:$0xff]
    %v419 = vld [vmem:[#allocation2 + $0x7e0] sm:$0xff]
    %v420 = vld [vmem:[#allocation2 + $0x7e8] sm:$0xff]
    %v421 = vld [vmem:[#allocation2 + $0x7f0] sm:$0xff]
    %v422 = vld [vmem:[#allocation2 + $0x7f8] sm:$0xff]
    %v423 = vld [vmem:[#allocation4] sm:$0xff]
    %v424 = vld [vmem:[#allocation4 + $0x8] sm:$0xff]
    %v425 = vld [vmem:[#allocation4 + $0x10] sm:$0xff]
    %v426 = vld [vmem:[#allocation4 + $0x18] sm:$0xff]
    %v427 = vld [vmem:[#allocation4 + $0x20] sm:$0xff]
    %v428 = vld [vmem:[#allocation4 + $0x28] sm:$0xff]
    %v429 = vld [vmem:[#allocation4 + $0x30] sm:$0xff]
    %v430 = vld [vmem:[#allocation4 + $0x38] sm:$0xff]
    %v431 = vld [vmem:[#allocation4 + $0x40] sm:$0xff]
    %v432 = vld [vmem:[#allocation4 + $0x48] sm:$0xff]
    %v433 = vld [vmem:[#allocation4 + $0x50] sm:$0xff]
    %v434 = vld [vmem:[#allocation4 + $0x58] sm:$0xff]
    %v435 = vld [vmem:[#allocation4 + $0x60] sm:$0xff]
    %v436 = vld [vmem:[#allocation4 + $0x68] sm:$0xff]
    %v437 = vld [vmem:[#allocation4 + $0x70] sm:$0xff]
    %v438 = vld [vmem:[#allocation4 + $0x78] sm:$0xff]
    %v439 = vld [vmem:[#allocation4 + $0x80] sm:$0xff]
    %v440 = vld [vmem:[#allocation4 + $0x88] sm:$0xff]
    %v441 = vld [vmem:[#allocation4 + $0x90] sm:$0xff]
    %v442 = vld [vmem:[#allocation4 + $0x98] sm:$0xff]
    %v443 = vld [vmem:[#allocation4 + $0xa0] sm:$0xff]
    %v444 = vld [vmem:[#allocation4 + $0xa8] sm:$0xff]
    %v445 = vld [vmem:[#allocation4 + $0xb0] sm:$0xff]
    %v446 = vld [vmem:[#allocation4 + $0xb8] sm:$0xff]
    %v447 = vld [vmem:[#allocation4 + $0xc0] sm:$0xff]
    %v448 = vld [vmem:[#allocation4 + $0xc8] sm:$0xff]
    %v449 = vld [vmem:[#allocation4 + $0xd0] sm:$0xff]
    %v450 = vld [vmem:[#allocation4 + $0xd8] sm:$0xff]
    %v451 = vld [vmem:[#allocation4 + $0xe0] sm:$0xff]
    %v452 = vld [vmem:[#allocation4 + $0xe8] sm:$0xff]
    %v453 = vld [vmem:[#allocation4 + $0xf0] sm:$0xff]
    %v454 = vld [vmem:[#allocation4 + $0xf8] sm:$0xff]
    %v487 = vunpack.c.l.b16 %v423
    %v488 = vunpack.c.h.b16 %v423
    %v489 = vunpack.c.l.b16 %v424
    %v490 = vunpack.c.h.b16 %v424
    %v491 = vunpack.c.l.b16 %v425
    %v492 = vunpack.c.h.b16 %v425
    %v493 = vunpack.c.l.b16 %v426
    %v494 = vunpack.c.h.b16 %v426
    %v495 = vunpack.c.l.b16 %v427
    %v496 = vunpack.c.h.b16 %v427
    %v497 = vunpack.c.l.b16 %v428
    %v498 = vunpack.c.h.b16 %v428
    %v499 = vunpack.c.l.b16 %v429
    %v500 = vunpack.c.h.b16 %v429
    %v501 = vunpack.c.l.b16 %v430
    %v502 = vunpack.c.h.b16 %v430
    %v503 = vunpack.c.l.b16 %v431
    %v504 = vunpack.c.h.b16 %v431
    %v505 = vunpack.c.l.b16 %v432
    %v506 = vunpack.c.h.b16 %v432
    %v507 = vunpack.c.l.b16 %v433
    %v508 = vunpack.c.h.b16 %v433
    %v509 = vunpack.c.l.b16 %v434
    %v510 = vunpack.c.h.b16 %v434
    %v511 = vunpack.c.l.b16 %v435
    %v512 = vunpack.c.h.b16 %v435
    %v513 = vunpack.c.l.b16 %v436
    %v514 = vunpack.c.h.b16 %v436
    %v515 = vunpack.c.l.b16 %v437
    %v516 = vunpack.c.h.b16 %v437
    %v517 = vunpack.c.l.b16 %v438
    %v518 = vunpack.c.h.b16 %v438
    %v519 = vunpack.c.l.b16 %v439
    %v520 = vunpack.c.h.b16 %v439
    %v521 = vunpack.c.l.b16 %v440
    %v522 = vunpack.c.h.b16 %v440
    %v523 = vunpack.c.l.b16 %v441
    %v524 = vunpack.c.h.b16 %v441
    %v525 = vunpack.c.l.b16 %v442
    %v526 = vunpack.c.h.b16 %v442
    %v527 = vunpack.c.l.b16 %v443
    %v528 = vunpack.c.h.b16 %v443
    %v529 = vunpack.c.l.b16 %v444
    %v530 = vunpack.c.h.b16 %v444
    %v531 = vunpack.c.l.b16 %v445
    %v532 = vunpack.c.h.b16 %v445
    %v533 = vunpack.c.l.b16 %v446
    %v534 = vunpack.c.h.b16 %v446
    %v535 = vunpack.c.l.b16 %v447
    %v536 = vunpack.c.h.b16 %v447
    %v537 = vunpack.c.l.b16 %v448
    %v538 = vunpack.c.h.b16 %v448
    %v539 = vunpack.c.l.b16 %v449
    %v540 = vunpack.c.h.b16 %v449
    %v541 = vunpack.c.l.b16 %v450
    %v542 = vunpack.c.h.b16 %v450
    %v543 = vunpack.c.l.b16 %v451
    %v544 = vunpack.c.h.b16 %v451
    %v545 = vunpack.c.l.b16 %v452
    %v546 = vunpack.c.h.b16 %v452
    %v547 = vunpack.c.l.b16 %v453
    %v548 = vunpack.c.h.b16 %v453
    %v549 = vunpack.c.l.b16 %v454
    %v550 = vunpack.c.h.b16 %v454
    %v551 = vpack.c.b16 %v491, %v487
    %v552 = vpack.c.b16 %v492, %v488
    %v553 = vpack.c.b16 %v493, %v489
    %v554 = vpack.c.b16 %v494, %v490
    %v555 = vpack.c.b16 %v499, %v495
    %v556 = vpack.c.b16 %v500, %v496
    %v557 = vpack.c.b16 %v501, %v497
    %v558 = vpack.c.b16 %v502, %v498
    %v559 = vpack.c.b16 %v507, %v503
    %v560 = vpack.c.b16 %v508, %v504
    %v561 = vpack.c.b16 %v509, %v505
    %v562 = vpack.c.b16 %v510, %v506
    %v563 = vpack.c.b16 %v515, %v511
    %v564 = vpack.c.b16 %v516, %v512
    %v565 = vpack.c.b16 %v517, %v513
    %v566 = vpack.c.b16 %v518, %v514
    %v567 = vpack.c.b16 %v523, %v519
    %v568 = vpack.c.b16 %v524, %v520
    %v569 = vpack.c.b16 %v525, %v521
    %v570 = vpack.c.b16 %v526, %v522
    %v571 = vpack.c.b16 %v531, %v527
    %v572 = vpack.c.b16 %v532, %v528
    %v573 = vpack.c.b16 %v533, %v529
    %v574 = vpack.c.b16 %v534, %v530
    %v575 = vpack.c.b16 %v539, %v535
    %v576 = vpack.c.b16 %v540, %v536
    %v577 = vpack.c.b16 %v541, %v537
    %v578 = vpack.c.b16 %v542, %v538
    %v579 = vpack.c.b16 %v547, %v543
    %v580 = vpack.c.b16 %v548, %v544
    %v581 = vpack.c.b16 %v549, %v545
    %v582 = vpack.c.b16 %v550, %v546
    %615 = vmatprep.subr.bf16.mxu0 %v552
    %616 = vmatpush1.bf16.msra.mxu0 %v551
    %617 = vmatprep.subr.bf16.mxu0 %v556
    %618 = vmatpush1.bf16.msra.mxu0 %v555
    %619 = vmatprep.subr.bf16.mxu0 %v560
    %620 = vmatpush1.bf16.msra.mxu0 %v559
    %621 = vmatprep.subr.bf16.mxu0 %v564
    %622 = vmatpush1.bf16.msra.mxu0 %v563
    %623 = vmatprep.subr.bf16.mxu0 %v568
    %624 = vmatpush1.bf16.msra.mxu0 %v567
    %625 = vmatprep.subr.bf16.mxu0 %v572
    %626 = vmatpush1.bf16.msra.mxu0 %v571
    %627 = vmatprep.subr.bf16.mxu0 %v576
    %628 = vmatpush1.bf16.msra.mxu0 %v575
    %629 = vmatprep.subr.bf16.mxu0 %v580
    %630 = vmatpush1.bf16.msra.mxu0 %v579
    %631 = vmatprep.subr.bf16.mxu0 0
    %632 = vmatpush1.bf16.msra.mxu0 0
    %633 = vmatprep.subr.bf16.mxu0 0
    %634 = vmatpush1.bf16.msra.mxu0 0
    %635 = vmatprep.subr.bf16.mxu0 0
    %636 = vmatpush1.bf16.msra.mxu0 0
    %637 = vmatprep.subr.bf16.mxu0 0
    %638 = vmatpush1.bf16.msra.mxu0 0
    %639 = vmatprep.subr.bf16.mxu0 0
    %640 = vmatpush1.bf16.msra.mxu0 0
    %641 = vmatprep.subr.bf16.mxu0 0
    %642 = vmatpush1.bf16.msra.mxu0 0
    %643 = vmatprep.subr.bf16.mxu0 0
    %644 = vmatpush1.bf16.msra.mxu0 0
    %645 = vmatprep.subr.bf16.mxu0 0
    %646 = vmatpush1.bf16.msra.mxu0 0
    %647 = vmatprep.mubr.bf16.mxu0 0
    %648 = vmatmul.mubr.bf16.gmra.mrb[0].mxu0 %v166
    %v649 = vpop.f32.mrb[0].mxu0
    %v650 = vadd.f32 0.0, %v649
    %v651 = vpop.f32.mrb[0].mxu0
    %v652 = vadd.f32 0.0, %v651
    %v653 = vpop.f32.mrb[0].mxu0
    %v654 = vpop.f32.mrb[0].mxu0
    %655 = vdwg.mxu0
    %656 = vmatprep.subr.bf16.mxu0 %v554
    %657 = vmatpush1.bf16.msra.mxu0 %v553
    %658 = vmatprep.subr.bf16.mxu0 %v558
    %659 = vmatpush1.bf16.msra.mxu0 %v557
    %660 = vmatprep.subr.bf16.mxu0 %v562
    %661 = vmatpush1.bf16.msra.mxu0 %v561
    %662 = vmatprep.subr.bf16.mxu0 %v566
    %663 = vmatpush1.bf16.msra.mxu0 %v565
    %664 = vmatprep.subr.bf16.mxu0 %v570
    %665 = vmatpush1.bf16.msra.mxu0 %v569
    %666 = vmatprep.subr.bf16.mxu0 %v574
    %667 = vmatpush1.bf16.msra.mxu0 %v573
    %668 = vmatprep.subr.bf16.mxu0 %v578
    %669 = vmatpush1.bf16.msra.mxu0 %v577
    %670 = vmatprep.subr.bf16.mxu0 %v582
    %671 = vmatpush1.bf16.msra.mxu0 %v581
    %672 = vmatprep.subr.bf16.mxu0 0
    %673 = vmatpush1.bf16.msra.mxu0 0
    %674 = vmatprep.subr.bf16.mxu0 0
    %675 = vmatpush1.bf16.msra.mxu0 0
    %676 = vmatprep.subr.bf16.mxu0 0
    %677 = vmatpush1.bf16.msra.mxu0 0
    %678 = vmatprep.subr.bf16.mxu0 0
    %679 = vmatpush1.bf16.msra.mxu0 0
    %680 = vmatprep.subr.bf16.mxu0 0
    %681 = vmatpush1.bf16.msra.mxu0 0
    %682 = vmatprep.subr.bf16.mxu0 0
    %683 = vmatpush1.bf16.msra.mxu0 0
    %684 = vmatprep.subr.bf16.mxu0 0
    %685 = vmatpush1.bf16.msra.mxu0 0
    %686 = vmatprep.subr.bf16.mxu0 0
    %687 = vmatpush1.bf16.msra.mxu0 0
    %688 = vmatprep.mubr.bf16.mxu0 0
    %689 = vmatmul.mubr.bf16.gmra.mrb[0].mxu0 %v166
    %v690 = vpop.f32.mrb[0].mxu0
    %v691 = vadd.f32 0.0, %v690
    %v692 = vpop.f32.mrb[0].mxu0
    %v693 = vadd.f32 0.0, %v692
    %v694 = vpop.f32.mrb[0].mxu0
    %v695 = vpop.f32.mrb[0].mxu0
    %696 = vdwg.mxu0
    %v953 = vunpack.c.l.b16 %v167
    %v954 = vunpack.c.h.b16 %v167
    %v955 = vunpack.c.l.b16 %v168
    %v956 = vunpack.c.h.b16 %v168
    %v957 = vunpack.c.l.b16 %v169
    %v958 = vunpack.c.h.b16 %v169
    %v959 = vunpack.c.l.b16 %v170
    %v960 = vunpack.c.h.b16 %v170
    %v961 = vunpack.c.l.b16 %v171
    %v962 = vunpack.c.h.b16 %v171
    %v963 = vunpack.c.l.b16 %v172
    %v964 = vunpack.c.h.b16 %v172
    %v965 = vunpack.c.l.b16 %v173
    %v966 = vunpack.c.h.b16 %v173
    %v967 = vunpack.c.l.b16 %v174
    %v968 = vunpack.c.h.b16 %v174
    %v969 = vunpack.c.l.b16 %v175
    %v970 = vunpack.c.h.b16 %v175
    %v971 = vunpack.c.l.b16 %v176
    %v972 = vunpack.c.h.b16 %v176
    %v973 = vunpack.c.l.b16 %v177
    %v974 = vunpack.c.h.b16 %v177
    %v975 = vunpack.c.l.b16 %v178
    %v976 = vunpack.c.h.b16 %v178
    %v977 = vunpack.c.l.b16 %v179
    %v978 = vunpack.c.h.b16 %v179
    %v979 = vunpack.c.l.b16 %v180
    %v980 = vunpack.c.h.b16 %v180
    %v981 = vunpack.c.l.b16 %v181
    %v982 = vunpack.c.h.b16 %v181
    %v983 = vunpack.c.l.b16 %v182
    %v984 = vunpack.c.h.b16 %v182
    %v985 = vunpack.c.l.b16 %v183
    %v986 = vunpack.c.h.b16 %v183
    %v987 = vunpack.c.l.b16 %v184
    %v988 = vunpack.c.h.b16 %v184
    %v989 = vunpack.c.l.b16 %v185
    %v990 = vunpack.c.h.b16 %v185
    %v991 = vunpack.c.l.b16 %v186
    %v992 = vunpack.c.h.b16 %v186
    %v993 = vunpack.c.l.b16 %v187
    %v994 = vunpack.c.h.b16 %v187
    %v995 = vunpack.c.l.b16 %v188
    %v996 = vunpack.c.h.b16 %v188
    %v997 = vunpack.c.l.b16 %v189
    %v998 = vunpack.c.h.b16 %v189
    %v999 = vunpack.c.l.b16 %v190
    %v1000 = vunpack.c.h.b16 %v190
    %v1001 = vunpack.c.l.b16 %v191
    %v1002 = vunpack.c.h.b16 %v191
    %v1003 = vunpack.c.l.b16 %v192
    %v1004 = vunpack.c.h.b16 %v192
    %v1005 = vunpack.c.l.b16 %v193
    %v1006 = vunpack.c.h.b16 %v193
    %v1007 = vunpack.c.l.b16 %v194
    %v1008 = vunpack.c.h.b16 %v194
    %v1009 = vunpack.c.l.b16 %v195
    %v1010 = vunpack.c.h.b16 %v195
    %v1011 = vunpack.c.l.b16 %v196
    %v1012 = vunpack.c.h.b16 %v196
    %v1013 = vunpack.c.l.b16 %v197
    %v1014 = vunpack.c.h.b16 %v197
    %v1015 = vunpack.c.l.b16 %v198
    %v1016 = vunpack.c.h.b16 %v198
    %v1017 = vunpack.c.l.b16 %v199
    %v1018 = vunpack.c.h.b16 %v199
    %v1019 = vunpack.c.l.b16 %v200
    %v1020 = vunpack.c.h.b16 %v200
    %v1021 = vunpack.c.l.b16 %v201
    %v1022 = vunpack.c.h.b16 %v201
    %v1023 = vunpack.c.l.b16 %v202
    %v1024 = vunpack.c.h.b16 %v202
    %v1025 = vunpack.c.l.b16 %v203
    %v1026 = vunpack.c.h.b16 %v203
    %v1027 = vunpack.c.l.b16 %v204
    %v1028 = vunpack.c.h.b16 %v204
    %v1029 = vunpack.c.l.b16 %v205
    %v1030 = vunpack.c.h.b16 %v205
    %v1031 = vunpack.c.l.b16 %v206
    %v1032 = vunpack.c.h.b16 %v206
    %v1033 = vunpack.c.l.b16 %v207
    %v1034 = vunpack.c.h.b16 %v207
    %v1035 = vunpack.c.l.b16 %v208
    %v1036 = vunpack.c.h.b16 %v208
    %v1037 = vunpack.c.l.b16 %v209
    %v1038 = vunpack.c.h.b16 %v209
    %v1039 = vunpack.c.l.b16 %v210
    %v1040 = vunpack.c.h.b16 %v210
    %v1041 = vunpack.c.l.b16 %v211
    %v1042 = vunpack.c.h.b16 %v211
    %v1043 = vunpack.c.l.b16 %v212
    %v1044 = vunpack.c.h.b16 %v212
    %v1045 = vunpack.c.l.b16 %v213
    %v1046 = vunpack.c.h.b16 %v213
    %v1047 = vunpack.c.l.b16 %v214
    %v1048 = vunpack.c.h.b16 %v214
    %v1049 = vunpack.c.l.b16 %v215
    %v1050 = vunpack.c.h.b16 %v215
    %v1051 = vunpack.c.l.b16 %v216
    %v1052 = vunpack.c.h.b16 %v216
    %v1053 = vunpack.c.l.b16 %v217
    %v1054 = vunpack.c.h.b16 %v217
    %v1055 = vunpack.c.l.b16 %v218
    %v1056 = vunpack.c.h.b16 %v218
    %v1057 = vunpack.c.l.b16 %v219
    %v1058 = vunpack.c.h.b16 %v219
    %v1059 = vunpack.c.l.b16 %v220
    %v1060 = vunpack.c.h.b16 %v220
    %v1061 = vunpack.c.l.b16 %v221
    %v1062 = vunpack.c.h.b16 %v221
    %v1063 = vunpack.c.l.b16 %v222
    %v1064 = vunpack.c.h.b16 %v222
    %v1065 = vunpack.c.l.b16 %v223
    %v1066 = vunpack.c.h.b16 %v223
    %v1067 = vunpack.c.l.b16 %v224
    %v1068 = vunpack.c.h.b16 %v224
    %v1069 = vunpack.c.l.b16 %v225
    %v1070 = vunpack.c.h.b16 %v225
    %v1071 = vunpack.c.l.b16 %v226
    %v1072 = vunpack.c.h.b16 %v226
    %v1073 = vunpack.c.l.b16 %v227
    %v1074 = vunpack.c.h.b16 %v227
    %v1075 = vunpack.c.l.b16 %v228
    %v1076 = vunpack.c.h.b16 %v228
    %v1077 = vunpack.c.l.b16 %v229
    %v1078 = vunpack.c.h.b16 %v229
    %v1079 = vunpack.c.l.b16 %v230
    %v1080 = vunpack.c.h.b16 %v230
    %v1081 = vunpack.c.l.b16 %v231
    %v1082 = vunpack.c.h.b16 %v231
    %v1083 = vunpack.c.l.b16 %v232
    %v1084 = vunpack.c.h.b16 %v232
    %v1085 = vunpack.c.l.b16 %v233
    %v1086 = vunpack.c.h.b16 %v233
    %v1087 = vunpack.c.l.b16 %v234
    %v1088 = vunpack.c.h.b16 %v234
    %v1089 = vunpack.c.l.b16 %v235
    %v1090 = vunpack.c.h.b16 %v235
    %v1091 = vunpack.c.l.b16 %v236
    %v1092 = vunpack.c.h.b16 %v236
    %v1093 = vunpack.c.l.b16 %v237
    %v1094 = vunpack.c.h.b16 %v237
    %v1095 = vunpack.c.l.b16 %v238
    %v1096 = vunpack.c.h.b16 %v238
    %v1097 = vunpack.c.l.b16 %v239
    %v1098 = vunpack.c.h.b16 %v239
    %v1099 = vunpack.c.l.b16 %v240
    %v1100 = vunpack.c.h.b16 %v240
    %v1101 = vunpack.c.l.b16 %v241
    %v1102 = vunpack.c.h.b16 %v241
    %v1103 = vunpack.c.l.b16 %v242
    %v1104 = vunpack.c.h.b16 %v242
    %v1105 = vunpack.c.l.b16 %v243
    %v1106 = vunpack.c.h.b16 %v243
    %v1107 = vunpack.c.l.b16 %v244
    %v1108 = vunpack.c.h.b16 %v244
    %v1109 = vunpack.c.l.b16 %v245
    %v1110 = vunpack.c.h.b16 %v245
    %v1111 = vunpack.c.l.b16 %v246
    %v1112 = vunpack.c.h.b16 %v246
    %v1113 = vunpack.c.l.b16 %v247
    %v1114 = vunpack.c.h.b16 %v247
    %v1115 = vunpack.c.l.b16 %v248
    %v1116 = vunpack.c.h.b16 %v248
    %v1117 = vunpack.c.l.b16 %v249
    %v1118 = vunpack.c.h.b16 %v249
    %v1119 = vunpack.c.l.b16 %v250
    %v1120 = vunpack.c.h.b16 %v250
    %v1121 = vunpack.c.l.b16 %v251
    %v1122 = vunpack.c.h.b16 %v251
    %v1123 = vunpack.c.l.b16 %v252
    %v1124 = vunpack.c.h.b16 %v252
    %v1125 = vunpack.c.l.b16 %v253
    %v1126 = vunpack.c.h.b16 %v253
    %v1127 = vunpack.c.l.b16 %v254
    %v1128 = vunpack.c.h.b16 %v254
    %v1129 = vunpack.c.l.b16 %v255
    %v1130 = vunpack.c.h.b16 %v255
    %v1131 = vunpack.c.l.b16 %v256
    %v1132 = vunpack.c.h.b16 %v256
    %v1133 = vunpack.c.l.b16 %v257
    %v1134 = vunpack.c.h.b16 %v257
    %v1135 = vunpack.c.l.b16 %v258
    %v1136 = vunpack.c.h.b16 %v258
    %v1137 = vunpack.c.l.b16 %v259
    %v1138 = vunpack.c.h.b16 %v259
    %v1139 = vunpack.c.l.b16 %v260
    %v1140 = vunpack.c.h.b16 %v260
    %v1141 = vunpack.c.l.b16 %v261
    %v1142 = vunpack.c.h.b16 %v261
    %v1143 = vunpack.c.l.b16 %v262
    %v1144 = vunpack.c.h.b16 %v262
    %v1145 = vunpack.c.l.b16 %v263
    %v1146 = vunpack.c.h.b16 %v263
    %v1147 = vunpack.c.l.b16 %v264
    %v1148 = vunpack.c.h.b16 %v264
    %v1149 = vunpack.c.l.b16 %v265
    %v1150 = vunpack.c.h.b16 %v265
    %v1151 = vunpack.c.l.b16 %v266
    %v1152 = vunpack.c.h.b16 %v266
    %v1153 = vunpack.c.l.b16 %v267
    %v1154 = vunpack.c.h.b16 %v267
    %v1155 = vunpack.c.l.b16 %v268
    %v1156 = vunpack.c.h.b16 %v268
    %v1157 = vunpack.c.l.b16 %v269
    %v1158 = vunpack.c.h.b16 %v269
    %v1159 = vunpack.c.l.b16 %v270
    %v1160 = vunpack.c.h.b16 %v270
    %v1161 = vunpack.c.l.b16 %v271
    %v1162 = vunpack.c.h.b16 %v271
    %v1163 = vunpack.c.l.b16 %v272
    %v1164 = vunpack.c.h.b16 %v272
    %v1165 = vunpack.c.l.b16 %v273
    %v1166 = vunpack.c.h.b16 %v273
    %v1167 = vunpack.c.l.b16 %v274
    %v1168 = vunpack.c.h.b16 %v274
    %v1169 = vunpack.c.l.b16 %v275
    %v1170 = vunpack.c.h.b16 %v275
    %v1171 = vunpack.c.l.b16 %v276
    %v1172 = vunpack.c.h.b16 %v276
    %v1173 = vunpack.c.l.b16 %v277
    %v1174 = vunpack.c.h.b16 %v277
    %v1175 = vunpack.c.l.b16 %v278
    %v1176 = vunpack.c.h.b16 %v278
    %v1177 = vunpack.c.l.b16 %v279
    %v1178 = vunpack.c.h.b16 %v279
    %v1179 = vunpack.c.l.b16 %v280
    %v1180 = vunpack.c.h.b16 %v280
    %v1181 = vunpack.c.l.b16 %v281
    %v1182 = vunpack.c.h.b16 %v281
    %v1183 = vunpack.c.l.b16 %v282
    %v1184 = vunpack.c.h.b16 %v282
    %v1185 = vunpack.c.l.b16 %v283
    %v1186 = vunpack.c.h.b16 %v283
    %v1187 = vunpack.c.l.b16 %v284
    %v1188 = vunpack.c.h.b16 %v284
    %v1189 = vunpack.c.l.b16 %v285
    %v1190 = vunpack.c.h.b16 %v285
    %v1191 = vunpack.c.l.b16 %v286
    %v1192 = vunpack.c.h.b16 %v286
    %v1193 = vunpack.c.l.b16 %v287
    %v1194 = vunpack.c.h.b16 %v287
    %v1195 = vunpack.c.l.b16 %v288
    %v1196 = vunpack.c.h.b16 %v288
    %v1197 = vunpack.c.l.b16 %v289
    %v1198 = vunpack.c.h.b16 %v289
    %v1199 = vunpack.c.l.b16 %v290
    %v1200 = vunpack.c.h.b16 %v290
    %v1201 = vunpack.c.l.b16 %v291
    %v1202 = vunpack.c.h.b16 %v291
    %v1203 = vunpack.c.l.b16 %v292
    %v1204 = vunpack.c.h.b16 %v292
    %v1205 = vunpack.c.l.b16 %v293
    %v1206 = vunpack.c.h.b16 %v293
    %v1207 = vunpack.c.l.b16 %v294
    %v1208 = vunpack.c.h.b16 %v294
    %v1209 = vunpack.c.l.b16 %v295
    %v1210 = vunpack.c.h.b16 %v295
    %v1211 = vunpack.c.l.b16 %v296
    %v1212 = vunpack.c.h.b16 %v296
    %v1213 = vunpack.c.l.b16 %v297
    %v1214 = vunpack.c.h.b16 %v297
    %v1215 = vunpack.c.l.b16 %v298
    %v1216 = vunpack.c.h.b16 %v298
    %v1217 = vunpack.c.l.b16 %v299
    %v1218 = vunpack.c.h.b16 %v299
    %v1219 = vunpack.c.l.b16 %v300
    %v1220 = vunpack.c.h.b16 %v300
    %v1221 = vunpack.c.l.b16 %v301
    %v1222 = vunpack.c.h.b16 %v301
    %v1223 = vunpack.c.l.b16 %v302
    %v1224 = vunpack.c.h.b16 %v302
    %v1225 = vunpack.c.l.b16 %v303
    %v1226 = vunpack.c.h.b16 %v303
    %v1227 = vunpack.c.l.b16 %v304
    %v1228 = vunpack.c.h.b16 %v304
    %v1229 = vunpack.c.l.b16 %v305
    %v1230 = vunpack.c.h.b16 %v305
    %v1231 = vunpack.c.l.b16 %v306
    %v1232 = vunpack.c.h.b16 %v306
    %v1233 = vunpack.c.l.b16 %v307
    %v1234 = vunpack.c.h.b16 %v307
    %v1235 = vunpack.c.l.b16 %v308
    %v1236 = vunpack.c.h.b16 %v308
    %v1237 = vunpack.c.l.b16 %v309
    %v1238 = vunpack.c.h.b16 %v309
    %v1239 = vunpack.c.l.b16 %v310
    %v1240 = vunpack.c.h.b16 %v310
    %v1241 = vunpack.c.l.b16 %v311
    %v1242 = vunpack.c.h.b16 %v311
    %v1243 = vunpack.c.l.b16 %v312
    %v1244 = vunpack.c.h.b16 %v312
    %v1245 = vunpack.c.l.b16 %v313
    %v1246 = vunpack.c.h.b16 %v313
    %v1247 = vunpack.c.l.b16 %v314
    %v1248 = vunpack.c.h.b16 %v314
    %v1249 = vunpack.c.l.b16 %v315
    %v1250 = vunpack.c.h.b16 %v315
    %v1251 = vunpack.c.l.b16 %v316
    %v1252 = vunpack.c.h.b16 %v316
    %v1253 = vunpack.c.l.b16 %v317
    %v1254 = vunpack.c.h.b16 %v317
    %v1255 = vunpack.c.l.b16 %v318
    %v1256 = vunpack.c.h.b16 %v318
    %v1257 = vunpack.c.l.b16 %v319
    %v1258 = vunpack.c.h.b16 %v319
    %v1259 = vunpack.c.l.b16 %v320
    %v1260 = vunpack.c.h.b16 %v320
    %v1261 = vunpack.c.l.b16 %v321
    %v1262 = vunpack.c.h.b16 %v321
    %v1263 = vunpack.c.l.b16 %v322
    %v1264 = vunpack.c.h.b16 %v322
    %v1265 = vunpack.c.l.b16 %v323
    %v1266 = vunpack.c.h.b16 %v323
    %v1267 = vunpack.c.l.b16 %v324
    %v1268 = vunpack.c.h.b16 %v324
    %v1269 = vunpack.c.l.b16 %v325
    %v1270 = vunpack.c.h.b16 %v325
    %v1271 = vunpack.c.l.b16 %v326
    %v1272 = vunpack.c.h.b16 %v326
    %v1273 = vunpack.c.l.b16 %v327
    %v1274 = vunpack.c.h.b16 %v327
    %v1275 = vunpack.c.l.b16 %v328
    %v1276 = vunpack.c.h.b16 %v328
    %v1277 = vunpack.c.l.b16 %v329
    %v1278 = vunpack.c.h.b16 %v329
    %v1279 = vunpack.c.l.b16 %v330
    %v1280 = vunpack.c.h.b16 %v330
    %v1281 = vunpack.c.l.b16 %v331
    %v1282 = vunpack.c.h.b16 %v331
    %v1283 = vunpack.c.l.b16 %v332
    %v1284 = vunpack.c.h.b16 %v332
    %v1285 = vunpack.c.l.b16 %v333
    %v1286 = vunpack.c.h.b16 %v333
    %v1287 = vunpack.c.l.b16 %v334
    %v1288 = vunpack.c.h.b16 %v334
    %v1289 = vunpack.c.l.b16 %v335
    %v1290 = vunpack.c.h.b16 %v335
    %v1291 = vunpack.c.l.b16 %v336
    %v1292 = vunpack.c.h.b16 %v336
    %v1293 = vunpack.c.l.b16 %v337
    %v1294 = vunpack.c.h.b16 %v337
    %v1295 = vunpack.c.l.b16 %v338
    %v1296 = vunpack.c.h.b16 %v338
    %v1297 = vunpack.c.l.b16 %v339
    %v1298 = vunpack.c.h.b16 %v339
    %v1299 = vunpack.c.l.b16 %v340
    %v1300 = vunpack.c.h.b16 %v340
    %v1301 = vunpack.c.l.b16 %v341
    %v1302 = vunpack.c.h.b16 %v341
    %v1303 = vunpack.c.l.b16 %v342
    %v1304 = vunpack.c.h.b16 %v342
    %v1305 = vunpack.c.l.b16 %v343
    %v1306 = vunpack.c.h.b16 %v343
    %v1307 = vunpack.c.l.b16 %v344
    %v1308 = vunpack.c.h.b16 %v344
    %v1309 = vunpack.c.l.b16 %v345
    %v1310 = vunpack.c.h.b16 %v345
    %v1311 = vunpack.c.l.b16 %v346
    %v1312 = vunpack.c.h.b16 %v346
    %v1313 = vunpack.c.l.b16 %v347
    %v1314 = vunpack.c.h.b16 %v347
    %v1315 = vunpack.c.l.b16 %v348
    %v1316 = vunpack.c.h.b16 %v348
    %v1317 = vunpack.c.l.b16 %v349
    %v1318 = vunpack.c.h.b16 %v349
    %v1319 = vunpack.c.l.b16 %v350
    %v1320 = vunpack.c.h.b16 %v350
    %v1321 = vunpack.c.l.b16 %v351
    %v1322 = vunpack.c.h.b16 %v351
    %v1323 = vunpack.c.l.b16 %v352
    %v1324 = vunpack.c.h.b16 %v352
    %v1325 = vunpack.c.l.b16 %v353
    %v1326 = vunpack.c.h.b16 %v353
    %v1327 = vunpack.c.l.b16 %v354
    %v1328 = vunpack.c.h.b16 %v354
    %v1329 = vunpack.c.l.b16 %v355
    %v1330 = vunpack.c.h.b16 %v355
    %v1331 = vunpack.c.l.b16 %v356
    %v1332 = vunpack.c.h.b16 %v356
    %v1333 = vunpack.c.l.b16 %v357
    %v1334 = vunpack.c.h.b16 %v357
    %v1335 = vunpack.c.l.b16 %v358
    %v1336 = vunpack.c.h.b16 %v358
    %v1337 = vunpack.c.l.b16 %v359
    %v1338 = vunpack.c.h.b16 %v359
    %v1339 = vunpack.c.l.b16 %v360
    %v1340 = vunpack.c.h.b16 %v360
    %v1341 = vunpack.c.l.b16 %v361
    %v1342 = vunpack.c.h.b16 %v361
    %v1343 = vunpack.c.l.b16 %v362
    %v1344 = vunpack.c.h.b16 %v362
    %v1345 = vunpack.c.l.b16 %v363
    %v1346 = vunpack.c.h.b16 %v363
    %v1347 = vunpack.c.l.b16 %v364
    %v1348 = vunpack.c.h.b16 %v364
    %v1349 = vunpack.c.l.b16 %v365
    %v1350 = vunpack.c.h.b16 %v365
    %v1351 = vunpack.c.l.b16 %v366
    %v1352 = vunpack.c.h.b16 %v366
    %v1353 = vunpack.c.l.b16 %v367
    %v1354 = vunpack.c.h.b16 %v367
    %v1355 = vunpack.c.l.b16 %v368
    %v1356 = vunpack.c.h.b16 %v368
    %v1357 = vunpack.c.l.b16 %v369
    %v1358 = vunpack.c.h.b16 %v369
    %v1359 = vunpack.c.l.b16 %v370
    %v1360 = vunpack.c.h.b16 %v370
    %v1361 = vunpack.c.l.b16 %v371
    %v1362 = vunpack.c.h.b16 %v371
    %v1363 = vunpack.c.l.b16 %v372
    %v1364 = vunpack.c.h.b16 %v372
    %v1365 = vunpack.c.l.b16 %v373
    %v1366 = vunpack.c.h.b16 %v373
    %v1367 = vunpack.c.l.b16 %v374
    %v1368 = vunpack.c.h.b16 %v374
    %v1369 = vunpack.c.l.b16 %v375
    %v1370 = vunpack.c.h.b16 %v375
    %v1371 = vunpack.c.l.b16 %v376
    %v1372 = vunpack.c.h.b16 %v376
    %v1373 = vunpack.c.l.b16 %v377
    %v1374 = vunpack.c.h.b16 %v377
    %v1375 = vunpack.c.l.b16 %v378
    %v1376 = vunpack.c.h.b16 %v378
    %v1377 = vunpack.c.l.b16 %v379
    %v1378 = vunpack.c.h.b16 %v379
    %v1379 = vunpack.c.l.b16 %v380
    %v1380 = vunpack.c.h.b16 %v380
    %v1381 = vunpack.c.l.b16 %v381
    %v1382 = vunpack.c.h.b16 %v381
    %v1383 = vunpack.c.l.b16 %v382
    %v1384 = vunpack.c.h.b16 %v382
    %v1385 = vunpack.c.l.b16 %v383
    %v1386 = vunpack.c.h.b16 %v383
    %v1387 = vunpack.c.l.b16 %v384
    %v1388 = vunpack.c.h.b16 %v384
    %v1389 = vunpack.c.l.b16 %v385
    %v1390 = vunpack.c.h.b16 %v385
    %v1391 = vunpack.c.l.b16 %v386
    %v1392 = vunpack.c.h.b16 %v386
    %v1393 = vunpack.c.l.b16 %v387
    %v1394 = vunpack.c.h.b16 %v387
    %v1395 = vunpack.c.l.b16 %v388
    %v1396 = vunpack.c.h.b16 %v388
    %v1397 = vunpack.c.l.b16 %v389
    %v1398 = vunpack.c.h.b16 %v389
    %v1399 = vunpack.c.l.b16 %v390
    %v1400 = vunpack.c.h.b16 %v390
    %v1401 = vunpack.c.l.b16 %v391
    %v1402 = vunpack.c.h.b16 %v391
    %v1403 = vunpack.c.l.b16 %v392
    %v1404 = vunpack.c.h.b16 %v392
    %v1405 = vunpack.c.l.b16 %v393
    %v1406 = vunpack.c.h.b16 %v393
    %v1407 = vunpack.c.l.b16 %v394
    %v1408 = vunpack.c.h.b16 %v394
    %v1409 = vunpack.c.l.b16 %v395
    %v1410 = vunpack.c.h.b16 %v395
    %v1411 = vunpack.c.l.b16 %v396
    %v1412 = vunpack.c.h.b16 %v396
    %v1413 = vunpack.c.l.b16 %v397
    %v1414 = vunpack.c.h.b16 %v397
    %v1415 = vunpack.c.l.b16 %v398
    %v1416 = vunpack.c.h.b16 %v398
    %v1417 = vunpack.c.l.b16 %v399
    %v1418 = vunpack.c.h.b16 %v399
    %v1419 = vunpack.c.l.b16 %v400
    %v1420 = vunpack.c.h.b16 %v400
    %v1421 = vunpack.c.l.b16 %v401
    %v1422 = vunpack.c.h.b16 %v401
    %v1423 = vunpack.c.l.b16 %v402
    %v1424 = vunpack.c.h.b16 %v402
    %v1425 = vunpack.c.l.b16 %v403
    %v1426 = vunpack.c.h.b16 %v403
    %v1427 = vunpack.c.l.b16 %v404
    %v1428 = vunpack.c.h.b16 %v404
    %v1429 = vunpack.c.l.b16 %v405
    %v1430 = vunpack.c.h.b16 %v405
    %v1431 = vunpack.c.l.b16 %v406
    %v1432 = vunpack.c.h.b16 %v406
    %v1433 = vunpack.c.l.b16 %v407
    %v1434 = vunpack.c.h.b16 %v407
    %v1435 = vunpack.c.l.b16 %v408
    %v1436 = vunpack.c.h.b16 %v408
    %v1437 = vunpack.c.l.b16 %v409
    %v1438 = vunpack.c.h.b16 %v409
    %v1439 = vunpack.c.l.b16 %v410
    %v1440 = vunpack.c.h.b16 %v410
    %v1441 = vunpack.c.l.b16 %v411
    %v1442 = vunpack.c.h.b16 %v411
    %v1443 = vunpack.c.l.b16 %v412
    %v1444 = vunpack.c.h.b16 %v412
    %v1445 = vunpack.c.l.b16 %v413
    %v1446 = vunpack.c.h.b16 %v413
    %v1447 = vunpack.c.l.b16 %v414
    %v1448 = vunpack.c.h.b16 %v414
    %v1449 = vunpack.c.l.b16 %v415
    %v1450 = vunpack.c.h.b16 %v415
    %v1451 = vunpack.c.l.b16 %v416
    %v1452 = vunpack.c.h.b16 %v416
    %v1453 = vunpack.c.l.b16 %v417
    %v1454 = vunpack.c.h.b16 %v417
    %v1455 = vunpack.c.l.b16 %v418
    %v1456 = vunpack.c.h.b16 %v418
    %v1457 = vunpack.c.l.b16 %v419
    %v1458 = vunpack.c.h.b16 %v419
    %v1459 = vunpack.c.l.b16 %v420
    %v1460 = vunpack.c.h.b16 %v420
    %v1461 = vunpack.c.l.b16 %v421
    %v1462 = vunpack.c.h.b16 %v421
    %v1463 = vunpack.c.l.b16 %v422
    %v1464 = vunpack.c.h.b16 %v422
    %v1465 = vpack.c.b16 %v957, %v953
    %v1466 = vpack.c.b16 %v958, %v954
    %v1467 = vpack.c.b16 %v959, %v955
    %v1468 = vpack.c.b16 %v960, %v956
    %v1469 = vpack.c.b16 %v965, %v961
    %v1470 = vpack.c.b16 %v966, %v962
    %v1471 = vpack.c.b16 %v967, %v963
    %v1472 = vpack.c.b16 %v968, %v964
    %v1473 = vpack.c.b16 %v973, %v969
    %v1474 = vpack.c.b16 %v974, %v970
    %v1475 = vpack.c.b16 %v975, %v971
    %v1476 = vpack.c.b16 %v976, %v972
    %v1477 = vpack.c.b16 %v981, %v977
    %v1478 = vpack.c.b16 %v982, %v978
    %v1479 = vpack.c.b16 %v983, %v979
    %v1480 = vpack.c.b16 %v984, %v980
    %v1481 = vpack.c.b16 %v989, %v985
    %v1482 = vpack.c.b16 %v990, %v986
    %v1483 = vpack.c.b16 %v991, %v987
    %v1484 = vpack.c.b16 %v992, %v988
    %v1485 = vpack.c.b16 %v997, %v993
    %v1486 = vpack.c.b16 %v998, %v994
    %v1487 = vpack.c.b16 %v999, %v995
    %v1488 = vpack.c.b16 %v1000, %v996
    %v1489 = vpack.c.b16 %v1005, %v1001
    %v1490 = vpack.c.b16 %v1006, %v1002
    %v1491 = vpack.c.b16 %v1007, %v1003
    %v1492 = vpack.c.b16 %v1008, %v1004
    %v1493 = vpack.c.b16 %v1013, %v1009
    %v1494 = vpack.c.b16 %v1014, %v1010
    %v1495 = vpack.c.b16 %v1015, %v1011
    %v1496 = vpack.c.b16 %v1016, %v1012
    %v1497 = vpack.c.b16 %v1021, %v1017
    %v1498 = vpack.c.b16 %v1022, %v1018
    %v1499 = vpack.c.b16 %v1023, %v1019
    %v1500 = vpack.c.b16 %v1024, %v1020
    %v1501 = vpack.c.b16 %v1029, %v1025
    %v1502 = vpack.c.b16 %v1030, %v1026
    %v1503 = vpack.c.b16 %v1031, %v1027
    %v1504 = vpack.c.b16 %v1032, %v1028
    %v1505 = vpack.c.b16 %v1037, %v1033
    %v1506 = vpack.c.b16 %v1038, %v1034
    %v1507 = vpack.c.b16 %v1039, %v1035
    %v1508 = vpack.c.b16 %v1040, %v1036
    %v1509 = vpack.c.b16 %v1045, %v1041
    %v1510 = vpack.c.b16 %v1046, %v1042
    %v1511 = vpack.c.b16 %v1047, %v1043
    %v1512 = vpack.c.b16 %v1048, %v1044
    %v1513 = vpack.c.b16 %v1053, %v1049
    %v1514 = vpack.c.b16 %v1054, %v1050
    %v1515 = vpack.c.b16 %v1055, %v1051
    %v1516 = vpack.c.b16 %v1056, %v1052
    %v1517 = vpack.c.b16 %v1061, %v1057
    %v1518 = vpack.c.b16 %v1062, %v1058
    %v1519 = vpack.c.b16 %v1063, %v1059
    %v1520 = vpack.c.b16 %v1064, %v1060
    %v1521 = vpack.c.b16 %v1069, %v1065
    %v1522 = vpack.c.b16 %v1070, %v1066
    %v1523 = vpack.c.b16 %v1071, %v1067
    %v1524 = vpack.c.b16 %v1072, %v1068
    %v1525 = vpack.c.b16 %v1077, %v1073
    %v1526 = vpack.c.b16 %v1078, %v1074
    %v1527 = vpack.c.b16 %v1079, %v1075
    %v1528 = vpack.c.b16 %v1080, %v1076
    %v1529 = vpack.c.b16 %v1085, %v1081
    %v1530 = vpack.c.b16 %v1086, %v1082
    %v1531 = vpack.c.b16 %v1087, %v1083
    %v1532 = vpack.c.b16 %v1088, %v1084
    %v1533 = vpack.c.b16 %v1093, %v1089
    %v1534 = vpack.c.b16 %v1094, %v1090
    %v1535 = vpack.c.b16 %v1095, %v1091
    %v1536 = vpack.c.b16 %v1096, %v1092
    %v1537 = vpack.c.b16 %v1101, %v1097
    %v1538 = vpack.c.b16 %v1102, %v1098
    %v1539 = vpack.c.b16 %v1103, %v1099
    %v1540 = vpack.c.b16 %v1104, %v1100
    %v1541 = vpack.c.b16 %v1109, %v1105
    %v1542 = vpack.c.b16 %v1110, %v1106
    %v1543 = vpack.c.b16 %v1111, %v1107
    %v1544 = vpack.c.b16 %v1112, %v1108
    %v1545 = vpack.c.b16 %v1117, %v1113
    %v1546 = vpack.c.b16 %v1118, %v1114
    %v1547 = vpack.c.b16 %v1119, %v1115
    %v1548 = vpack.c.b16 %v1120, %v1116
    %v1549 = vpack.c.b16 %v1125, %v1121
    %v1550 = vpack.c.b16 %v1126, %v1122
    %v1551 = vpack.c.b16 %v1127, %v1123
    %v1552 = vpack.c.b16 %v1128, %v1124
    %v1553 = vpack.c.b16 %v1133, %v1129
    %v1554 = vpack.c.b16 %v1134, %v1130
    %v1555 = vpack.c.b16 %v1135, %v1131
    %v1556 = vpack.c.b16 %v1136, %v1132
    %v1557 = vpack.c.b16 %v1141, %v1137
    %v1558 = vpack.c.b16 %v1142, %v1138
    %v1559 = vpack.c.b16 %v1143, %v1139
    %v1560 = vpack.c.b16 %v1144, %v1140
    %v1561 = vpack.c.b16 %v1149, %v1145
    %v1562 = vpack.c.b16 %v1150, %v1146
    %v1563 = vpack.c.b16 %v1151, %v1147
    %v1564 = vpack.c.b16 %v1152, %v1148
    %v1565 = vpack.c.b16 %v1157, %v1153
    %v1566 = vpack.c.b16 %v1158, %v1154
    %v1567 = vpack.c.b16 %v1159, %v1155
    %v1568 = vpack.c.b16 %v1160, %v1156
    %v1569 = vpack.c.b16 %v1165, %v1161
    %v1570 = vpack.c.b16 %v1166, %v1162
    %v1571 = vpack.c.b16 %v1167, %v1163
    %v1572 = vpack.c.b16 %v1168, %v1164
    %v1573 = vpack.c.b16 %v1173, %v1169
    %v1574 = vpack.c.b16 %v1174, %v1170
    %v1575 = vpack.c.b16 %v1175, %v1171
    %v1576 = vpack.c.b16 %v1176, %v1172
    %v1577 = vpack.c.b16 %v1181, %v1177
    %v1578 = vpack.c.b16 %v1182, %v1178
    %v1579 = vpack.c.b16 %v1183, %v1179
    %v1580 = vpack.c.b16 %v1184, %v1180
    %v1581 = vpack.c.b16 %v1189, %v1185
    %v1582 = vpack.c.b16 %v1190, %v1186
    %v1583 = vpack.c.b16 %v1191, %v1187
    %v1584 = vpack.c.b16 %v1192, %v1188
    %v1585 = vpack.c.b16 %v1197, %v1193
    %v1586 = vpack.c.b16 %v1198, %v1194
    %v1587 = vpack.c.b16 %v1199, %v1195
    %v1588 = vpack.c.b16 %v1200, %v1196
    %v1589 = vpack.c.b16 %v1205, %v1201
    %v1590 = vpack.c.b16 %v1206, %v1202
    %v1591 = vpack.c.b16 %v1207, %v1203
    %v1592 = vpack.c.b16 %v1208, %v1204
    %v1593 = vpack.c.b16 %v1213, %v1209
    %v1594 = vpack.c.b16 %v1214, %v1210
    %v1595 = vpack.c.b16 %v1215, %v1211
    %v1596 = vpack.c.b16 %v1216, %v1212
    %v1597 = vpack.c.b16 %v1221, %v1217
    %v1598 = vpack.c.b16 %v1222, %v1218
    %v1599 = vpack.c.b16 %v1223, %v1219
    %v1600 = vpack.c.b16 %v1224, %v1220
    %v1601 = vpack.c.b16 %v1229, %v1225
    %v1602 = vpack.c.b16 %v1230, %v1226
    %v1603 = vpack.c.b16 %v1231, %v1227
    %v1604 = vpack.c.b16 %v1232, %v1228
    %v1605 = vpack.c.b16 %v1237, %v1233
    %v1606 = vpack.c.b16 %v1238, %v1234
    %v1607 = vpack.c.b16 %v1239, %v1235
    %v1608 = vpack.c.b16 %v1240, %v1236
    %v1609 = vpack.c.b16 %v1245, %v1241
    %v1610 = vpack.c.b16 %v1246, %v1242
    %v1611 = vpack.c.b16 %v1247, %v1243
    %v1612 = vpack.c.b16 %v1248, %v1244
    %v1613 = vpack.c.b16 %v1253, %v1249
    %v1614 = vpack.c.b16 %v1254, %v1250
    %v1615 = vpack.c.b16 %v1255, %v1251
    %v1616 = vpack.c.b16 %v1256, %v1252
    %v1617 = vpack.c.b16 %v1261, %v1257
    %v1618 = vpack.c.b16 %v1262, %v1258
    %v1619 = vpack.c.b16 %v1263, %v1259
    %v1620 = vpack.c.b16 %v1264, %v1260
    %v1621 = vpack.c.b16 %v1269, %v1265
    %v1622 = vpack.c.b16 %v1270, %v1266
    %v1623 = vpack.c.b16 %v1271, %v1267
    %v1624 = vpack.c.b16 %v1272, %v1268
    %v1625 = vpack.c.b16 %v1277, %v1273
    %v1626 = vpack.c.b16 %v1278, %v1274
    %v1627 = vpack.c.b16 %v1279, %v1275
    %v1628 = vpack.c.b16 %v1280, %v1276
    %v1629 = vpack.c.b16 %v1285, %v1281
    %v1630 = vpack.c.b16 %v1286, %v1282
    %v1631 = vpack.c.b16 %v1287, %v1283
    %v1632 = vpack.c.b16 %v1288, %v1284
    %v1633 = vpack.c.b16 %v1293, %v1289
    %v1634 = vpack.c.b16 %v1294, %v1290
    %v1635 = vpack.c.b16 %v1295, %v1291
    %v1636 = vpack.c.b16 %v1296, %v1292
    %v1637 = vpack.c.b16 %v1301, %v1297
    %v1638 = vpack.c.b16 %v1302, %v1298
    %v1639 = vpack.c.b16 %v1303, %v1299
    %v1640 = vpack.c.b16 %v1304, %v1300
    %v1641 = vpack.c.b16 %v1309, %v1305
    %v1642 = vpack.c.b16 %v1310, %v1306
    %v1643 = vpack.c.b16 %v1311, %v1307
    %v1644 = vpack.c.b16 %v1312, %v1308
    %v1645 = vpack.c.b16 %v1317, %v1313
    %v1646 = vpack.c.b16 %v1318, %v1314
    %v1647 = vpack.c.b16 %v1319, %v1315
    %v1648 = vpack.c.b16 %v1320, %v1316
    %v1649 = vpack.c.b16 %v1325, %v1321
    %v1650 = vpack.c.b16 %v1326, %v1322
    %v1651 = vpack.c.b16 %v1327, %v1323
    %v1652 = vpack.c.b16 %v1328, %v1324
    %v1653 = vpack.c.b16 %v1333, %v1329
    %v1654 = vpack.c.b16 %v1334, %v1330
    %v1655 = vpack.c.b16 %v1335, %v1331
    %v1656 = vpack.c.b16 %v1336, %v1332
    %v1657 = vpack.c.b16 %v1341, %v1337
    %v1658 = vpack.c.b16 %v1342, %v1338
    %v1659 = vpack.c.b16 %v1343, %v1339
    %v1660 = vpack.c.b16 %v1344, %v1340
    %v1661 = vpack.c.b16 %v1349, %v1345
    %v1662 = vpack.c.b16 %v1350, %v1346
    %v1663 = vpack.c.b16 %v1351, %v1347
    %v1664 = vpack.c.b16 %v1352, %v1348
    %v1665 = vpack.c.b16 %v1357, %v1353
    %v1666 = vpack.c.b16 %v1358, %v1354
    %v1667 = vpack.c.b16 %v1359, %v1355
    %v1668 = vpack.c.b16 %v1360, %v1356
    %v1669 = vpack.c.b16 %v1365, %v1361
    %v1670 = vpack.c.b16 %v1366, %v1362
    %v1671 = vpack.c.b16 %v1367, %v1363
    %v1672 = vpack.c.b16 %v1368, %v1364
    %v1673 = vpack.c.b16 %v1373, %v1369
    %v1674 = vpack.c.b16 %v1374, %v1370
    %v1675 = vpack.c.b16 %v1375, %v1371
    %v1676 = vpack.c.b16 %v1376, %v1372
    %v1677 = vpack.c.b16 %v1381, %v1377
    %v1678 = vpack.c.b16 %v1382, %v1378
    %v1679 = vpack.c.b16 %v1383, %v1379
    %v1680 = vpack.c.b16 %v1384, %v1380
    %v1681 = vpack.c.b16 %v1389, %v1385
    %v1682 = vpack.c.b16 %v1390, %v1386
    %v1683 = vpack.c.b16 %v1391, %v1387
    %v1684 = vpack.c.b16 %v1392, %v1388
    %v1685 = vpack.c.b16 %v1397, %v1393
    %v1686 = vpack.c.b16 %v1398, %v1394
    %v1687 = vpack.c.b16 %v1399, %v1395
    %v1688 = vpack.c.b16 %v1400, %v1396
    %v1689 = vpack.c.b16 %v1405, %v1401
    %v1690 = vpack.c.b16 %v1406, %v1402
    %v1691 = vpack.c.b16 %v1407, %v1403
    %v1692 = vpack.c.b16 %v1408, %v1404
    %v1693 = vpack.c.b16 %v1413, %v1409
    %v1694 = vpack.c.b16 %v1414, %v1410
    %v1695 = vpack.c.b16 %v1415, %v1411
    %v1696 = vpack.c.b16 %v1416, %v1412
    %v1697 = vpack.c.b16 %v1421, %v1417
    %v1698 = vpack.c.b16 %v1422, %v1418
    %v1699 = vpack.c.b16 %v1423, %v1419
    %v1700 = vpack.c.b16 %v1424, %v1420
    %v1701 = vpack.c.b16 %v1429, %v1425
    %v1702 = vpack.c.b16 %v1430, %v1426
    %v1703 = vpack.c.b16 %v1431, %v1427
    %v1704 = vpack.c.b16 %v1432, %v1428
    %v1705 = vpack.c.b16 %v1437, %v1433
    %v1706 = vpack.c.b16 %v1438, %v1434
    %v1707 = vpack.c.b16 %v1439, %v1435
    %v1708 = vpack.c.b16 %v1440, %v1436
    %v1709 = vpack.c.b16 %v1445, %v1441
    %v1710 = vpack.c.b16 %v1446, %v1442
    %v1711 = vpack.c.b16 %v1447, %v1443
    %v1712 = vpack.c.b16 %v1448, %v1444
    %v1713 = vpack.c.b16 %v1453, %v1449
    %v1714 = vpack.c.b16 %v1454, %v1450
    %v1715 = vpack.c.b16 %v1455, %v1451
    %v1716 = vpack.c.b16 %v1456, %v1452
    %v1717 = vpack.c.b16 %v1461, %v1457
    %v1718 = vpack.c.b16 %v1462, %v1458
    %v1719 = vpack.c.b16 %v1463, %v1459
    %v1720 = vpack.c.b16 %v1464, %v1460
    %1977 = vmatprep.subr.bf16.mxu0 %v1466
    %1978 = vmatpush1.bf16.msra.mxu0 %v1465
    %1979 = vmatprep.subr.bf16.mxu0 %v1470
    %1980 = vmatpush1.bf16.msra.mxu0 %v1469
    %1981 = vmatprep.subr.bf16.mxu0 %v1474
    %1982 = vmatpush1.bf16.msra.mxu0 %v1473
    %1983 = vmatprep.subr.bf16.mxu0 %v1478
    %1984 = vmatpush1.bf16.msra.mxu0 %v1477
    %1985 = vmatprep.subr.bf16.mxu0 %v1482
    %1986 = vmatpush1.bf16.msra.mxu0 %v1481
    %1987 = vmatprep.subr.bf16.mxu0 %v1486
    %1988 = vmatpush1.bf16.msra.mxu0 %v1485
    %1989 = vmatprep.subr.bf16.mxu0 %v1490
    %1990 = vmatpush1.bf16.msra.mxu0 %v1489
    %1991 = vmatprep.subr.bf16.mxu0 %v1494
    %1992 = vmatpush1.bf16.msra.mxu0 %v1493
    %1993 = vmatprep.subr.bf16.mxu0 %v1498
    %1994 = vmatpush1.bf16.msra.mxu0 %v1497
    %1995 = vmatprep.subr.bf16.mxu0 %v1502
    %1996 = vmatpush1.bf16.msra.mxu0 %v1501
    %1997 = vmatprep.subr.bf16.mxu0 %v1506
    %1998 = vmatpush1.bf16.msra.mxu0 %v1505
    %1999 = vmatprep.subr.bf16.mxu0 %v1510
    %2000 = vmatpush1.bf16.msra.mxu0 %v1509
    %2001 = vmatprep.subr.bf16.mxu0 %v1514
    %2002 = vmatpush1.bf16.msra.mxu0 %v1513
    %2003 = vmatprep.subr.bf16.mxu0 %v1518
    %2004 = vmatpush1.bf16.msra.mxu0 %v1517
    %2005 = vmatprep.subr.bf16.mxu0 %v1522
    %2006 = vmatpush1.bf16.msra.mxu0 %v1521
    %2007 = vmatprep.subr.bf16.mxu0 %v1526
    %2008 = vmatpush1.bf16.msra.mxu0 %v1525
    %2009 = vmatprep.mubr.bf16.mxu0 %v151
    %2010 = vmatmul.mubr.bf16.gmra.mrb[0].mxu0 %v150
    %v2011 = vpop.f32.mrb[0].mxu0
    %v2012 = vadd.f32 %v650, %v2011
    %v2013 = vpop.f32.mrb[0].mxu0
    %v2014 = vadd.f32 %v652, %v2013
    %v2015 = vpop.f32.mrb[0].mxu0
    %v2016 = vpop.f32.mrb[0].mxu0
    %2017 = vdwg.mxu0
    %2018 = vmatprep.subr.bf16.mxu0 %v1530
    %2019 = vmatpush1.bf16.msra.mxu0 %v1529
    %2020 = vmatprep.subr.bf16.mxu0 %v1534
    %2021 = vmatpush1.bf16.msra.mxu0 %v1533
    %2022 = vmatprep.subr.bf16.mxu0 %v1538
    %2023 = vmatpush1.bf16.msra.mxu0 %v1537
    %2024 = vmatprep.subr.bf16.mxu0 %v1542
    %2025 = vmatpush1.bf16.msra.mxu0 %v1541
    %2026 = vmatprep.subr.bf16.mxu0 %v1546
    %2027 = vmatpush1.bf16.msra.mxu0 %v1545
    %2028 = vmatprep.subr.bf16.mxu0 %v1550
    %2029 = vmatpush1.bf16.msra.mxu0 %v1549
    %2030 = vmatprep.subr.bf16.mxu0 %v1554
    %2031 = vmatpush1.bf16.msra.mxu0 %v1553
    %2032 = vmatprep.subr.bf16.mxu0 %v1558
    %2033 = vmatpush1.bf16.msra.mxu0 %v1557
    %2034 = vmatprep.subr.bf16.mxu0 %v1562
    %2035 = vmatpush1.bf16.msra.mxu0 %v1561
    %2036 = vmatprep.subr.bf16.mxu0 %v1566
    %2037 = vmatpush1.bf16.msra.mxu0 %v1565
    %2038 = vmatprep.subr.bf16.mxu0 %v1570
    %2039 = vmatpush1.bf16.msra.mxu0 %v1569
    %2040 = vmatprep.subr.bf16.mxu0 %v1574
    %2041 = vmatpush1.bf16.msra.mxu0 %v1573
    %2042 = vmatprep.subr.bf16.mxu0 %v1578
    %2043 = vmatpush1.bf16.msra.mxu0 %v1577
    %2044 = vmatprep.subr.bf16.mxu0 %v1582
    %2045 = vmatpush1.bf16.msra.mxu0 %v1581
    %2046 = vmatprep.subr.bf16.mxu0 %v1586
    %2047 = vmatpush1.bf16.msra.mxu0 %v1585
    %2048 = vmatprep.subr.bf16.mxu0 %v1590
    %2049 = vmatpush1.bf16.msra.mxu0 %v1589
    %2050 = vmatprep.mubr.bf16.mxu0 %v153
    %2051 = vmatmul.mubr.bf16.gmra.mrb[0].mxu0 %v152
    %v2052 = vpop.f32.mrb[0].mxu0
    %v2053 = vadd.f32 %v2012, %v2052
    %v2054 = vpop.f32.mrb[0].mxu0
    %v2055 = vadd.f32 %v2014, %v2054
    %v2056 = vpop.f32.mrb[0].mxu0
    %v2057 = vpop.f32.mrb[0].mxu0
    %2058 = vdwg.mxu0
    %2059 = vmatprep.subr.bf16.mxu0 %v1594
    %2060 = vmatpush1.bf16.msra.mxu0 %v1593
    %2061 = vmatprep.subr.bf16.mxu0 %v1598
    %2062 = vmatpush1.bf16.msra.mxu0 %v1597
    %2063 = vmatprep.subr.bf16.mxu0 %v1602
    %2064 = vmatpush1.bf16.msra.mxu0 %v1601
    %2065 = vmatprep.subr.bf16.mxu0 %v1606
    %2066 = vmatpush1.bf16.msra.mxu0 %v1605
    %2067 = vmatprep.subr.bf16.mxu0 %v1610
    %2068 = vmatpush1.bf16.msra.mxu0 %v1609
    %2069 = vmatprep.subr.bf16.mxu0 %v1614
    %2070 = vmatpush1.bf16.msra.mxu0 %v1613
    %2071 = vmatprep.subr.bf16.mxu0 %v1618
    %2072 = vmatpush1.bf16.msra.mxu0 %v1617
    %2073 = vmatprep.subr.bf16.mxu0 %v1622
    %2074 = vmatpush1.bf16.msra.mxu0 %v1621
    %2075 = vmatprep.subr.bf16.mxu0 %v1626
    %2076 = vmatpush1.bf16.msra.mxu0 %v1625
    %2077 = vmatprep.subr.bf16.mxu0 %v1630
    %2078 = vmatpush1.bf16.msra.mxu0 %v1629
    %2079 = vmatprep.subr.bf16.mxu0 %v1634
    %2080 = vmatpush1.bf16.msra.mxu0 %v1633
    %2081 = vmatprep.subr.bf16.mxu0 %v1638
    %2082 = vmatpush1.bf16.msra.mxu0 %v1637
    %2083 = vmatprep.subr.bf16.mxu0 %v1642
    %2084 = vmatpush1.bf16.msra.mxu0 %v1641
    %2085 = vmatprep.subr.bf16.mxu0 %v1646
    %2086 = vmatpush1.bf16.msra.mxu0 %v1645
    %2087 = vmatprep.subr.bf16.mxu0 %v1650
    %2088 = vmatpush1.bf16.msra.mxu0 %v1649
    %2089 = vmatprep.subr.bf16.mxu0 %v1654
    %2090 = vmatpush1.bf16.msra.mxu0 %v1653
    %2091 = vmatprep.mubr.bf16.mxu0 %v155
    %2092 = vmatmul.mubr.bf16.gmra.mrb[0].mxu0 %v154
    %v2093 = vpop.f32.mrb[0].mxu0
    %v2094 = vadd.f32 %v2053, %v2093
    %v2095 = vpop.f32.mrb[0].mxu0
    %v2096 = vadd.f32 %v2055, %v2095
    %v2097 = vpop.f32.mrb[0].mxu0
    %v2098 = vpop.f32.mrb[0].mxu0
    %2099 = vdwg.mxu0
    %2100 = vmatprep.subr.bf16.mxu0 %v1658
    %2101 = vmatpush1.bf16.msra.mxu0 %v1657
    %2102 = vmatprep.subr.bf16.mxu0 %v1662
    %2103 = vmatpush1.bf16.msra.mxu0 %v1661
    %2104 = vmatprep.subr.bf16.mxu0 %v1666
    %2105 = vmatpush1.bf16.msra.mxu0 %v1665
    %2106 = vmatprep.subr.bf16.mxu0 %v1670
    %2107 = vmatpush1.bf16.msra.mxu0 %v1669
    %2108 = vmatprep.subr.bf16.mxu0 %v1674
    %2109 = vmatpush1.bf16.msra.mxu0 %v1673
    %2110 = vmatprep.subr.bf16.mxu0 %v1678
    %2111 = vmatpush1.bf16.msra.mxu0 %v1677
    %2112 = vmatprep.subr.bf16.mxu0 %v1682
    %2113 = vmatpush1.bf16.msra.mxu0 %v1681
    %2114 = vmatprep.subr.bf16.mxu0 %v1686
    %2115 = vmatpush1.bf16.msra.mxu0 %v1685
    %2116 = vmatprep.subr.bf16.mxu0 %v1690
    %2117 = vmatpush1.bf16.msra.mxu0 %v1689
    %2118 = vmatprep.subr.bf16.mxu0 %v1694
    %2119 = vmatpush1.bf16.msra.mxu0 %v1693
    %2120 = vmatprep.subr.bf16.mxu0 %v1698
    %2121 = vmatpush1.bf16.msra.mxu0 %v1697
    %2122 = vmatprep.subr.bf16.mxu0 %v1702
    %2123 = vmatpush1.bf16.msra.mxu0 %v1701
    %2124 = vmatprep.subr.bf16.mxu0 %v1706
    %2125 = vmatpush1.bf16.msra.mxu0 %v1705
    %2126 = vmatprep.subr.bf16.mxu0 %v1710
    %2127 = vmatpush1.bf16.msra.mxu0 %v1709
    %2128 = vmatprep.subr.bf16.mxu0 %v1714
    %2129 = vmatpush1.bf16.msra.mxu0 %v1713
    %2130 = vmatprep.subr.bf16.mxu0 %v1718
    %2131 = vmatpush1.bf16.msra.mxu0 %v1717
    %2132 = vmatprep.mubr.bf16.mxu0 %v157
    %2133 = vmatmul.mubr.bf16.gmra.mrb[0].mxu0 %v156
    %v2134 = vpop.f32.mrb[0].mxu0
    %v2135 = vadd.f32 %v2094, %v2134
    %v2136 = vpop.f32.mrb[0].mxu0
    %v2137 = vadd.f32 %v2096, %v2136
    %v2138 = vpop.f32.mrb[0].mxu0
    %v2139 = vpop.f32.mrb[0].mxu0
    %2140 = vdwg.mxu0
    %2141 = vmatprep.subr.bf16.mxu0 %v1468
    %2142 = vmatpush1.bf16.msra.mxu0 %v1467
    %2143 = vmatprep.subr.bf16.mxu0 %v1472
    %2144 = vmatpush1.bf16.msra.mxu0 %v1471
    %2145 = vmatprep.subr.bf16.mxu0 %v1476
    %2146 = vmatpush1.bf16.msra.mxu0 %v1475
    %2147 = vmatprep.subr.bf16.mxu0 %v1480
    %2148 = vmatpush1.bf16.msra.mxu0 %v1479
    %2149 = vmatprep.subr.bf16.mxu0 %v1484
    %2150 = vmatpush1.bf16.msra.mxu0 %v1483
    %2151 = vmatprep.subr.bf16.mxu0 %v1488
    %2152 = vmatpush1.bf16.msra.mxu0 %v1487
    %2153 = vmatprep.subr.bf16.mxu0 %v1492
    %2154 = vmatpush1.bf16.msra.mxu0 %v1491
    %2155 = vmatprep.subr.bf16.mxu0 %v1496
    %2156 = vmatpush1.bf16.msra.mxu0 %v1495
    %2157 = vmatprep.subr.bf16.mxu0 %v1500
    %2158 = vmatpush1.bf16.msra.mxu0 %v1499
    %2159 = vmatprep.subr.bf16.mxu0 %v1504
    %2160 = vmatpush1.bf16.msra.mxu0 %v1503
    %2161 = vmatprep.subr.bf16.mxu0 %v1508
    %2162 = vmatpush1.bf16.msra.mxu0 %v1507
    %2163 = vmatprep.subr.bf16.mxu0 %v1512
    %2164 = vmatpush1.bf16.msra.mxu0 %v1511
    %2165 = vmatprep.subr.bf16.mxu0 %v1516
    %2166 = vmatpush1.bf16.msra.mxu0 %v1515
    %2167 = vmatprep.subr.bf16.mxu0 %v1520
    %2168 = vmatpush1.bf16.msra.mxu0 %v1519
    %2169 = vmatprep.subr.bf16.mxu0 %v1524
    %2170 = vmatpush1.bf16.msra.mxu0 %v1523
    %2171 = vmatprep.subr.bf16.mxu0 %v1528
    %2172 = vmatpush1.bf16.msra.mxu0 %v1527
    %2173 = vmatprep.mubr.bf16.mxu0 %v151
    %2174 = vmatmul.mubr.bf16.gmra.mrb[0].mxu0 %v150
    %v2175 = vpop.f32.mrb[0].mxu0
    %v2176 = vadd.f32 %v691, %v2175
    %v2177 = vpop.f32.mrb[0].mxu0
    %v2178 = vadd.f32 %v693, %v2177
    %v2179 = vpop.f32.mrb[0].mxu0
    %v2180 = vpop.f32.mrb[0].mxu0
    %2181 = vdwg.mxu0
    %2182 = vmatprep.subr.bf16.mxu0 %v1532
    %2183 = vmatpush1.bf16.msra.mxu0 %v1531
    %2184 = vmatprep.subr.bf16.mxu0 %v1536
    %2185 = vmatpush1.bf16.msra.mxu0 %v1535
    %2186 = vmatprep.subr.bf16.mxu0 %v1540
    %2187 = vmatpush1.bf16.msra.mxu0 %v1539
    %2188 = vmatprep.subr.bf16.mxu0 %v1544
    %2189 = vmatpush1.bf16.msra.mxu0 %v1543
    %2190 = vmatprep.subr.bf16.mxu0 %v1548
    %2191 = vmatpush1.bf16.msra.mxu0 %v1547
    %2192 = vmatprep.subr.bf16.mxu0 %v1552
    %2193 = vmatpush1.bf16.msra.mxu0 %v1551
    %2194 = vmatprep.subr.bf16.mxu0 %v1556
    %2195 = vmatpush1.bf16.msra.mxu0 %v1555
    %2196 = vmatprep.subr.bf16.mxu0 %v1560
    %2197 = vmatpush1.bf16.msra.mxu0 %v1559
    %2198 = vmatprep.subr.bf16.mxu0 %v1564
    %2199 = vmatpush1.bf16.msra.mxu0 %v1563
    %2200 = vmatprep.subr.bf16.mxu0 %v1568
    %2201 = vmatpush1.bf16.msra.mxu0 %v1567
    %2202 = vmatprep.subr.bf16.mxu0 %v1572
    %2203 = vmatpush1.bf16.msra.mxu0 %v1571
    %2204 = vmatprep.subr.bf16.mxu0 %v1576
    %2205 = vmatpush1.bf16.msra.mxu0 %v1575
    %2206 = vmatprep.subr.bf16.mxu0 %v1580
    %2207 = vmatpush1.bf16.msra.mxu0 %v1579
    %2208 = vmatprep.subr.bf16.mxu0 %v1584
    %2209 = vmatpush1.bf16.msra.mxu0 %v1583
    %2210 = vmatprep.subr.bf16.mxu0 %v1588
    %2211 = vmatpush1.bf16.msra.mxu0 %v1587
    %2212 = vmatprep.subr.bf16.mxu0 %v1592
    %2213 = vmatpush1.bf16.msra.mxu0 %v1591
    %2214 = vmatprep.mubr.bf16.mxu0 %v153
    %2215 = vmatmul.mubr.bf16.gmra.mrb[0].mxu0 %v152
    %v2216 = vpop.f32.mrb[0].mxu0
    %v2217 = vadd.f32 %v2176, %v2216
    %v2218 = vpop.f32.mrb[0].mxu0
    %v2219 = vadd.f32 %v2178, %v2218
    %v2220 = vpop.f32.mrb[0].mxu0
    %v2221 = vpop.f32.mrb[0].mxu0
    %2222 = vdwg.mxu0
    %2223 = vmatprep.subr.bf16.mxu0 %v1596
    %2224 = vmatpush1.bf16.msra.mxu0 %v1595
    %2225 = vmatprep.subr.bf16.mxu0 %v1600
    %2226 = vmatpush1.bf16.msra.mxu0 %v1599
    %2227 = vmatprep.subr.bf16.mxu0 %v1604
    %2228 = vmatpush1.bf16.msra.mxu0 %v1603
    %2229 = vmatprep.subr.bf16.mxu0 %v1608
    %2230 = vmatpush1.bf16.msra.mxu0 %v1607
    %2231 = vmatprep.subr.bf16.mxu0 %v1612
    %2232 = vmatpush1.bf16.msra.mxu0 %v1611
    %2233 = vmatprep.subr.bf16.mxu0 %v1616
    %2234 = vmatpush1.bf16.msra.mxu0 %v1615
    %2235 = vmatprep.subr.bf16.mxu0 %v1620
    %2236 = vmatpush1.bf16.msra.mxu0 %v1619
    %2237 = vmatprep.subr.bf16.mxu0 %v1624
    %2238 = vmatpush1.bf16.msra.mxu0 %v1623
    %2239 = vmatprep.subr.bf16.mxu0 %v1628
    %2240 = vmatpush1.bf16.msra.mxu0 %v1627
    %2241 = vmatprep.subr.bf16.mxu0 %v1632
    %2242 = vmatpush1.bf16.msra.mxu0 %v1631
    %2243 = vmatprep.subr.bf16.mxu0 %v1636
    %2244 = vmatpush1.bf16.msra.mxu0 %v1635
    %2245 = vmatprep.subr.bf16.mxu0 %v1640
    %2246 = vmatpush1.bf16.msra.mxu0 %v1639
    %2247 = vmatprep.subr.bf16.mxu0 %v1644
    %2248 = vmatpush1.bf16.msra.mxu0 %v1643
    %2249 = vmatprep.subr.bf16.mxu0 %v1648
    %2250 = vmatpush1.bf16.msra.mxu0 %v1647
    %2251 = vmatprep.subr.bf16.mxu0 %v1652
    %2252 = vmatpush1.bf16.msra.mxu0 %v1651
    %2253 = vmatprep.subr.bf16.mxu0 %v1656
    %2254 = vmatpush1.bf16.msra.mxu0 %v1655
    %2255 = vmatprep.mubr.bf16.mxu0 %v155
    %2256 = vmatmul.mubr.bf16.gmra.mrb[0].mxu0 %v154
    %v2257 = vpop.f32.mrb[0].mxu0
    %v2258 = vadd.f32 %v2217, %v2257
    %v2259 = vpop.f32.mrb[0].mxu0
    %v2260 = vadd.f32 %v2219, %v2259
    %v2261 = vpop.f32.mrb[0].mxu0
    %v2262 = vpop.f32.mrb[0].mxu0
    %2263 = vdwg.mxu0
    %2264 = vmatprep.subr.bf16.mxu0 %v1660
    %2265 = vmatpush1.bf16.msra.mxu0 %v1659
    %2266 = vmatprep.subr.bf16.mxu0 %v1664
    %2267 = vmatpush1.bf16.msra.mxu0 %v1663
    %2268 = vmatprep.subr.bf16.mxu0 %v1668
    %2269 = vmatpush1.bf16.msra.mxu0 %v1667
    %2270 = vmatprep.subr.bf16.mxu0 %v1672
    %2271 = vmatpush1.bf16.msra.mxu0 %v1671
    %2272 = vmatprep.subr.bf16.mxu0 %v1676
    %2273 = vmatpush1.bf16.msra.mxu0 %v1675
    %2274 = vmatprep.subr.bf16.mxu0 %v1680
    %2275 = vmatpush1.bf16.msra.mxu0 %v1679
    %2276 = vmatprep.subr.bf16.mxu0 %v1684
    %2277 = vmatpush1.bf16.msra.mxu0 %v1683
    %2278 = vmatprep.subr.bf16.mxu0 %v1688
    %2279 = vmatpush1.bf16.msra.mxu0 %v1687
    %2280 = vmatprep.subr.bf16.mxu0 %v1692
    %2281 = vmatpush1.bf16.msra.mxu0 %v1691
    %2282 = vmatprep.subr.bf16.mxu0 %v1696
    %2283 = vmatpush1.bf16.msra.mxu0 %v1695
    %2284 = vmatprep.subr.bf16.mxu0 %v1700
    %2285 = vmatpush1.bf16.msra.mxu0 %v1699
    %2286 = vmatprep.subr.bf16.mxu0 %v1704
    %2287 = vmatpush1.bf16.msra.mxu0 %v1703
    %2288 = vmatprep.subr.bf16.mxu0 %v1708
    %2289 = vmatpush1.bf16.msra.mxu0 %v1707
    %2290 = vmatprep.subr.bf16.mxu0 %v1712
    %2291 = vmatpush1.bf16.msra.mxu0 %v1711
    %2292 = vmatprep.subr.bf16.mxu0 %v1716
    %2293 = vmatpush1.bf16.msra.mxu0 %v1715
    %2294 = vmatprep.subr.bf16.mxu0 %v1720
    %2295 = vmatpush1.bf16.msra.mxu0 %v1719
    %2296 = vmatprep.mubr.bf16.mxu0 %v157
    %2297 = vmatmul.mubr.bf16.gmra.mrb[0].mxu0 %v156
    %v2298 = vpop.f32.mrb[0].mxu0
    %v2299 = vadd.f32 %v2258, %v2298
    %v2300 = vpop.f32.mrb[0].mxu0
    %v2301 = vadd.f32 %v2260, %v2300
    %v2302 = vpop.f32.mrb[0].mxu0
    %v2303 = vpop.f32.mrb[0].mxu0
    %2304 = vdwg.mxu0
    %vm2305 = vcmp.gt.f32.partialorder %v2135, 0.0
    %vm2306 = vcmp.gt.f32.partialorder %v2137, 0.0
    %vm2307 = vcmp.gt.f32.partialorder %v2299, 0.0
    %vm2308 = vcmp.gt.f32.partialorder %v2301, 0.0
    %v2309 = vmul.f32 %v2135, 0.2
    %v2310 = vmul.f32 %v2137, 0.2
    %v2311 = vmul.f32 %v2299, 0.2
    %v2312 = vmul.f32 %v2301, 0.2
    %v2313 = vsel %vm2305, %v2135, %v2309
    %v2314 = vsel %vm2306, %v2137, %v2310
    %v2315 = vsel %vm2307, %v2299, %v2311
    %v2316 = vsel %vm2308, %v2301, %v2312
    %v2317 = vpack.c.bf16 %v2313, %v2313
    %v2318 = vpack.c.bf16 %v2314, %v2314
    %v2319 = vpack.c.bf16 %v2315, %v2315
    %v2320 = vpack.c.bf16 %v2316, %v2316
    %v2321 = vld [vmem:[#allocation6] sm:$0xff]
    %v2322 = vld [vmem:[#allocation6 + $0x8] sm:$0xff]
    %v2323 = vld [vmem:[#allocation6 + $0x10] sm:$0xff]
    %v2324 = vld [vmem:[#allocation6 + $0x18] sm:$0xff]
    %v2325 = vld [vmem:[#allocation6 + $0x20] sm:$0xff]
    %v2326 = vld [vmem:[#allocation6 + $0x28] sm:$0xff]
    %v2327 = vld [vmem:[#allocation6 + $0x30] sm:$0xff]
    %v2328 = vld [vmem:[#allocation6 + $0x38] sm:$0xff]
    %v2329 = vld [vmem:[#allocation6 + $0x40] sm:$0xff]
    %v2330 = vld [vmem:[#allocation6 + $0x48] sm:$0xff]
    %v2331 = vld [vmem:[#allocation6 + $0x50] sm:$0xff]
    %v2332 = vld [vmem:[#allocation6 + $0x58] sm:$0xff]
    %v2333 = vld [vmem:[#allocation6 + $0x60] sm:$0xff]
    %v2334 = vld [vmem:[#allocation6 + $0x68] sm:$0xff]
    %v2335 = vld [vmem:[#allocation6 + $0x70] sm:$0xff]
    %v2336 = vld [vmem:[#allocation6 + $0x78] sm:$0xff]
    %v2337 = vld [vmem:[#allocation6 + $0x80] sm:$0xff]
    %v2338 = vld [vmem:[#allocation6 + $0x88] sm:$0xff]
    %v2339 = vld [vmem:[#allocation6 + $0x90] sm:$0xff]
    %v2340 = vld [vmem:[#allocation6 + $0x98] sm:$0xff]
    %v2341 = vld [vmem:[#allocation6 + $0xa0] sm:$0xff]
    %v2342 = vld [vmem:[#allocation6 + $0xa8] sm:$0xff]
    %v2343 = vld [vmem:[#allocation6 + $0xb0] sm:$0xff]
    %v2344 = vld [vmem:[#allocation6 + $0xb8] sm:$0xff]
    %v2345 = vld [vmem:[#allocation6 + $0xc0] sm:$0xff]
    %v2346 = vld [vmem:[#allocation6 + $0xc8] sm:$0xff]
    %v2347 = vld [vmem:[#allocation6 + $0xd0] sm:$0xff]
    %v2348 = vld [vmem:[#allocation6 + $0xd8] sm:$0xff]
    %v2349 = vld [vmem:[#allocation6 + $0xe0] sm:$0xff]
    %v2350 = vld [vmem:[#allocation6 + $0xe8] sm:$0xff]
    %v2351 = vld [vmem:[#allocation6 + $0xf0] sm:$0xff]
    %v2352 = vld [vmem:[#allocation6 + $0xf8] sm:$0xff]
    %v2353 = vld [vmem:[#allocation6 + $0x100] sm:$0xff]
    %v2354 = vld [vmem:[#allocation6 + $0x108] sm:$0xff]
    %v2355 = vld [vmem:[#allocation6 + $0x110] sm:$0xff]
    %v2356 = vld [vmem:[#allocation6 + $0x118] sm:$0xff]
    %v2357 = vld [vmem:[#allocation6 + $0x120] sm:$0xff]
    %v2358 = vld [vmem:[#allocation6 + $0x128] sm:$0xff]
    %v2359 = vld [vmem:[#allocation6 + $0x130] sm:$0xff]
    %v2360 = vld [vmem:[#allocation6 + $0x138] sm:$0xff]
    %v2361 = vld [vmem:[#allocation6 + $0x140] sm:$0xff]
    %v2362 = vld [vmem:[#allocation6 + $0x148] sm:$0xff]
    %v2363 = vld [vmem:[#allocation6 + $0x150] sm:$0xff]
    %v2364 = vld [vmem:[#allocation6 + $0x158] sm:$0xff]
    %v2365 = vld [vmem:[#allocation6 + $0x160] sm:$0xff]
    %v2366 = vld [vmem:[#allocation6 + $0x168] sm:$0xff]
    %v2367 = vld [vmem:[#allocation6 + $0x170] sm:$0xff]
    %v2368 = vld [vmem:[#allocation6 + $0x178] sm:$0xff]
    %v2369 = vld [vmem:[#allocation6 + $0x180] sm:$0xff]
    %v2370 = vld [vmem:[#allocation6 + $0x188] sm:$0xff]
    %v2371 = vld [vmem:[#allocation6 + $0x190] sm:$0xff]
    %v2372 = vld [vmem:[#allocation6 + $0x198] sm:$0xff]
    %v2373 = vld [vmem:[#allocation6 + $0x1a0] sm:$0xff]
    %v2374 = vld [vmem:[#allocation6 + $0x1a8] sm:$0xff]
    %v2375 = vld [vmem:[#allocation6 + $0x1b0] sm:$0xff]
    %v2376 = vld [vmem:[#allocation6 + $0x1b8] sm:$0xff]
    %v2377 = vld [vmem:[#allocation6 + $0x1c0] sm:$0xff]
    %v2378 = vld [vmem:[#allocation6 + $0x1c8] sm:$0xff]
    %v2379 = vld [vmem:[#allocation6 + $0x1d0] sm:$0xff]
    %v2380 = vld [vmem:[#allocation6 + $0x1d8] sm:$0xff]
    %v2381 = vld [vmem:[#allocation6 + $0x1e0] sm:$0xff]
    %v2382 = vld [vmem:[#allocation6 + $0x1e8] sm:$0xff]
    %v2383 = vld [vmem:[#allocation6 + $0x1f0] sm:$0xff]
    %v2384 = vld [vmem:[#allocation6 + $0x1f8] sm:$0xff]
    %v2385 = vld [vmem:[#allocation6 + $0x200] sm:$0xff]
    %v2386 = vld [vmem:[#allocation6 + $0x208] sm:$0xff]
    %v2387 = vld [vmem:[#allocation6 + $0x210] sm:$0xff]
    %v2388 = vld [vmem:[#allocation6 + $0x218] sm:$0xff]
    %v2389 = vld [vmem:[#allocation6 + $0x220] sm:$0xff]
    %v2390 = vld [vmem:[#allocation6 + $0x228] sm:$0xff]
    %v2391 = vld [vmem:[#allocation6 + $0x230] sm:$0xff]
    %v2392 = vld [vmem:[#allocation6 + $0x238] sm:$0xff]
    %v2393 = vld [vmem:[#allocation6 + $0x240] sm:$0xff]
    %v2394 = vld [vmem:[#allocation6 + $0x248] sm:$0xff]
    %v2395 = vld [vmem:[#allocation6 + $0x250] sm:$0xff]
    %v2396 = vld [vmem:[#allocation6 + $0x258] sm:$0xff]
    %v2397 = vld [vmem:[#allocation6 + $0x260] sm:$0xff]
    %v2398 = vld [vmem:[#allocation6 + $0x268] sm:$0xff]
    %v2399 = vld [vmem:[#allocation6 + $0x270] sm:$0xff]
    %v2400 = vld [vmem:[#allocation6 + $0x278] sm:$0xff]
    %v2401 = vld [vmem:[#allocation6 + $0x280] sm:$0xff]
    %v2402 = vld [vmem:[#allocation6 + $0x288] sm:$0xff]
    %v2403 = vld [vmem:[#allocation6 + $0x290] sm:$0xff]
    %v2404 = vld [vmem:[#allocation6 + $0x298] sm:$0xff]
    %v2405 = vld [vmem:[#allocation6 + $0x2a0] sm:$0xff]
    %v2406 = vld [vmem:[#allocation6 + $0x2a8] sm:$0xff]
    %v2407 = vld [vmem:[#allocation6 + $0x2b0] sm:$0xff]
    %v2408 = vld [vmem:[#allocation6 + $0x2b8] sm:$0xff]
    %v2409 = vld [vmem:[#allocation6 + $0x2c0] sm:$0xff]
    %v2410 = vld [vmem:[#allocation6 + $0x2c8] sm:$0xff]
    %v2411 = vld [vmem:[#allocation6 + $0x2d0] sm:$0xff]
    %v2412 = vld [vmem:[#allocation6 + $0x2d8] sm:$0xff]
    %v2413 = vld [vmem:[#allocation6 + $0x2e0] sm:$0xff]
    %v2414 = vld [vmem:[#allocation6 + $0x2e8] sm:$0xff]
    %v2415 = vld [vmem:[#allocation6 + $0x2f0] sm:$0xff]
    %v2416 = vld [vmem:[#allocation6 + $0x2f8] sm:$0xff]
    %v2417 = vld [vmem:[#allocation6 + $0x300] sm:$0xff]
    %v2418 = vld [vmem:[#allocation6 + $0x308] sm:$0xff]
    %v2419 = vld [vmem:[#allocation6 + $0x310] sm:$0xff]
    %v2420 = vld [vmem:[#allocation6 + $0x318] sm:$0xff]
    %v2421 = vld [vmem:[#allocation6 + $0x320] sm:$0xff]
    %v2422 = vld [vmem:[#allocation6 + $0x328] sm:$0xff]
    %v2423 = vld [vmem:[#allocation6 + $0x330] sm:$0xff]
    %v2424 = vld [vmem:[#allocation6 + $0x338] sm:$0xff]
    %v2425 = vld [vmem:[#allocation6 + $0x340] sm:$0xff]
    %v2426 = vld [vmem:[#allocation6 + $0x348] sm:$0xff]
    %v2427 = vld [vmem:[#allocation6 + $0x350] sm:$0xff]
    %v2428 = vld [vmem:[#allocation6 + $0x358] sm:$0xff]
    %v2429 = vld [vmem:[#allocation6 + $0x360] sm:$0xff]
    %v2430 = vld [vmem:[#allocation6 + $0x368] sm:$0xff]
    %v2431 = vld [vmem:[#allocation6 + $0x370] sm:$0xff]
    %v2432 = vld [vmem:[#allocation6 + $0x378] sm:$0xff]
    %v2433 = vld [vmem:[#allocation6 + $0x380] sm:$0xff]
    %v2434 = vld [vmem:[#allocation6 + $0x388] sm:$0xff]
    %v2435 = vld [vmem:[#allocation6 + $0x390] sm:$0xff]
    %v2436 = vld [vmem:[#allocation6 + $0x398] sm:$0xff]
    %v2437 = vld [vmem:[#allocation6 + $0x3a0] sm:$0xff]
    %v2438 = vld [vmem:[#allocation6 + $0x3a8] sm:$0xff]
    %v2439 = vld [vmem:[#allocation6 + $0x3b0] sm:$0xff]
    %v2440 = vld [vmem:[#allocation6 + $0x3b8] sm:$0xff]
    %v2441 = vld [vmem:[#allocation6 + $0x3c0] sm:$0xff]
    %v2442 = vld [vmem:[#allocation6 + $0x3c8] sm:$0xff]
    %v2443 = vld [vmem:[#allocation6 + $0x3d0] sm:$0xff]
    %v2444 = vld [vmem:[#allocation6 + $0x3d8] sm:$0xff]
    %v2445 = vld [vmem:[#allocation6 + $0x3e0] sm:$0xff]
    %v2446 = vld [vmem:[#allocation6 + $0x3e8] sm:$0xff]
    %v2447 = vld [vmem:[#allocation6 + $0x3f0] sm:$0xff]
    %v2448 = vld [vmem:[#allocation6 + $0x3f8] sm:$0xff]
    %v2449 = vld [vmem:[%s5] sm:$0xf]
    %v2451 = vlaneseq
    %v2452 = vshrl.u32 %v2451, 7
    %v2453 = vsub.s32 0, %v2452
    %v2454 = vrot.slane %v2449, %v2453
    %v2455 = vlaneseq
    %v2456 = vshrl.u32 %v2455, 7
    %v2457 = vsub.s32 1, %v2456
    %v2458 = vrot.slane %v2449, %v2457
    %v2459 = vlaneseq
    %v2460 = vshrl.u32 %v2459, 7
    %v2461 = vsub.s32 2, %v2460
    %v2462 = vrot.slane %v2449, %v2461
    %v2463 = vlaneseq
    %v2464 = vshrl.u32 %v2463, 7
    %v2465 = vsub.s32 3, %v2464
    %v2466 = vrot.slane %v2449, %v2465
    %v2599 = vunpack.c.l.b16 %v2321
    %v2600 = vunpack.c.h.b16 %v2321
    %v2601 = vunpack.c.l.b16 %v2322
    %v2602 = vunpack.c.h.b16 %v2322
    %v2603 = vunpack.c.l.b16 %v2323
    %v2604 = vunpack.c.h.b16 %v2323
    %v2605 = vunpack.c.l.b16 %v2324
    %v2606 = vunpack.c.h.b16 %v2324
    %v2607 = vunpack.c.l.b16 %v2325
    %v2608 = vunpack.c.h.b16 %v2325
    %v2609 = vunpack.c.l.b16 %v2326
    %v2610 = vunpack.c.h.b16 %v2326
    %v2611 = vunpack.c.l.b16 %v2327
    %v2612 = vunpack.c.h.b16 %v2327
    %v2613 = vunpack.c.l.b16 %v2328
    %v2614 = vunpack.c.h.b16 %v2328
    %v2615 = vunpack.c.l.b16 %v2329
    %v2616 = vunpack.c.h.b16 %v2329
    %v2617 = vunpack.c.l.b16 %v2330
    %v2618 = vunpack.c.h.b16 %v2330
    %v2619 = vunpack.c.l.b16 %v2331
    %v2620 = vunpack.c.h.b16 %v2331
    %v2621 = vunpack.c.l.b16 %v2332
    %v2622 = vunpack.c.h.b16 %v2332
    %v2623 = vunpack.c.l.b16 %v2333
    %v2624 = vunpack.c.h.b16 %v2333
    %v2625 = vunpack.c.l.b16 %v2334
    %v2626 = vunpack.c.h.b16 %v2334
    %v2627 = vunpack.c.l.b16 %v2335
    %v2628 = vunpack.c.h.b16 %v2335
    %v2629 = vunpack.c.l.b16 %v2336
    %v2630 = vunpack.c.h.b16 %v2336
    %v2631 = vunpack.c.l.b16 %v2337
    %v2632 = vunpack.c.h.b16 %v2337
    %v2633 = vunpack.c.l.b16 %v2338
    %v2634 = vunpack.c.h.b16 %v2338
    %v2635 = vunpack.c.l.b16 %v2339
    %v2636 = vunpack.c.h.b16 %v2339
    %v2637 = vunpack.c.l.b16 %v2340
    %v2638 = vunpack.c.h.b16 %v2340
    %v2639 = vunpack.c.l.b16 %v2341
    %v2640 = vunpack.c.h.b16 %v2341
    %v2641 = vunpack.c.l.b16 %v2342
    %v2642 = vunpack.c.h.b16 %v2342
    %v2643 = vunpack.c.l.b16 %v2343
    %v2644 = vunpack.c.h.b16 %v2343
    %v2645 = vunpack.c.l.b16 %v2344
    %v2646 = vunpack.c.h.b16 %v2344
    %v2647 = vunpack.c.l.b16 %v2345
    %v2648 = vunpack.c.h.b16 %v2345
    %v2649 = vunpack.c.l.b16 %v2346
    %v2650 = vunpack.c.h.b16 %v2346
    %v2651 = vunpack.c.l.b16 %v2347
    %v2652 = vunpack.c.h.b16 %v2347
    %v2653 = vunpack.c.l.b16 %v2348
    %v2654 = vunpack.c.h.b16 %v2348
    %v2655 = vunpack.c.l.b16 %v2349
    %v2656 = vunpack.c.h.b16 %v2349
    %v2657 = vunpack.c.l.b16 %v2350
    %v2658 = vunpack.c.h.b16 %v2350
    %v2659 = vunpack.c.l.b16 %v2351
    %v2660 = vunpack.c.h.b16 %v2351
    %v2661 = vunpack.c.l.b16 %v2352
    %v2662 = vunpack.c.h.b16 %v2352
    %v2663 = vunpack.c.l.b16 %v2353
    %v2664 = vunpack.c.h.b16 %v2353
    %v2665 = vunpack.c.l.b16 %v2354
    %v2666 = vunpack.c.h.b16 %v2354
    %v2667 = vunpack.c.l.b16 %v2355
    %v2668 = vunpack.c.h.b16 %v2355
    %v2669 = vunpack.c.l.b16 %v2356
    %v2670 = vunpack.c.h.b16 %v2356
    %v2671 = vunpack.c.l.b16 %v2357
    %v2672 = vunpack.c.h.b16 %v2357
    %v2673 = vunpack.c.l.b16 %v2358
    %v2674 = vunpack.c.h.b16 %v2358
    %v2675 = vunpack.c.l.b16 %v2359
    %v2676 = vunpack.c.h.b16 %v2359
    %v2677 = vunpack.c.l.b16 %v2360
    %v2678 = vunpack.c.h.b16 %v2360
    %v2679 = vunpack.c.l.b16 %v2361
    %v2680 = vunpack.c.h.b16 %v2361
    %v2681 = vunpack.c.l.b16 %v2362
    %v2682 = vunpack.c.h.b16 %v2362
    %v2683 = vunpack.c.l.b16 %v2363
    %v2684 = vunpack.c.h.b16 %v2363
    %v2685 = vunpack.c.l.b16 %v2364
    %v2686 = vunpack.c.h.b16 %v2364
    %v2687 = vunpack.c.l.b16 %v2365
    %v2688 = vunpack.c.h.b16 %v2365
    %v2689 = vunpack.c.l.b16 %v2366
    %v2690 = vunpack.c.h.b16 %v2366
    %v2691 = vunpack.c.l.b16 %v2367
    %v2692 = vunpack.c.h.b16 %v2367
    %v2693 = vunpack.c.l.b16 %v2368
    %v2694 = vunpack.c.h.b16 %v2368
    %v2695 = vunpack.c.l.b16 %v2369
    %v2696 = vunpack.c.h.b16 %v2369
    %v2697 = vunpack.c.l.b16 %v2370
    %v2698 = vunpack.c.h.b16 %v2370
    %v2699 = vunpack.c.l.b16 %v2371
    %v2700 = vunpack.c.h.b16 %v2371
    %v2701 = vunpack.c.l.b16 %v2372
    %v2702 = vunpack.c.h.b16 %v2372
    %v2703 = vunpack.c.l.b16 %v2373
    %v2704 = vunpack.c.h.b16 %v2373
    %v2705 = vunpack.c.l.b16 %v2374
    %v2706 = vunpack.c.h.b16 %v2374
    %v2707 = vunpack.c.l.b16 %v2375
    %v2708 = vunpack.c.h.b16 %v2375
    %v2709 = vunpack.c.l.b16 %v2376
    %v2710 = vunpack.c.h.b16 %v2376
    %v2711 = vunpack.c.l.b16 %v2377
    %v2712 = vunpack.c.h.b16 %v2377
    %v2713 = vunpack.c.l.b16 %v2378
    %v2714 = vunpack.c.h.b16 %v2378
    %v2715 = vunpack.c.l.b16 %v2379
    %v2716 = vunpack.c.h.b16 %v2379
    %v2717 = vunpack.c.l.b16 %v2380
    %v2718 = vunpack.c.h.b16 %v2380
    %v2719 = vunpack.c.l.b16 %v2381
    %v2720 = vunpack.c.h.b16 %v2381
    %v2721 = vunpack.c.l.b16 %v2382
    %v2722 = vunpack.c.h.b16 %v2382
    %v2723 = vunpack.c.l.b16 %v2383
    %v2724 = vunpack.c.h.b16 %v2383
    %v2725 = vunpack.c.l.b16 %v2384
    %v2726 = vunpack.c.h.b16 %v2384
    %v2727 = vunpack.c.l.b16 %v2385
    %v2728 = vunpack.c.h.b16 %v2385
    %v2729 = vunpack.c.l.b16 %v2386
    %v2730 = vunpack.c.h.b16 %v2386
    %v2731 = vunpack.c.l.b16 %v2387
    %v2732 = vunpack.c.h.b16 %v2387
    %v2733 = vunpack.c.l.b16 %v2388
    %v2734 = vunpack.c.h.b16 %v2388
    %v2735 = vunpack.c.l.b16 %v2389
    %v2736 = vunpack.c.h.b16 %v2389
    %v2737 = vunpack.c.l.b16 %v2390
    %v2738 = vunpack.c.h.b16 %v2390
    %v2739 = vunpack.c.l.b16 %v2391
    %v2740 = vunpack.c.h.b16 %v2391
    %v2741 = vunpack.c.l.b16 %v2392
    %v2742 = vunpack.c.h.b16 %v2392
    %v2743 = vunpack.c.l.b16 %v2393
    %v2744 = vunpack.c.h.b16 %v2393
    %v2745 = vunpack.c.l.b16 %v2394
    %v2746 = vunpack.c.h.b16 %v2394
    %v2747 = vunpack.c.l.b16 %v2395
    %v2748 = vunpack.c.h.b16 %v2395
    %v2749 = vunpack.c.l.b16 %v2396
    %v2750 = vunpack.c.h.b16 %v2396
    %v2751 = vunpack.c.l.b16 %v2397
    %v2752 = vunpack.c.h.b16 %v2397
    %v2753 = vunpack.c.l.b16 %v2398
    %v2754 = vunpack.c.h.b16 %v2398
    %v2755 = vunpack.c.l.b16 %v2399
    %v2756 = vunpack.c.h.b16 %v2399
    %v2757 = vunpack.c.l.b16 %v2400
    %v2758 = vunpack.c.h.b16 %v2400
    %v2759 = vunpack.c.l.b16 %v2401
    %v2760 = vunpack.c.h.b16 %v2401
    %v2761 = vunpack.c.l.b16 %v2402
    %v2762 = vunpack.c.h.b16 %v2402
    %v2763 = vunpack.c.l.b16 %v2403
    %v2764 = vunpack.c.h.b16 %v2403
    %v2765 = vunpack.c.l.b16 %v2404
    %v2766 = vunpack.c.h.b16 %v2404
    %v2767 = vunpack.c.l.b16 %v2405
    %v2768 = vunpack.c.h.b16 %v2405
    %v2769 = vunpack.c.l.b16 %v2406
    %v2770 = vunpack.c.h.b16 %v2406
    %v2771 = vunpack.c.l.b16 %v2407
    %v2772 = vunpack.c.h.b16 %v2407
    %v2773 = vunpack.c.l.b16 %v2408
    %v2774 = vunpack.c.h.b16 %v2408
    %v2775 = vunpack.c.l.b16 %v2409
    %v2776 = vunpack.c.h.b16 %v2409
    %v2777 = vunpack.c.l.b16 %v2410
    %v2778 = vunpack.c.h.b16 %v2410
    %v2779 = vunpack.c.l.b16 %v2411
    %v2780 = vunpack.c.h.b16 %v2411
    %v2781 = vunpack.c.l.b16 %v2412
    %v2782 = vunpack.c.h.b16 %v2412
    %v2783 = vunpack.c.l.b16 %v2413
    %v2784 = vunpack.c.h.b16 %v2413
    %v2785 = vunpack.c.l.b16 %v2414
    %v2786 = vunpack.c.h.b16 %v2414
    %v2787 = vunpack.c.l.b16 %v2415
    %v2788 = vunpack.c.h.b16 %v2415
    %v2789 = vunpack.c.l.b16 %v2416
    %v2790 = vunpack.c.h.b16 %v2416
    %v2791 = vunpack.c.l.b16 %v2417
    %v2792 = vunpack.c.h.b16 %v2417
    %v2793 = vunpack.c.l.b16 %v2418
    %v2794 = vunpack.c.h.b16 %v2418
    %v2795 = vunpack.c.l.b16 %v2419
    %v2796 = vunpack.c.h.b16 %v2419
    %v2797 = vunpack.c.l.b16 %v2420
    %v2798 = vunpack.c.h.b16 %v2420
    %v2799 = vunpack.c.l.b16 %v2421
    %v2800 = vunpack.c.h.b16 %v2421
    %v2801 = vunpack.c.l.b16 %v2422
    %v2802 = vunpack.c.h.b16 %v2422
    %v2803 = vunpack.c.l.b16 %v2423
    %v2804 = vunpack.c.h.b16 %v2423
    %v2805 = vunpack.c.l.b16 %v2424
    %v2806 = vunpack.c.h.b16 %v2424
    %v2807 = vunpack.c.l.b16 %v2425
    %v2808 = vunpack.c.h.b16 %v2425
    %v2809 = vunpack.c.l.b16 %v2426
    %v2810 = vunpack.c.h.b16 %v2426
    %v2811 = vunpack.c.l.b16 %v2427
    %v2812 = vunpack.c.h.b16 %v2427
    %v2813 = vunpack.c.l.b16 %v2428
    %v2814 = vunpack.c.h.b16 %v2428
    %v2815 = vunpack.c.l.b16 %v2429
    %v2816 = vunpack.c.h.b16 %v2429
    %v2817 = vunpack.c.l.b16 %v2430
    %v2818 = vunpack.c.h.b16 %v2430
    %v2819 = vunpack.c.l.b16 %v2431
    %v2820 = vunpack.c.h.b16 %v2431
    %v2821 = vunpack.c.l.b16 %v2432
    %v2822 = vunpack.c.h.b16 %v2432
    %v2823 = vunpack.c.l.b16 %v2433
    %v2824 = vunpack.c.h.b16 %v2433
    %v2825 = vunpack.c.l.b16 %v2434
    %v2826 = vunpack.c.h.b16 %v2434
    %v2827 = vunpack.c.l.b16 %v2435
    %v2828 = vunpack.c.h.b16 %v2435
    %v2829 = vunpack.c.l.b16 %v2436
    %v2830 = vunpack.c.h.b16 %v2436
    %v2831 = vunpack.c.l.b16 %v2437
    %v2832 = vunpack.c.h.b16 %v2437
    %v2833 = vunpack.c.l.b16 %v2438
    %v2834 = vunpack.c.h.b16 %v2438
    %v2835 = vunpack.c.l.b16 %v2439
    %v2836 = vunpack.c.h.b16 %v2439
    %v2837 = vunpack.c.l.b16 %v2440
    %v2838 = vunpack.c.h.b16 %v2440
    %v2839 = vunpack.c.l.b16 %v2441
    %v2840 = vunpack.c.h.b16 %v2441
    %v2841 = vunpack.c.l.b16 %v2442
    %v2842 = vunpack.c.h.b16 %v2442
    %v2843 = vunpack.c.l.b16 %v2443
    %v2844 = vunpack.c.h.b16 %v2443
    %v2845 = vunpack.c.l.b16 %v2444
    %v2846 = vunpack.c.h.b16 %v2444
    %v2847 = vunpack.c.l.b16 %v2445
    %v2848 = vunpack.c.h.b16 %v2445
    %v2849 = vunpack.c.l.b16 %v2446
    %v2850 = vunpack.c.h.b16 %v2446
    %v2851 = vunpack.c.l.b16 %v2447
    %v2852 = vunpack.c.h.b16 %v2447
    %v2853 = vunpack.c.l.b16 %v2448
    %v2854 = vunpack.c.h.b16 %v2448
    %v2855 = vpack.c.b16 %v2603, %v2599
    %v2856 = vpack.c.b16 %v2604, %v2600
    %v2857 = vpack.c.b16 %v2605, %v2601
    %v2858 = vpack.c.b16 %v2606, %v2602
    %v2859 = vpack.c.b16 %v2611, %v2607
    %v2860 = vpack.c.b16 %v2612, %v2608
    %v2861 = vpack.c.b16 %v2613, %v2609
    %v2862 = vpack.c.b16 %v2614, %v2610
    %v2863 = vpack.c.b16 %v2619, %v2615
    %v2864 = vpack.c.b16 %v2620, %v2616
    %v2865 = vpack.c.b16 %v2621, %v2617
    %v2866 = vpack.c.b16 %v2622, %v2618
    %v2867 = vpack.c.b16 %v2627, %v2623
    %v2868 = vpack.c.b16 %v2628, %v2624
    %v2869 = vpack.c.b16 %v2629, %v2625
    %v2870 = vpack.c.b16 %v2630, %v2626
    %v2871 = vpack.c.b16 %v2635, %v2631
    %v2872 = vpack.c.b16 %v2636, %v2632
    %v2873 = vpack.c.b16 %v2637, %v2633
    %v2874 = vpack.c.b16 %v2638, %v2634
    %v2875 = vpack.c.b16 %v2643, %v2639
    %v2876 = vpack.c.b16 %v2644, %v2640
    %v2877 = vpack.c.b16 %v2645, %v2641
    %v2878 = vpack.c.b16 %v2646, %v2642
    %v2879 = vpack.c.b16 %v2651, %v2647
    %v2880 = vpack.c.b16 %v2652, %v2648
    %v2881 = vpack.c.b16 %v2653, %v2649
    %v2882 = vpack.c.b16 %v2654, %v2650
    %v2883 = vpack.c.b16 %v2659, %v2655
    %v2884 = vpack.c.b16 %v2660, %v2656
    %v2885 = vpack.c.b16 %v2661, %v2657
    %v2886 = vpack.c.b16 %v2662, %v2658
    %v2887 = vpack.c.b16 %v2667, %v2663
    %v2888 = vpack.c.b16 %v2668, %v2664
    %v2889 = vpack.c.b16 %v2669, %v2665
    %v2890 = vpack.c.b16 %v2670, %v2666
    %v2891 = vpack.c.b16 %v2675, %v2671
    %v2892 = vpack.c.b16 %v2676, %v2672
    %v2893 = vpack.c.b16 %v2677, %v2673
    %v2894 = vpack.c.b16 %v2678, %v2674
    %v2895 = vpack.c.b16 %v2683, %v2679
    %v2896 = vpack.c.b16 %v2684, %v2680
    %v2897 = vpack.c.b16 %v2685, %v2681
    %v2898 = vpack.c.b16 %v2686, %v2682
    %v2899 = vpack.c.b16 %v2691, %v2687
    %v2900 = vpack.c.b16 %v2692, %v2688
    %v2901 = vpack.c.b16 %v2693, %v2689
    %v2902 = vpack.c.b16 %v2694, %v2690
    %v2903 = vpack.c.b16 %v2699, %v2695
    %v2904 = vpack.c.b16 %v2700, %v2696
    %v2905 = vpack.c.b16 %v2701, %v2697
    %v2906 = vpack.c.b16 %v2702, %v2698
    %v2907 = vpack.c.b16 %v2707, %v2703
    %v2908 = vpack.c.b16 %v2708, %v2704
    %v2909 = vpack.c.b16 %v2709, %v2705
    %v2910 = vpack.c.b16 %v2710, %v2706
    %v2911 = vpack.c.b16 %v2715, %v2711
    %v2912 = vpack.c.b16 %v2716, %v2712
    %v2913 = vpack.c.b16 %v2717, %v2713
    %v2914 = vpack.c.b16 %v2718, %v2714
    %v2915 = vpack.c.b16 %v2723, %v2719
    %v2916 = vpack.c.b16 %v2724, %v2720
    %v2917 = vpack.c.b16 %v2725, %v2721
    %v2918 = vpack.c.b16 %v2726, %v2722
    %v2919 = vpack.c.b16 %v2731, %v2727
    %v2920 = vpack.c.b16 %v2732, %v2728
    %v2921 = vpack.c.b16 %v2733, %v2729
    %v2922 = vpack.c.b16 %v2734, %v2730
    %v2923 = vpack.c.b16 %v2739, %v2735
    %v2924 = vpack.c.b16 %v2740, %v2736
    %v2925 = vpack.c.b16 %v2741, %v2737
    %v2926 = vpack.c.b16 %v2742, %v2738
    %v2927 = vpack.c.b16 %v2747, %v2743
    %v2928 = vpack.c.b16 %v2748, %v2744
    %v2929 = vpack.c.b16 %v2749, %v2745
    %v2930 = vpack.c.b16 %v2750, %v2746
    %v2931 = vpack.c.b16 %v2755, %v2751
    %v2932 = vpack.c.b16 %v2756, %v2752
    %v2933 = vpack.c.b16 %v2757, %v2753
    %v2934 = vpack.c.b16 %v2758, %v2754
    %v2935 = vpack.c.b16 %v2763, %v2759
    %v2936 = vpack.c.b16 %v2764, %v2760
    %v2937 = vpack.c.b16 %v2765, %v2761
    %v2938 = vpack.c.b16 %v2766, %v2762
    %v2939 = vpack.c.b16 %v2771, %v2767
    %v2940 = vpack.c.b16 %v2772, %v2768
    %v2941 = vpack.c.b16 %v2773, %v2769
    %v2942 = vpack.c.b16 %v2774, %v2770
    %v2943 = vpack.c.b16 %v2779, %v2775
    %v2944 = vpack.c.b16 %v2780, %v2776
    %v2945 = vpack.c.b16 %v2781, %v2777
    %v2946 = vpack.c.b16 %v2782, %v2778
    %v2947 = vpack.c.b16 %v2787, %v2783
    %v2948 = vpack.c.b16 %v2788, %v2784
    %v2949 = vpack.c.b16 %v2789, %v2785
    %v2950 = vpack.c.b16 %v2790, %v2786
    %v2951 = vpack.c.b16 %v2795, %v2791
    %v2952 = vpack.c.b16 %v2796, %v2792
    %v2953 = vpack.c.b16 %v2797, %v2793
    %v2954 = vpack.c.b16 %v2798, %v2794
    %v2955 = vpack.c.b16 %v2803, %v2799
    %v2956 = vpack.c.b16 %v2804, %v2800
    %v2957 = vpack.c.b16 %v2805, %v2801
    %v2958 = vpack.c.b16 %v2806, %v2802
    %v2959 = vpack.c.b16 %v2811, %v2807
    %v2960 = vpack.c.b16 %v2812, %v2808
    %v2961 = vpack.c.b16 %v2813, %v2809
    %v2962 = vpack.c.b16 %v2814, %v2810
    %v2963 = vpack.c.b16 %v2819, %v2815
    %v2964 = vpack.c.b16 %v2820, %v2816
    %v2965 = vpack.c.b16 %v2821, %v2817
    %v2966 = vpack.c.b16 %v2822, %v2818
    %v2967 = vpack.c.b16 %v2827, %v2823
    %v2968 = vpack.c.b16 %v2828, %v2824
    %v2969 = vpack.c.b16 %v2829, %v2825
    %v2970 = vpack.c.b16 %v2830, %v2826
    %v2971 = vpack.c.b16 %v2835, %v2831
    %v2972 = vpack.c.b16 %v2836, %v2832
    %v2973 = vpack.c.b16 %v2837, %v2833
    %v2974 = vpack.c.b16 %v2838, %v2834
    %v2975 = vpack.c.b16 %v2843, %v2839
    %v2976 = vpack.c.b16 %v2844, %v2840
    %v2977 = vpack.c.b16 %v2845, %v2841
    %v2978 = vpack.c.b16 %v2846, %v2842
    %v2979 = vpack.c.b16 %v2851, %v2847
    %v2980 = vpack.c.b16 %v2852, %v2848
    %v2981 = vpack.c.b16 %v2853, %v2849
    %v2982 = vpack.c.b16 %v2854, %v2850
    %3111 = vmatprep.subr.bf16.mxu0 %v2856
    %3112 = vmatpush1.bf16.msra.mxu0 %v2855
    %3113 = vmatprep.subr.bf16.mxu0 %v2860
    %3114 = vmatpush1.bf16.msra.mxu0 %v2859
    %3115 = vmatprep.subr.bf16.mxu0 %v2864
    %3116 = vmatpush1.bf16.msra.mxu0 %v2863
    %3117 = vmatprep.subr.bf16.mxu0 %v2868
    %3118 = vmatpush1.bf16.msra.mxu0 %v2867
    %3119 = vmatprep.subr.bf16.mxu0 %v2872
    %3120 = vmatpush1.bf16.msra.mxu0 %v2871
    %3121 = vmatprep.subr.bf16.mxu0 %v2876
    %3122 = vmatpush1.bf16.msra.mxu0 %v2875
    %3123 = vmatprep.subr.bf16.mxu0 %v2880
    %3124 = vmatpush1.bf16.msra.mxu0 %v2879
    %3125 = vmatprep.subr.bf16.mxu0 %v2884
    %3126 = vmatpush1.bf16.msra.mxu0 %v2883
    %3127 = vmatprep.subr.bf16.mxu0 %v2888
    %3128 = vmatpush1.bf16.msra.mxu0 %v2887
    %3129 = vmatprep.subr.bf16.mxu0 %v2892
    %3130 = vmatpush1.bf16.msra.mxu0 %v2891
    %3131 = vmatprep.subr.bf16.mxu0 %v2896
    %3132 = vmatpush1.bf16.msra.mxu0 %v2895
    %3133 = vmatprep.subr.bf16.mxu0 %v2900
    %3134 = vmatpush1.bf16.msra.mxu0 %v2899
    %3135 = vmatprep.subr.bf16.mxu0 %v2904
    %3136 = vmatpush1.bf16.msra.mxu0 %v2903
    %3137 = vmatprep.subr.bf16.mxu0 %v2908
    %3138 = vmatpush1.bf16.msra.mxu0 %v2907
    %3139 = vmatprep.subr.bf16.mxu0 %v2912
    %3140 = vmatpush1.bf16.msra.mxu0 %v2911
    %3141 = vmatprep.subr.bf16.mxu0 %v2916
    %3142 = vmatpush1.bf16.msra.mxu0 %v2915
    %3143 = vmatprep.mubr.bf16.mxu0 %v2318
    %3144 = vmatmul.mubr.bf16.gmra.mrb[0].mxu0 %v2317
    %v3145 = vpop.f32.mrb[0].mxu0
    %v3146 = vadd.f32 %v2454, %v3145
    %v3147 = vpop.f32.mrb[0].mxu0
    %v3148 = vadd.f32 %v2458, %v3147
    %v3149 = vpop.f32.mrb[0].mxu0
    %v3150 = vpop.f32.mrb[0].mxu0
    %3151 = vdwg.mxu0
    %3152 = vmatprep.subr.bf16.mxu0 %v2920
    %3153 = vmatpush1.bf16.msra.mxu0 %v2919
    %3154 = vmatprep.subr.bf16.mxu0 %v2924
    %3155 = vmatpush1.bf16.msra.mxu0 %v2923
    %3156 = vmatprep.subr.bf16.mxu0 %v2928
    %3157 = vmatpush1.bf16.msra.mxu0 %v2927
    %3158 = vmatprep.subr.bf16.mxu0 %v2932
    %3159 = vmatpush1.bf16.msra.mxu0 %v2931
    %3160 = vmatprep.subr.bf16.mxu0 %v2936
    %3161 = vmatpush1.bf16.msra.mxu0 %v2935
    %3162 = vmatprep.subr.bf16.mxu0 %v2940
    %3163 = vmatpush1.bf16.msra.mxu0 %v2939
    %3164 = vmatprep.subr.bf16.mxu0 %v2944
    %3165 = vmatpush1.bf16.msra.mxu0 %v2943
    %3166 = vmatprep.subr.bf16.mxu0 %v2948
    %3167 = vmatpush1.bf16.msra.mxu0 %v2947
    %3168 = vmatprep.subr.bf16.mxu0 %v2952
    %3169 = vmatpush1.bf16.msra.mxu0 %v2951
    %3170 = vmatprep.subr.bf16.mxu0 %v2956
    %3171 = vmatpush1.bf16.msra.mxu0 %v2955
    %3172 = vmatprep.subr.bf16.mxu0 %v2960
    %3173 = vmatpush1.bf16.msra.mxu0 %v2959
    %3174 = vmatprep.subr.bf16.mxu0 %v2964
    %3175 = vmatpush1.bf16.msra.mxu0 %v2963
    %3176 = vmatprep.subr.bf16.mxu0 %v2968
    %3177 = vmatpush1.bf16.msra.mxu0 %v2967
    %3178 = vmatprep.subr.bf16.mxu0 %v2972
    %3179 = vmatpush1.bf16.msra.mxu0 %v2971
    %3180 = vmatprep.subr.bf16.mxu0 %v2976
    %3181 = vmatpush1.bf16.msra.mxu0 %v2975
    %3182 = vmatprep.subr.bf16.mxu0 %v2980
    %3183 = vmatpush1.bf16.msra.mxu0 %v2979
    %3184 = vmatprep.mubr.bf16.mxu0 %v2320
    %3185 = vmatmul.mubr.bf16.gmra.mrb[0].mxu0 %v2319
    %v3186 = vpop.f32.mrb[0].mxu0
    %v3187 = vadd.f32 %v3146, %v3186
    %v3188 = vpop.f32.mrb[0].mxu0
    %v3189 = vadd.f32 %v3148, %v3188
    %v3190 = vpop.f32.mrb[0].mxu0
    %v3191 = vpop.f32.mrb[0].mxu0
    %3192 = vdwg.mxu0
    %3193 = vmatprep.subr.bf16.mxu0 %v2858
    %3194 = vmatpush1.bf16.msra.mxu0 %v2857
    %3195 = vmatprep.subr.bf16.mxu0 %v2862
    %3196 = vmatpush1.bf16.msra.mxu0 %v2861
    %3197 = vmatprep.subr.bf16.mxu0 %v2866
    %3198 = vmatpush1.bf16.msra.mxu0 %v2865
    %3199 = vmatprep.subr.bf16.mxu0 %v2870
    %3200 = vmatpush1.bf16.msra.mxu0 %v2869
    %3201 = vmatprep.subr.bf16.mxu0 %v2874
    %3202 = vmatpush1.bf16.msra.mxu0 %v2873
    %3203 = vmatprep.subr.bf16.mxu0 %v2878
    %3204 = vmatpush1.bf16.msra.mxu0 %v2877
    %3205 = vmatprep.subr.bf16.mxu0 %v2882
    %3206 = vmatpush1.bf16.msra.mxu0 %v2881
    %3207 = vmatprep.subr.bf16.mxu0 %v2886
    %3208 = vmatpush1.bf16.msra.mxu0 %v2885
    %3209 = vmatprep.subr.bf16.mxu0 %v2890
    %3210 = vmatpush1.bf16.msra.mxu0 %v2889
    %3211 = vmatprep.subr.bf16.mxu0 %v2894
    %3212 = vmatpush1.bf16.msra.mxu0 %v2893
    %3213 = vmatprep.subr.bf16.mxu0 %v2898
    %3214 = vmatpush1.bf16.msra.mxu0 %v2897
    %3215 = vmatprep.subr.bf16.mxu0 %v2902
    %3216 = vmatpush1.bf16.msra.mxu0 %v2901
    %3217 = vmatprep.subr.bf16.mxu0 %v2906
    %3218 = vmatpush1.bf16.msra.mxu0 %v2905
    %3219 = vmatprep.subr.bf16.mxu0 %v2910
    %3220 = vmatpush1.bf16.msra.mxu0 %v2909
    %3221 = vmatprep.subr.bf16.mxu0 %v2914
    %3222 = vmatpush1.bf16.msra.mxu0 %v2913
    %3223 = vmatprep.subr.bf16.mxu0 %v2918
    %3224 = vmatpush1.bf16.msra.mxu0 %v2917
    %3225 = vmatprep.mubr.bf16.mxu0 %v2318
    %3226 = vmatmul.mubr.bf16.gmra.mrb[0].mxu0 %v2317
    %v3227 = vpop.f32.mrb[0].mxu0
    %v3228 = vadd.f32 %v2462, %v3227
    %v3229 = vpop.f32.mrb[0].mxu0
    %v3230 = vadd.f32 %v2466, %v3229
    %v3231 = vpop.f32.mrb[0].mxu0
    %v3232 = vpop.f32.mrb[0].mxu0
    %3233 = vdwg.mxu0
    %3234 = vmatprep.subr.bf16.mxu0 %v2922
    %3235 = vmatpush1.bf16.msra.mxu0 %v2921
    %3236 = vmatprep.subr.bf16.mxu0 %v2926
    %3237 = vmatpush1.bf16.msra.mxu0 %v2925
    %3238 = vmatprep.subr.bf16.mxu0 %v2930
    %3239 = vmatpush1.bf16.msra.mxu0 %v2929
    %3240 = vmatprep.subr.bf16.mxu0 %v2934
    %3241 = vmatpush1.bf16.msra.mxu0 %v2933
    %3242 = vmatprep.subr.bf16.mxu0 %v2938
    %3243 = vmatpush1.bf16.msra.mxu0 %v2937
    %3244 = vmatprep.subr.bf16.mxu0 %v2942
    %3245 = vmatpush1.bf16.msra.mxu0 %v2941
    %3246 = vmatprep.subr.bf16.mxu0 %v2946
    %3247 = vmatpush1.bf16.msra.mxu0 %v2945
    %3248 = vmatprep.subr.bf16.mxu0 %v2950
    %3249 = vmatpush1.bf16.msra.mxu0 %v2949
    %3250 = vmatprep.subr.bf16.mxu0 %v2954
    %3251 = vmatpush1.bf16.msra.mxu0 %v2953
    %3252 = vmatprep.subr.bf16.mxu0 %v2958
    %3253 = vmatpush1.bf16.msra.mxu0 %v2957
    %3254 = vmatprep.subr.bf16.mxu0 %v2962
    %3255 = vmatpush1.bf16.msra.mxu0 %v2961
    %3256 = vmatprep.subr.bf16.mxu0 %v2966
    %3257 = vmatpush1.bf16.msra.mxu0 %v2965
    %3258 = vmatprep.subr.bf16.mxu0 %v2970
    %3259 = vmatpush1.bf16.msra.mxu0 %v2969
    %3260 = vmatprep.subr.bf16.mxu0 %v2974
    %3261 = vmatpush1.bf16.msra.mxu0 %v2973
    %3262 = vmatprep.subr.bf16.mxu0 %v2978
    %3263 = vmatpush1.bf16.msra.mxu0 %v2977
    %3264 = vmatprep.subr.bf16.mxu0 %v2982
    %3265 = vmatpush1.bf16.msra.mxu0 %v2981
    %3266 = vmatprep.mubr.bf16.mxu0 %v2320
    %3267 = vmatmul.mubr.bf16.gmra.mrb[0].mxu0 %v2319
    %v3268 = vpop.f32.mrb[0].mxu0
    %v3269 = vadd.f32 %v3228, %v3268
    %v3270 = vpop.f32.mrb[0].mxu0
    %v3271 = vadd.f32 %v3230, %v3270
    %v3272 = vpop.f32.mrb[0].mxu0
    %v3273 = vpop.f32.mrb[0].mxu0
    %3274 = vdwg.mxu0
    %vm3275 = vcmp.gt.f32.partialorder %v3187, 0.0
    %vm3276 = vcmp.gt.f32.partialorder %v3189, 0.0
    %vm3277 = vcmp.gt.f32.partialorder %v3269, 0.0
    %vm3278 = vcmp.gt.f32.partialorder %v3271, 0.0
    %v3279 = vmul.f32 %v3187, 0.2
    %v3280 = vmul.f32 %v3189, 0.2
    %v3281 = vmul.f32 %v3269, 0.2
    %v3282 = vmul.f32 %v3271, 0.2
    %v3283 = vsel %vm3275, %v3187, %v3279
    %v3284 = vsel %vm3276, %v3189, %v3280
    %v3285 = vsel %vm3277, %v3269, %v3281
    %v3286 = vsel %vm3278, %v3271, %v3282
    %v3287 = vpack.c.bf16 %v3283, %v3283
    %v3288 = vpack.c.bf16 %v3284, %v3284
    %v3289 = vpack.c.bf16 %v3285, %v3285
    %v3290 = vpack.c.bf16 %v3286, %v3286
    %v3291 = vld [vmem:[#allocation7] sm:$0xff]
    %v3292 = vld [vmem:[#allocation7 + $0x8] sm:$0xff]
    %v3293 = vld [vmem:[#allocation7 + $0x10] sm:$0xff]
    %v3294 = vld [vmem:[#allocation7 + $0x18] sm:$0xff]
    %v3295 = vld [vmem:[#allocation7 + $0x20] sm:$0xff]
    %v3296 = vld [vmem:[#allocation7 + $0x28] sm:$0xff]
    %v3297 = vld [vmem:[#allocation7 + $0x30] sm:$0xff]
    %v3298 = vld [vmem:[#allocation7 + $0x38] sm:$0xff]
    %v3299 = vld [vmem:[#allocation7 + $0x40] sm:$0xff]
    %v3300 = vld [vmem:[#allocation7 + $0x48] sm:$0xff]
    %v3301 = vld [vmem:[#allocation7 + $0x50] sm:$0xff]
    %v3302 = vld [vmem:[#allocation7 + $0x58] sm:$0xff]
    %v3303 = vld [vmem:[#allocation7 + $0x60] sm:$0xff]
    %v3304 = vld [vmem:[#allocation7 + $0x68] sm:$0xff]
    %v3305 = vld [vmem:[#allocation7 + $0x70] sm:$0xff]
    %v3306 = vld [vmem:[#allocation7 + $0x78] sm:$0xff]
    %v3307 = vld [vmem:[#allocation7 + $0x80] sm:$0xff]
    %v3308 = vld [vmem:[#allocation7 + $0x88] sm:$0xff]
    %v3309 = vld [vmem:[#allocation7 + $0x90] sm:$0xff]
    %v3310 = vld [vmem:[#allocation7 + $0x98] sm:$0xff]
    %v3311 = vld [vmem:[#allocation7 + $0xa0] sm:$0xff]
    %v3312 = vld [vmem:[#allocation7 + $0xa8] sm:$0xff]
    %v3313 = vld [vmem:[#allocation7 + $0xb0] sm:$0xff]
    %v3314 = vld [vmem:[#allocation7 + $0xb8] sm:$0xff]
    %v3315 = vld [vmem:[#allocation7 + $0xc0] sm:$0xff]
    %v3316 = vld [vmem:[#allocation7 + $0xc8] sm:$0xff]
    %v3317 = vld [vmem:[#allocation7 + $0xd0] sm:$0xff]
    %v3318 = vld [vmem:[#allocation7 + $0xd8] sm:$0xff]
    %v3319 = vld [vmem:[#allocation7 + $0xe0] sm:$0xff]
    %v3320 = vld [vmem:[#allocation7 + $0xe8] sm:$0xff]
    %v3321 = vld [vmem:[#allocation7 + $0xf0] sm:$0xff]
    %v3322 = vld [vmem:[#allocation7 + $0xf8] sm:$0xff]
    %v3323 = vld [vmem:[#allocation7 + $0x100] sm:$0xff]
    %v3324 = vld [vmem:[#allocation7 + $0x108] sm:$0xff]
    %v3325 = vld [vmem:[#allocation7 + $0x110] sm:$0xff]
    %v3326 = vld [vmem:[#allocation7 + $0x118] sm:$0xff]
    %v3327 = vld [vmem:[#allocation7 + $0x120] sm:$0xff]
    %v3328 = vld [vmem:[#allocation7 + $0x128] sm:$0xff]
    %v3329 = vld [vmem:[#allocation7 + $0x130] sm:$0xff]
    %v3330 = vld [vmem:[#allocation7 + $0x138] sm:$0xff]
    %v3331 = vld [vmem:[#allocation7 + $0x140] sm:$0xff]
    %v3332 = vld [vmem:[#allocation7 + $0x148] sm:$0xff]
    %v3333 = vld [vmem:[#allocation7 + $0x150] sm:$0xff]
    %v3334 = vld [vmem:[#allocation7 + $0x158] sm:$0xff]
    %v3335 = vld [vmem:[#allocation7 + $0x160] sm:$0xff]
    %v3336 = vld [vmem:[#allocation7 + $0x168] sm:$0xff]
    %v3337 = vld [vmem:[#allocation7 + $0x170] sm:$0xff]
    %v3338 = vld [vmem:[#allocation7 + $0x178] sm:$0xff]
    %v3339 = vld [vmem:[#allocation7 + $0x180] sm:$0xff]
    %v3340 = vld [vmem:[#allocation7 + $0x188] sm:$0xff]
    %v3341 = vld [vmem:[#allocation7 + $0x190] sm:$0xff]
    %v3342 = vld [vmem:[#allocation7 + $0x198] sm:$0xff]
    %v3343 = vld [vmem:[#allocation7 + $0x1a0] sm:$0xff]
    %v3344 = vld [vmem:[#allocation7 + $0x1a8] sm:$0xff]
    %v3345 = vld [vmem:[#allocation7 + $0x1b0] sm:$0xff]
    %v3346 = vld [vmem:[#allocation7 + $0x1b8] sm:$0xff]
    %v3347 = vld [vmem:[#allocation7 + $0x1c0] sm:$0xff]
    %v3348 = vld [vmem:[#allocation7 + $0x1c8] sm:$0xff]
    %v3349 = vld [vmem:[#allocation7 + $0x1d0] sm:$0xff]
    %v3350 = vld [vmem:[#allocation7 + $0x1d8] sm:$0xff]
    %v3351 = vld [vmem:[#allocation7 + $0x1e0] sm:$0xff]
    %v3352 = vld [vmem:[#allocation7 + $0x1e8] sm:$0xff]
    %v3353 = vld [vmem:[#allocation7 + $0x1f0] sm:$0xff]
    %v3354 = vld [vmem:[#allocation7 + $0x1f8] sm:$0xff]
    %v3355 = vld [vmem:[#allocation7 + $0x200] sm:$0xff]
    %v3356 = vld [vmem:[#allocation7 + $0x208] sm:$0xff]
    %v3357 = vld [vmem:[#allocation7 + $0x210] sm:$0xff]
    %v3358 = vld [vmem:[#allocation7 + $0x218] sm:$0xff]
    %v3359 = vld [vmem:[#allocation7 + $0x220] sm:$0xff]
    %v3360 = vld [vmem:[#allocation7 + $0x228] sm:$0xff]
    %v3361 = vld [vmem:[#allocation7 + $0x230] sm:$0xff]
    %v3362 = vld [vmem:[#allocation7 + $0x238] sm:$0xff]
    %v3363 = vld [vmem:[#allocation7 + $0x240] sm:$0xff]
    %v3364 = vld [vmem:[#allocation7 + $0x248] sm:$0xff]
    %v3365 = vld [vmem:[#allocation7 + $0x250] sm:$0xff]
    %v3366 = vld [vmem:[#allocation7 + $0x258] sm:$0xff]
    %v3367 = vld [vmem:[#allocation7 + $0x260] sm:$0xff]
    %v3368 = vld [vmem:[#allocation7 + $0x268] sm:$0xff]
    %v3369 = vld [vmem:[#allocation7 + $0x270] sm:$0xff]
    %v3370 = vld [vmem:[#allocation7 + $0x278] sm:$0xff]
    %v3371 = vld [vmem:[#allocation7 + $0x280] sm:$0xff]
    %v3372 = vld [vmem:[#allocation7 + $0x288] sm:$0xff]
    %v3373 = vld [vmem:[#allocation7 + $0x290] sm:$0xff]
    %v3374 = vld [vmem:[#allocation7 + $0x298] sm:$0xff]
    %v3375 = vld [vmem:[#allocation7 + $0x2a0] sm:$0xff]
    %v3376 = vld [vmem:[#allocation7 + $0x2a8] sm:$0xff]
    %v3377 = vld [vmem:[#allocation7 + $0x2b0] sm:$0xff]
    %v3378 = vld [vmem:[#allocation7 + $0x2b8] sm:$0xff]
    %v3379 = vld [vmem:[#allocation7 + $0x2c0] sm:$0xff]
    %v3380 = vld [vmem:[#allocation7 + $0x2c8] sm:$0xff]
    %v3381 = vld [vmem:[#allocation7 + $0x2d0] sm:$0xff]
    %v3382 = vld [vmem:[#allocation7 + $0x2d8] sm:$0xff]
    %v3383 = vld [vmem:[#allocation7 + $0x2e0] sm:$0xff]
    %v3384 = vld [vmem:[#allocation7 + $0x2e8] sm:$0xff]
    %v3385 = vld [vmem:[#allocation7 + $0x2f0] sm:$0xff]
    %v3386 = vld [vmem:[#allocation7 + $0x2f8] sm:$0xff]
    %v3387 = vld [vmem:[#allocation7 + $0x300] sm:$0xff]
    %v3388 = vld [vmem:[#allocation7 + $0x308] sm:$0xff]
    %v3389 = vld [vmem:[#allocation7 + $0x310] sm:$0xff]
    %v3390 = vld [vmem:[#allocation7 + $0x318] sm:$0xff]
    %v3391 = vld [vmem:[#allocation7 + $0x320] sm:$0xff]
    %v3392 = vld [vmem:[#allocation7 + $0x328] sm:$0xff]
    %v3393 = vld [vmem:[#allocation7 + $0x330] sm:$0xff]
    %v3394 = vld [vmem:[#allocation7 + $0x338] sm:$0xff]
    %v3395 = vld [vmem:[#allocation7 + $0x340] sm:$0xff]
    %v3396 = vld [vmem:[#allocation7 + $0x348] sm:$0xff]
    %v3397 = vld [vmem:[#allocation7 + $0x350] sm:$0xff]
    %v3398 = vld [vmem:[#allocation7 + $0x358] sm:$0xff]
    %v3399 = vld [vmem:[#allocation7 + $0x360] sm:$0xff]
    %v3400 = vld [vmem:[#allocation7 + $0x368] sm:$0xff]
    %v3401 = vld [vmem:[#allocation7 + $0x370] sm:$0xff]
    %v3402 = vld [vmem:[#allocation7 + $0x378] sm:$0xff]
    %v3403 = vld [vmem:[#allocation7 + $0x380] sm:$0xff]
    %v3404 = vld [vmem:[#allocation7 + $0x388] sm:$0xff]
    %v3405 = vld [vmem:[#allocation7 + $0x390] sm:$0xff]
    %v3406 = vld [vmem:[#allocation7 + $0x398] sm:$0xff]
    %v3407 = vld [vmem:[#allocation7 + $0x3a0] sm:$0xff]
    %v3408 = vld [vmem:[#allocation7 + $0x3a8] sm:$0xff]
    %v3409 = vld [vmem:[#allocation7 + $0x3b0] sm:$0xff]
    %v3410 = vld [vmem:[#allocation7 + $0x3b8] sm:$0xff]
    %v3411 = vld [vmem:[#allocation7 + $0x3c0] sm:$0xff]
    %v3412 = vld [vmem:[#allocation7 + $0x3c8] sm:$0xff]
    %v3413 = vld [vmem:[#allocation7 + $0x3d0] sm:$0xff]
    %v3414 = vld [vmem:[#allocation7 + $0x3d8] sm:$0xff]
    %v3415 = vld [vmem:[#allocation7 + $0x3e0] sm:$0xff]
    %v3416 = vld [vmem:[#allocation7 + $0x3e8] sm:$0xff]
    %v3417 = vld [vmem:[#allocation7 + $0x3f0] sm:$0xff]
    %v3418 = vld [vmem:[#allocation7 + $0x3f8] sm:$0xff]
    %v3419 = vld [vmem:[%s7] sm:$0xf]
    %v3421 = vlaneseq
    %v3422 = vshrl.u32 %v3421, 7
    %v3423 = vsub.s32 0, %v3422
    %v3424 = vrot.slane %v3419, %v3423
    %v3425 = vlaneseq
    %v3426 = vshrl.u32 %v3425, 7
    %v3427 = vsub.s32 1, %v3426
    %v3428 = vrot.slane %v3419, %v3427
    %v3429 = vlaneseq
    %v3430 = vshrl.u32 %v3429, 7
    %v3431 = vsub.s32 2, %v3430
    %v3432 = vrot.slane %v3419, %v3431
    %v3433 = vlaneseq
    %v3434 = vshrl.u32 %v3433, 7
    %v3435 = vsub.s32 3, %v3434
    %v3436 = vrot.slane %v3419, %v3435
    %v3569 = vunpack.c.l.b16 %v3291
    %v3570 = vunpack.c.h.b16 %v3291
    %v3571 = vunpack.c.l.b16 %v3292
    %v3572 = vunpack.c.h.b16 %v3292
    %v3573 = vunpack.c.l.b16 %v3293
    %v3574 = vunpack.c.h.b16 %v3293
    %v3575 = vunpack.c.l.b16 %v3294
    %v3576 = vunpack.c.h.b16 %v3294
    %v3577 = vunpack.c.l.b16 %v3295
    %v3578 = vunpack.c.h.b16 %v3295
    %v3579 = vunpack.c.l.b16 %v3296
    %v3580 = vunpack.c.h.b16 %v3296
    %v3581 = vunpack.c.l.b16 %v3297
    %v3582 = vunpack.c.h.b16 %v3297
    %v3583 = vunpack.c.l.b16 %v3298
    %v3584 = vunpack.c.h.b16 %v3298
    %v3585 = vunpack.c.l.b16 %v3299
    %v3586 = vunpack.c.h.b16 %v3299
    %v3587 = vunpack.c.l.b16 %v3300
    %v3588 = vunpack.c.h.b16 %v3300
    %v3589 = vunpack.c.l.b16 %v3301
    %v3590 = vunpack.c.h.b16 %v3301
    %v3591 = vunpack.c.l.b16 %v3302
    %v3592 = vunpack.c.h.b16 %v3302
    %v3593 = vunpack.c.l.b16 %v3303
    %v3594 = vunpack.c.h.b16 %v3303
    %v3595 = vunpack.c.l.b16 %v3304
    %v3596 = vunpack.c.h.b16 %v3304
    %v3597 = vunpack.c.l.b16 %v3305
    %v3598 = vunpack.c.h.b16 %v3305
    %v3599 = vunpack.c.l.b16 %v3306
    %v3600 = vunpack.c.h.b16 %v3306
    %v3601 = vunpack.c.l.b16 %v3307
    %v3602 = vunpack.c.h.b16 %v3307
    %v3603 = vunpack.c.l.b16 %v3308
    %v3604 = vunpack.c.h.b16 %v3308
    %v3605 = vunpack.c.l.b16 %v3309
    %v3606 = vunpack.c.h.b16 %v3309
    %v3607 = vunpack.c.l.b16 %v3310
    %v3608 = vunpack.c.h.b16 %v3310
    %v3609 = vunpack.c.l.b16 %v3311
    %v3610 = vunpack.c.h.b16 %v3311
    %v3611 = vunpack.c.l.b16 %v3312
    %v3612 = vunpack.c.h.b16 %v3312
    %v3613 = vunpack.c.l.b16 %v3313
    %v3614 = vunpack.c.h.b16 %v3313
    %v3615 = vunpack.c.l.b16 %v3314
    %v3616 = vunpack.c.h.b16 %v3314
    %v3617 = vunpack.c.l.b16 %v3315
    %v3618 = vunpack.c.h.b16 %v3315
    %v3619 = vunpack.c.l.b16 %v3316
    %v3620 = vunpack.c.h.b16 %v3316
    %v3621 = vunpack.c.l.b16 %v3317
    %v3622 = vunpack.c.h.b16 %v3317
    %v3623 = vunpack.c.l.b16 %v3318
    %v3624 = vunpack.c.h.b16 %v3318
    %v3625 = vunpack.c.l.b16 %v3319
    %v3626 = vunpack.c.h.b16 %v3319
    %v3627 = vunpack.c.l.b16 %v3320
    %v3628 = vunpack.c.h.b16 %v3320
    %v3629 = vunpack.c.l.b16 %v3321
    %v3630 = vunpack.c.h.b16 %v3321
    %v3631 = vunpack.c.l.b16 %v3322
    %v3632 = vunpack.c.h.b16 %v3322
    %v3633 = vunpack.c.l.b16 %v3323
    %v3634 = vunpack.c.h.b16 %v3323
    %v3635 = vunpack.c.l.b16 %v3324
    %v3636 = vunpack.c.h.b16 %v3324
    %v3637 = vunpack.c.l.b16 %v3325
    %v3638 = vunpack.c.h.b16 %v3325
    %v3639 = vunpack.c.l.b16 %v3326
    %v3640 = vunpack.c.h.b16 %v3326
    %v3641 = vunpack.c.l.b16 %v3327
    %v3642 = vunpack.c.h.b16 %v3327
    %v3643 = vunpack.c.l.b16 %v3328
    %v3644 = vunpack.c.h.b16 %v3328
    %v3645 = vunpack.c.l.b16 %v3329
    %v3646 = vunpack.c.h.b16 %v3329
    %v3647 = vunpack.c.l.b16 %v3330
    %v3648 = vunpack.c.h.b16 %v3330
    %v3649 = vunpack.c.l.b16 %v3331
    %v3650 = vunpack.c.h.b16 %v3331
    %v3651 = vunpack.c.l.b16 %v3332
    %v3652 = vunpack.c.h.b16 %v3332
    %v3653 = vunpack.c.l.b16 %v3333
    %v3654 = vunpack.c.h.b16 %v3333
    %v3655 = vunpack.c.l.b16 %v3334
    %v3656 = vunpack.c.h.b16 %v3334
    %v3657 = vunpack.c.l.b16 %v3335
    %v3658 = vunpack.c.h.b16 %v3335
    %v3659 = vunpack.c.l.b16 %v3336
    %v3660 = vunpack.c.h.b16 %v3336
    %v3661 = vunpack.c.l.b16 %v3337
    %v3662 = vunpack.c.h.b16 %v3337
    %v3663 = vunpack.c.l.b16 %v3338
    %v3664 = vunpack.c.h.b16 %v3338
    %v3665 = vunpack.c.l.b16 %v3339
    %v3666 = vunpack.c.h.b16 %v3339
    %v3667 = vunpack.c.l.b16 %v3340
    %v3668 = vunpack.c.h.b16 %v3340
    %v3669 = vunpack.c.l.b16 %v3341
    %v3670 = vunpack.c.h.b16 %v3341
    %v3671 = vunpack.c.l.b16 %v3342
    %v3672 = vunpack.c.h.b16 %v3342
    %v3673 = vunpack.c.l.b16 %v3343
    %v3674 = vunpack.c.h.b16 %v3343
    %v3675 = vunpack.c.l.b16 %v3344
    %v3676 = vunpack.c.h.b16 %v3344
    %v3677 = vunpack.c.l.b16 %v3345
    %v3678 = vunpack.c.h.b16 %v3345
    %v3679 = vunpack.c.l.b16 %v3346
    %v3680 = vunpack.c.h.b16 %v3346
    %v3681 = vunpack.c.l.b16 %v3347
    %v3682 = vunpack.c.h.b16 %v3347
    %v3683 = vunpack.c.l.b16 %v3348
    %v3684 = vunpack.c.h.b16 %v3348
    %v3685 = vunpack.c.l.b16 %v3349
    %v3686 = vunpack.c.h.b16 %v3349
    %v3687 = vunpack.c.l.b16 %v3350
    %v3688 = vunpack.c.h.b16 %v3350
    %v3689 = vunpack.c.l.b16 %v3351
    %v3690 = vunpack.c.h.b16 %v3351
    %v3691 = vunpack.c.l.b16 %v3352
    %v3692 = vunpack.c.h.b16 %v3352
    %v3693 = vunpack.c.l.b16 %v3353
    %v3694 = vunpack.c.h.b16 %v3353
    %v3695 = vunpack.c.l.b16 %v3354
    %v3696 = vunpack.c.h.b16 %v3354
    %v3697 = vunpack.c.l.b16 %v3355
    %v3698 = vunpack.c.h.b16 %v3355
    %v3699 = vunpack.c.l.b16 %v3356
    %v3700 = vunpack.c.h.b16 %v3356
    %v3701 = vunpack.c.l.b16 %v3357
    %v3702 = vunpack.c.h.b16 %v3357
    %v3703 = vunpack.c.l.b16 %v3358
    %v3704 = vunpack.c.h.b16 %v3358
    %v3705 = vunpack.c.l.b16 %v3359
    %v3706 = vunpack.c.h.b16 %v3359
    %v3707 = vunpack.c.l.b16 %v3360
    %v3708 = vunpack.c.h.b16 %v3360
    %v3709 = vunpack.c.l.b16 %v3361
    %v3710 = vunpack.c.h.b16 %v3361
    %v3711 = vunpack.c.l.b16 %v3362
    %v3712 = vunpack.c.h.b16 %v3362
    %v3713 = vunpack.c.l.b16 %v3363
    %v3714 = vunpack.c.h.b16 %v3363
    %v3715 = vunpack.c.l.b16 %v3364
    %v3716 = vunpack.c.h.b16 %v3364
    %v3717 = vunpack.c.l.b16 %v3365
    %v3718 = vunpack.c.h.b16 %v3365
    %v3719 = vunpack.c.l.b16 %v3366
    %v3720 = vunpack.c.h.b16 %v3366
    %v3721 = vunpack.c.l.b16 %v3367
    %v3722 = vunpack.c.h.b16 %v3367
    %v3723 = vunpack.c.l.b16 %v3368
    %v3724 = vunpack.c.h.b16 %v3368
    %v3725 = vunpack.c.l.b16 %v3369
    %v3726 = vunpack.c.h.b16 %v3369
    %v3727 = vunpack.c.l.b16 %v3370
    %v3728 = vunpack.c.h.b16 %v3370
    %v3729 = vunpack.c.l.b16 %v3371
    %v3730 = vunpack.c.h.b16 %v3371
    %v3731 = vunpack.c.l.b16 %v3372
    %v3732 = vunpack.c.h.b16 %v3372
    %v3733 = vunpack.c.l.b16 %v3373
    %v3734 = vunpack.c.h.b16 %v3373
    %v3735 = vunpack.c.l.b16 %v3374
    %v3736 = vunpack.c.h.b16 %v3374
    %v3737 = vunpack.c.l.b16 %v3375
    %v3738 = vunpack.c.h.b16 %v3375
    %v3739 = vunpack.c.l.b16 %v3376
    %v3740 = vunpack.c.h.b16 %v3376
    %v3741 = vunpack.c.l.b16 %v3377
    %v3742 = vunpack.c.h.b16 %v3377
    %v3743 = vunpack.c.l.b16 %v3378
    %v3744 = vunpack.c.h.b16 %v3378
    %v3745 = vunpack.c.l.b16 %v3379
    %v3746 = vunpack.c.h.b16 %v3379
    %v3747 = vunpack.c.l.b16 %v3380
    %v3748 = vunpack.c.h.b16 %v3380
    %v3749 = vunpack.c.l.b16 %v3381
    %v3750 = vunpack.c.h.b16 %v3381
    %v3751 = vunpack.c.l.b16 %v3382
    %v3752 = vunpack.c.h.b16 %v3382
    %v3753 = vunpack.c.l.b16 %v3383
    %v3754 = vunpack.c.h.b16 %v3383
    %v3755 = vunpack.c.l.b16 %v3384
    %v3756 = vunpack.c.h.b16 %v3384
    %v3757 = vunpack.c.l.b16 %v3385
    %v3758 = vunpack.c.h.b16 %v3385
    %v3759 = vunpack.c.l.b16 %v3386
    %v3760 = vunpack.c.h.b16 %v3386
    %v3761 = vunpack.c.l.b16 %v3387
    %v3762 = vunpack.c.h.b16 %v3387
    %v3763 = vunpack.c.l.b16 %v3388
    %v3764 = vunpack.c.h.b16 %v3388
    %v3765 = vunpack.c.l.b16 %v3389
    %v3766 = vunpack.c.h.b16 %v3389
    %v3767 = vunpack.c.l.b16 %v3390
    %v3768 = vunpack.c.h.b16 %v3390
    %v3769 = vunpack.c.l.b16 %v3391
    %v3770 = vunpack.c.h.b16 %v3391
    %v3771 = vunpack.c.l.b16 %v3392
    %v3772 = vunpack.c.h.b16 %v3392
    %v3773 = vunpack.c.l.b16 %v3393
    %v3774 = vunpack.c.h.b16 %v3393
    %v3775 = vunpack.c.l.b16 %v3394
    %v3776 = vunpack.c.h.b16 %v3394
    %v3777 = vunpack.c.l.b16 %v3395
    %v3778 = vunpack.c.h.b16 %v3395
    %v3779 = vunpack.c.l.b16 %v3396
    %v3780 = vunpack.c.h.b16 %v3396
    %v3781 = vunpack.c.l.b16 %v3397
    %v3782 = vunpack.c.h.b16 %v3397
    %v3783 = vunpack.c.l.b16 %v3398
    %v3784 = vunpack.c.h.b16 %v3398
    %v3785 = vunpack.c.l.b16 %v3399
    %v3786 = vunpack.c.h.b16 %v3399
    %v3787 = vunpack.c.l.b16 %v3400
    %v3788 = vunpack.c.h.b16 %v3400
    %v3789 = vunpack.c.l.b16 %v3401
    %v3790 = vunpack.c.h.b16 %v3401
    %v3791 = vunpack.c.l.b16 %v3402
    %v3792 = vunpack.c.h.b16 %v3402
    %v3793 = vunpack.c.l.b16 %v3403
    %v3794 = vunpack.c.h.b16 %v3403
    %v3795 = vunpack.c.l.b16 %v3404
    %v3796 = vunpack.c.h.b16 %v3404
    %v3797 = vunpack.c.l.b16 %v3405
    %v3798 = vunpack.c.h.b16 %v3405
    %v3799 = vunpack.c.l.b16 %v3406
    %v3800 = vunpack.c.h.b16 %v3406
    %v3801 = vunpack.c.l.b16 %v3407
    %v3802 = vunpack.c.h.b16 %v3407
    %v3803 = vunpack.c.l.b16 %v3408
    %v3804 = vunpack.c.h.b16 %v3408
    %v3805 = vunpack.c.l.b16 %v3409
    %v3806 = vunpack.c.h.b16 %v3409
    %v3807 = vunpack.c.l.b16 %v3410
    %v3808 = vunpack.c.h.b16 %v3410
    %v3809 = vunpack.c.l.b16 %v3411
    %v3810 = vunpack.c.h.b16 %v3411
    %v3811 = vunpack.c.l.b16 %v3412
    %v3812 = vunpack.c.h.b16 %v3412
    %v3813 = vunpack.c.l.b16 %v3413
    %v3814 = vunpack.c.h.b16 %v3413
    %v3815 = vunpack.c.l.b16 %v3414
    %v3816 = vunpack.c.h.b16 %v3414
    %v3817 = vunpack.c.l.b16 %v3415
    %v3818 = vunpack.c.h.b16 %v3415
    %v3819 = vunpack.c.l.b16 %v3416
    %v3820 = vunpack.c.h.b16 %v3416
    %v3821 = vunpack.c.l.b16 %v3417
    %v3822 = vunpack.c.h.b16 %v3417
    %v3823 = vunpack.c.l.b16 %v3418
    %v3824 = vunpack.c.h.b16 %v3418
    %v3825 = vpack.c.b16 %v3573, %v3569
    %v3826 = vpack.c.b16 %v3574, %v3570
    %v3827 = vpack.c.b16 %v3575, %v3571
    %v3828 = vpack.c.b16 %v3576, %v3572
    %v3829 = vpack.c.b16 %v3581, %v3577
    %v3830 = vpack.c.b16 %v3582, %v3578
    %v3831 = vpack.c.b16 %v3583, %v3579
    %v3832 = vpack.c.b16 %v3584, %v3580
    %v3833 = vpack.c.b16 %v3589, %v3585
    %v3834 = vpack.c.b16 %v3590, %v3586
    %v3835 = vpack.c.b16 %v3591, %v3587
    %v3836 = vpack.c.b16 %v3592, %v3588
    %v3837 = vpack.c.b16 %v3597, %v3593
    %v3838 = vpack.c.b16 %v3598, %v3594
    %v3839 = vpack.c.b16 %v3599, %v3595
    %v3840 = vpack.c.b16 %v3600, %v3596
    %v3841 = vpack.c.b16 %v3605, %v3601
    %v3842 = vpack.c.b16 %v3606, %v3602
    %v3843 = vpack.c.b16 %v3607, %v3603
    %v3844 = vpack.c.b16 %v3608, %v3604
    %v3845 = vpack.c.b16 %v3613, %v3609
    %v3846 = vpack.c.b16 %v3614, %v3610
    %v3847 = vpack.c.b16 %v3615, %v3611
    %v3848 = vpack.c.b16 %v3616, %v3612
    %v3849 = vpack.c.b16 %v3621, %v3617
    %v3850 = vpack.c.b16 %v3622, %v3618
    %v3851 = vpack.c.b16 %v3623, %v3619
    %v3852 = vpack.c.b16 %v3624, %v3620
    %v3853 = vpack.c.b16 %v3629, %v3625
    %v3854 = vpack.c.b16 %v3630, %v3626
    %v3855 = vpack.c.b16 %v3631, %v3627
    %v3856 = vpack.c.b16 %v3632, %v3628
    %v3857 = vpack.c.b16 %v3637, %v3633
    %v3858 = vpack.c.b16 %v3638, %v3634
    %v3859 = vpack.c.b16 %v3639, %v3635
    %v3860 = vpack.c.b16 %v3640, %v3636
    %v3861 = vpack.c.b16 %v3645, %v3641
    %v3862 = vpack.c.b16 %v3646, %v3642
    %v3863 = vpack.c.b16 %v3647, %v3643
    %v3864 = vpack.c.b16 %v3648, %v3644
    %v3865 = vpack.c.b16 %v3653, %v3649
    %v3866 = vpack.c.b16 %v3654, %v3650
    %v3867 = vpack.c.b16 %v3655, %v3651
    %v3868 = vpack.c.b16 %v3656, %v3652
    %v3869 = vpack.c.b16 %v3661, %v3657
    %v3870 = vpack.c.b16 %v3662, %v3658
    %v3871 = vpack.c.b16 %v3663, %v3659
    %v3872 = vpack.c.b16 %v3664, %v3660
    %v3873 = vpack.c.b16 %v3669, %v3665
    %v3874 = vpack.c.b16 %v3670, %v3666
    %v3875 = vpack.c.b16 %v3671, %v3667
    %v3876 = vpack.c.b16 %v3672, %v3668
    %v3877 = vpack.c.b16 %v3677, %v3673
    %v3878 = vpack.c.b16 %v3678, %v3674
    %v3879 = vpack.c.b16 %v3679, %v3675
    %v3880 = vpack.c.b16 %v3680, %v3676
    %v3881 = vpack.c.b16 %v3685, %v3681
    %v3882 = vpack.c.b16 %v3686, %v3682
    %v3883 = vpack.c.b16 %v3687, %v3683
    %v3884 = vpack.c.b16 %v3688, %v3684
    %v3885 = vpack.c.b16 %v3693, %v3689
    %v3886 = vpack.c.b16 %v3694, %v3690
    %v3887 = vpack.c.b16 %v3695, %v3691
    %v3888 = vpack.c.b16 %v3696, %v3692
    %v3889 = vpack.c.b16 %v3701, %v3697
    %v3890 = vpack.c.b16 %v3702, %v3698
    %v3891 = vpack.c.b16 %v3703, %v3699
    %v3892 = vpack.c.b16 %v3704, %v3700
    %v3893 = vpack.c.b16 %v3709, %v3705
    %v3894 = vpack.c.b16 %v3710, %v3706
    %v3895 = vpack.c.b16 %v3711, %v3707
    %v3896 = vpack.c.b16 %v3712, %v3708
    %v3897 = vpack.c.b16 %v3717, %v3713
    %v3898 = vpack.c.b16 %v3718, %v3714
    %v3899 = vpack.c.b16 %v3719, %v3715
    %v3900 = vpack.c.b16 %v3720, %v3716
    %v3901 = vpack.c.b16 %v3725, %v3721
    %v3902 = vpack.c.b16 %v3726, %v3722
    %v3903 = vpack.c.b16 %v3727, %v3723
    %v3904 = vpack.c.b16 %v3728, %v3724
    %v3905 = vpack.c.b16 %v3733, %v3729
    %v3906 = vpack.c.b16 %v3734, %v3730
    %v3907 = vpack.c.b16 %v3735, %v3731
    %v3908 = vpack.c.b16 %v3736, %v3732
    %v3909 = vpack.c.b16 %v3741, %v3737
    %v3910 = vpack.c.b16 %v3742, %v3738
    %v3911 = vpack.c.b16 %v3743, %v3739
    %v3912 = vpack.c.b16 %v3744, %v3740
    %v3913 = vpack.c.b16 %v3749, %v3745
    %v3914 = vpack.c.b16 %v3750, %v3746
    %v3915 = vpack.c.b16 %v3751, %v3747
    %v3916 = vpack.c.b16 %v3752, %v3748
    %v3917 = vpack.c.b16 %v3757, %v3753
    %v3918 = vpack.c.b16 %v3758, %v3754
    %v3919 = vpack.c.b16 %v3759, %v3755
    %v3920 = vpack.c.b16 %v3760, %v3756
    %v3921 = vpack.c.b16 %v3765, %v3761
    %v3922 = vpack.c.b16 %v3766, %v3762
    %v3923 = vpack.c.b16 %v3767, %v3763
    %v3924 = vpack.c.b16 %v3768, %v3764
    %v3925 = vpack.c.b16 %v3773, %v3769
    %v3926 = vpack.c.b16 %v3774, %v3770
    %v3927 = vpack.c.b16 %v3775, %v3771
    %v3928 = vpack.c.b16 %v3776, %v3772
    %v3929 = vpack.c.b16 %v3781, %v3777
    %v3930 = vpack.c.b16 %v3782, %v3778
    %v3931 = vpack.c.b16 %v3783, %v3779
    %v3932 = vpack.c.b16 %v3784, %v3780
    %v3933 = vpack.c.b16 %v3789, %v3785
    %v3934 = vpack.c.b16 %v3790, %v3786
    %v3935 = vpack.c.b16 %v3791, %v3787
    %v3936 = vpack.c.b16 %v3792, %v3788
    %v3937 = vpack.c.b16 %v3797, %v3793
    %v3938 = vpack.c.b16 %v3798, %v3794
    %v3939 = vpack.c.b16 %v3799, %v3795
    %v3940 = vpack.c.b16 %v3800, %v3796
    %v3941 = vpack.c.b16 %v3805, %v3801
    %v3942 = vpack.c.b16 %v3806, %v3802
    %v3943 = vpack.c.b16 %v3807, %v3803
    %v3944 = vpack.c.b16 %v3808, %v3804
    %v3945 = vpack.c.b16 %v3813, %v3809
    %v3946 = vpack.c.b16 %v3814, %v3810
    %v3947 = vpack.c.b16 %v3815, %v3811
    %v3948 = vpack.c.b16 %v3816, %v3812
    %v3949 = vpack.c.b16 %v3821, %v3817
    %v3950 = vpack.c.b16 %v3822, %v3818
    %v3951 = vpack.c.b16 %v3823, %v3819
    %v3952 = vpack.c.b16 %v3824, %v3820
    %4081 = vmatprep.subr.bf16.mxu0 %v3826
    %4082 = vmatpush1.bf16.msra.mxu0 %v3825
    %4083 = vmatprep.subr.bf16.mxu0 %v3830
    %4084 = vmatpush1.bf16.msra.mxu0 %v3829
    %4085 = vmatprep.subr.bf16.mxu0 %v3834
    %4086 = vmatpush1.bf16.msra.mxu0 %v3833
    %4087 = vmatprep.subr.bf16.mxu0 %v3838
    %4088 = vmatpush1.bf16.msra.mxu0 %v3837
    %4089 = vmatprep.subr.bf16.mxu0 %v3842
    %4090 = vmatpush1.bf16.msra.mxu0 %v3841
    %4091 = vmatprep.subr.bf16.mxu0 %v3846
    %4092 = vmatpush1.bf16.msra.mxu0 %v3845
    %4093 = vmatprep.subr.bf16.mxu0 %v3850
    %4094 = vmatpush1.bf16.msra.mxu0 %v3849
    %4095 = vmatprep.subr.bf16.mxu0 %v3854
    %4096 = vmatpush1.bf16.msra.mxu0 %v3853
    %4097 = vmatprep.subr.bf16.mxu0 %v3858
    %4098 = vmatpush1.bf16.msra.mxu0 %v3857
    %4099 = vmatprep.subr.bf16.mxu0 %v3862
    %4100 = vmatpush1.bf16.msra.mxu0 %v3861
    %4101 = vmatprep.subr.bf16.mxu0 %v3866
    %4102 = vmatpush1.bf16.msra.mxu0 %v3865
    %4103 = vmatprep.subr.bf16.mxu0 %v3870
    %4104 = vmatpush1.bf16.msra.mxu0 %v3869
    %4105 = vmatprep.subr.bf16.mxu0 %v3874
    %4106 = vmatpush1.bf16.msra.mxu0 %v3873
    %4107 = vmatprep.subr.bf16.mxu0 %v3878
    %4108 = vmatpush1.bf16.msra.mxu0 %v3877
    %4109 = vmatprep.subr.bf16.mxu0 %v3882
    %4110 = vmatpush1.bf16.msra.mxu0 %v3881
    %4111 = vmatprep.subr.bf16.mxu0 %v3886
    %4112 = vmatpush1.bf16.msra.mxu0 %v3885
    %4113 = vmatprep.mubr.bf16.mxu0 %v3288
    %4114 = vmatmul.mubr.bf16.gmra.mrb[0].mxu0 %v3287
    %v4115 = vpop.f32.mrb[0].mxu0
    %v4116 = vadd.f32 %v3424, %v4115
    %v4117 = vpop.f32.mrb[0].mxu0
    %v4118 = vadd.f32 %v3428, %v4117
    %v4119 = vpop.f32.mrb[0].mxu0
    %v4120 = vpop.f32.mrb[0].mxu0
    %4121 = vdwg.mxu0
    %4122 = vmatprep.subr.bf16.mxu0 %v3890
    %4123 = vmatpush1.bf16.msra.mxu0 %v3889
    %4124 = vmatprep.subr.bf16.mxu0 %v3894
    %4125 = vmatpush1.bf16.msra.mxu0 %v3893
    %4126 = vmatprep.subr.bf16.mxu0 %v3898
    %4127 = vmatpush1.bf16.msra.mxu0 %v3897
    %4128 = vmatprep.subr.bf16.mxu0 %v3902
    %4129 = vmatpush1.bf16.msra.mxu0 %v3901
    %4130 = vmatprep.subr.bf16.mxu0 %v3906
    %4131 = vmatpush1.bf16.msra.mxu0 %v3905
    %4132 = vmatprep.subr.bf16.mxu0 %v3910
    %4133 = vmatpush1.bf16.msra.mxu0 %v3909
    %4134 = vmatprep.subr.bf16.mxu0 %v3914
    %4135 = vmatpush1.bf16.msra.mxu0 %v3913
    %4136 = vmatprep.subr.bf16.mxu0 %v3918
    %4137 = vmatpush1.bf16.msra.mxu0 %v3917
    %4138 = vmatprep.subr.bf16.mxu0 %v3922
    %4139 = vmatpush1.bf16.msra.mxu0 %v3921
    %4140 = vmatprep.subr.bf16.mxu0 %v3926
    %4141 = vmatpush1.bf16.msra.mxu0 %v3925
    %4142 = vmatprep.subr.bf16.mxu0 %v3930
    %4143 = vmatpush1.bf16.msra.mxu0 %v3929
    %4144 = vmatprep.subr.bf16.mxu0 %v3934
    %4145 = vmatpush1.bf16.msra.mxu0 %v3933
    %4146 = vmatprep.subr.bf16.mxu0 %v3938
    %4147 = vmatpush1.bf16.msra.mxu0 %v3937
    %4148 = vmatprep.subr.bf16.mxu0 %v3942
    %4149 = vmatpush1.bf16.msra.mxu0 %v3941
    %4150 = vmatprep.subr.bf16.mxu0 %v3946
    %4151 = vmatpush1.bf16.msra.mxu0 %v3945
    %4152 = vmatprep.subr.bf16.mxu0 %v3950
    %4153 = vmatpush1.bf16.msra.mxu0 %v3949
    %4154 = vmatprep.mubr.bf16.mxu0 %v3290
    %4155 = vmatmul.mubr.bf16.gmra.mrb[0].mxu0 %v3289
    %v4156 = vpop.f32.mrb[0].mxu0
    %v4157 = vadd.f32 %v4116, %v4156
    %v4158 = vpop.f32.mrb[0].mxu0
    %v4159 = vadd.f32 %v4118, %v4158
    %v4160 = vpop.f32.mrb[0].mxu0
    %v4161 = vpop.f32.mrb[0].mxu0
    %4162 = vdwg.mxu0
    %4163 = vmatprep.subr.bf16.mxu0 %v3828
    %4164 = vmatpush1.bf16.msra.mxu0 %v3827
    %4165 = vmatprep.subr.bf16.mxu0 %v3832
    %4166 = vmatpush1.bf16.msra.mxu0 %v3831
    %4167 = vmatprep.subr.bf16.mxu0 %v3836
    %4168 = vmatpush1.bf16.msra.mxu0 %v3835
    %4169 = vmatprep.subr.bf16.mxu0 %v3840
    %4170 = vmatpush1.bf16.msra.mxu0 %v3839
    %4171 = vmatprep.subr.bf16.mxu0 %v3844
    %4172 = vmatpush1.bf16.msra.mxu0 %v3843
    %4173 = vmatprep.subr.bf16.mxu0 %v3848
    %4174 = vmatpush1.bf16.msra.mxu0 %v3847
    %4175 = vmatprep.subr.bf16.mxu0 %v3852
    %4176 = vmatpush1.bf16.msra.mxu0 %v3851
    %4177 = vmatprep.subr.bf16.mxu0 %v3856
    %4178 = vmatpush1.bf16.msra.mxu0 %v3855
    %4179 = vmatprep.subr.bf16.mxu0 %v3860
    %4180 = vmatpush1.bf16.msra.mxu0 %v3859
    %4181 = vmatprep.subr.bf16.mxu0 %v3864
    %4182 = vmatpush1.bf16.msra.mxu0 %v3863
    %4183 = vmatprep.subr.bf16.mxu0 %v3868
    %4184 = vmatpush1.bf16.msra.mxu0 %v3867
    %4185 = vmatprep.subr.bf16.mxu0 %v3872
    %4186 = vmatpush1.bf16.msra.mxu0 %v3871
    %4187 = vmatprep.subr.bf16.mxu0 %v3876
    %4188 = vmatpush1.bf16.msra.mxu0 %v3875
    %4189 = vmatprep.subr.bf16.mxu0 %v3880
    %4190 = vmatpush1.bf16.msra.mxu0 %v3879
    %4191 = vmatprep.subr.bf16.mxu0 %v3884
    %4192 = vmatpush1.bf16.msra.mxu0 %v3883
    %4193 = vmatprep.subr.bf16.mxu0 %v3888
    %4194 = vmatpush1.bf16.msra.mxu0 %v3887
    %4195 = vmatprep.mubr.bf16.mxu0 %v3288
    %4196 = vmatmul.mubr.bf16.gmra.mrb[0].mxu0 %v3287
    %v4197 = vpop.f32.mrb[0].mxu0
    %v4198 = vadd.f32 %v3432, %v4197
    %v4199 = vpop.f32.mrb[0].mxu0
    %v4200 = vadd.f32 %v3436, %v4199
    %v4201 = vpop.f32.mrb[0].mxu0
    %v4202 = vpop.f32.mrb[0].mxu0
    %4203 = vdwg.mxu0
    %4204 = vmatprep.subr.bf16.mxu0 %v3892
    %4205 = vmatpush1.bf16.msra.mxu0 %v3891
    %4206 = vmatprep.subr.bf16.mxu0 %v3896
    %4207 = vmatpush1.bf16.msra.mxu0 %v3895
    %4208 = vmatprep.subr.bf16.mxu0 %v3900
    %4209 = vmatpush1.bf16.msra.mxu0 %v3899
    %4210 = vmatprep.subr.bf16.mxu0 %v3904
    %4211 = vmatpush1.bf16.msra.mxu0 %v3903
    %4212 = vmatprep.subr.bf16.mxu0 %v3908
    %4213 = vmatpush1.bf16.msra.mxu0 %v3907
    %4214 = vmatprep.subr.bf16.mxu0 %v3912
    %4215 = vmatpush1.bf16.msra.mxu0 %v3911
    %4216 = vmatprep.subr.bf16.mxu0 %v3916
    %4217 = vmatpush1.bf16.msra.mxu0 %v3915
    %4218 = vmatprep.subr.bf16.mxu0 %v3920
    %4219 = vmatpush1.bf16.msra.mxu0 %v3919
    %4220 = vmatprep.subr.bf16.mxu0 %v3924
    %4221 = vmatpush1.bf16.msra.mxu0 %v3923
    %4222 = vmatprep.subr.bf16.mxu0 %v3928
    %4223 = vmatpush1.bf16.msra.mxu0 %v3927
    %4224 = vmatprep.subr.bf16.mxu0 %v3932
    %4225 = vmatpush1.bf16.msra.mxu0 %v3931
    %4226 = vmatprep.subr.bf16.mxu0 %v3936
    %4227 = vmatpush1.bf16.msra.mxu0 %v3935
    %4228 = vmatprep.subr.bf16.mxu0 %v3940
    %4229 = vmatpush1.bf16.msra.mxu0 %v3939
    %4230 = vmatprep.subr.bf16.mxu0 %v3944
    %4231 = vmatpush1.bf16.msra.mxu0 %v3943
    %4232 = vmatprep.subr.bf16.mxu0 %v3948
    %4233 = vmatpush1.bf16.msra.mxu0 %v3947
    %4234 = vmatprep.subr.bf16.mxu0 %v3952
    %4235 = vmatpush1.bf16.msra.mxu0 %v3951
    %4236 = vmatprep.mubr.bf16.mxu0 %v3290
    %4237 = vmatmul.mubr.bf16.gmra.mrb[0].mxu0 %v3289
    %v4238 = vpop.f32.mrb[0].mxu0
    %v4239 = vadd.f32 %v4198, %v4238
    %v4240 = vpop.f32.mrb[0].mxu0
    %v4241 = vadd.f32 %v4200, %v4240
    %v4242 = vpop.f32.mrb[0].mxu0
    %v4243 = vpop.f32.mrb[0].mxu0
    %4244 = vdwg.mxu0
    %vm4245 = vcmp.gt.f32.partialorder %v4157, 0.0
    %vm4246 = vcmp.gt.f32.partialorder %v4159, 0.0
    %vm4247 = vcmp.gt.f32.partialorder %v4239, 0.0
    %vm4248 = vcmp.gt.f32.partialorder %v4241, 0.0
    %v4249 = vmul.f32 %v4157, 0.2
    %v4250 = vmul.f32 %v4159, 0.2
    %v4251 = vmul.f32 %v4239, 0.2
    %v4252 = vmul.f32 %v4241, 0.2
    %v4253 = vsel %vm4245, %v4157, %v4249
    %v4254 = vsel %vm4246, %v4159, %v4250
    %v4255 = vsel %vm4247, %v4239, %v4251
    %v4256 = vsel %vm4248, %v4241, %v4252
    %v4257 = vpack.c.bf16 %v4253, %v4253
    %v4258 = vpack.c.bf16 %v4254, %v4254
    %v4259 = vpack.c.bf16 %v4255, %v4255
    %v4260 = vpack.c.bf16 %v4256, %v4256
    %v4261 = vld [vmem:[#allocation9] sm:$0xf]
    %v4262 = vld [vmem:[#allocation9 + $0x4] sm:$0xf]
    %v4263 = vld [vmem:[#allocation9 + $0x8] sm:$0xf]
    %v4264 = vld [vmem:[#allocation9 + $0xc] sm:$0xf]
    %v4265 = vld [vmem:[#allocation9 + $0x10] sm:$0xf]
    %v4266 = vld [vmem:[#allocation9 + $0x14] sm:$0xf]
    %v4267 = vld [vmem:[#allocation9 + $0x18] sm:$0xf]
    %v4268 = vld [vmem:[#allocation9 + $0x1c] sm:$0xf]
    %v4269 = vld [vmem:[#allocation9 + $0x20] sm:$0xf]
    %v4270 = vld [vmem:[#allocation9 + $0x24] sm:$0xf]
    %v4271 = vld [vmem:[#allocation9 + $0x28] sm:$0xf]
    %v4272 = vld [vmem:[#allocation9 + $0x2c] sm:$0xf]
    %v4273 = vld [vmem:[#allocation9 + $0x30] sm:$0xf]
    %v4274 = vld [vmem:[#allocation9 + $0x34] sm:$0xf]
    %v4275 = vld [vmem:[#allocation9 + $0x38] sm:$0xf]
    %v4276 = vld [vmem:[#allocation9 + $0x3c] sm:$0xf]
    %v4277 = vld [vmem:[#allocation9 + $0x40] sm:$0xf]
    %v4278 = vld [vmem:[#allocation9 + $0x44] sm:$0xf]
    %v4279 = vld [vmem:[#allocation9 + $0x48] sm:$0xf]
    %v4280 = vld [vmem:[#allocation9 + $0x4c] sm:$0xf]
    %v4281 = vld [vmem:[#allocation9 + $0x50] sm:$0xf]
    %v4282 = vld [vmem:[#allocation9 + $0x54] sm:$0xf]
    %v4283 = vld [vmem:[#allocation9 + $0x58] sm:$0xf]
    %v4284 = vld [vmem:[#allocation9 + $0x5c] sm:$0xf]
    %v4285 = vld [vmem:[#allocation9 + $0x60] sm:$0xf]
    %v4286 = vld [vmem:[#allocation9 + $0x64] sm:$0xf]
    %v4287 = vld [vmem:[#allocation9 + $0x68] sm:$0xf]
    %v4288 = vld [vmem:[#allocation9 + $0x6c] sm:$0xf]
    %v4289 = vld [vmem:[#allocation9 + $0x70] sm:$0xf]
    %v4290 = vld [vmem:[#allocation9 + $0x74] sm:$0xf]
    %v4291 = vld [vmem:[#allocation9 + $0x78] sm:$0xf]
    %v4292 = vld [vmem:[#allocation9 + $0x7c] sm:$0xf]
    %v4293 = vld [vmem:[#allocation9 + $0x80] sm:$0xf]
    %v4294 = vld [vmem:[#allocation9 + $0x84] sm:$0xf]
    %v4295 = vld [vmem:[#allocation9 + $0x88] sm:$0xf]
    %v4296 = vld [vmem:[#allocation9 + $0x8c] sm:$0xf]
    %v4297 = vld [vmem:[#allocation9 + $0x90] sm:$0xf]
    %v4298 = vld [vmem:[#allocation9 + $0x94] sm:$0xf]
    %v4299 = vld [vmem:[#allocation9 + $0x98] sm:$0xf]
    %v4300 = vld [vmem:[#allocation9 + $0x9c] sm:$0xf]
    %v4301 = vld [vmem:[#allocation9 + $0xa0] sm:$0xf]
    %v4302 = vld [vmem:[#allocation9 + $0xa4] sm:$0xf]
    %v4303 = vld [vmem:[#allocation9 + $0xa8] sm:$0xf]
    %v4304 = vld [vmem:[#allocation9 + $0xac] sm:$0xf]
    %v4305 = vld [vmem:[#allocation9 + $0xb0] sm:$0xf]
    %v4306 = vld [vmem:[#allocation9 + $0xb4] sm:$0xf]
    %v4307 = vld [vmem:[#allocation9 + $0xb8] sm:$0xf]
    %v4308 = vld [vmem:[#allocation9 + $0xbc] sm:$0xf]
    %v4309 = vld [vmem:[#allocation9 + $0xc0] sm:$0xf]
    %v4310 = vld [vmem:[#allocation9 + $0xc4] sm:$0xf]
    %v4311 = vld [vmem:[#allocation9 + $0xc8] sm:$0xf]
    %v4312 = vld [vmem:[#allocation9 + $0xcc] sm:$0xf]
    %v4313 = vld [vmem:[#allocation9 + $0xd0] sm:$0xf]
    %v4314 = vld [vmem:[#allocation9 + $0xd4] sm:$0xf]
    %v4315 = vld [vmem:[#allocation9 + $0xd8] sm:$0xf]
    %v4316 = vld [vmem:[#allocation9 + $0xdc] sm:$0xf]
    %v4317 = vld [vmem:[#allocation9 + $0xe0] sm:$0xf]
    %v4318 = vld [vmem:[#allocation9 + $0xe4] sm:$0xf]
    %v4319 = vld [vmem:[#allocation9 + $0xe8] sm:$0xf]
    %v4320 = vld [vmem:[#allocation9 + $0xec] sm:$0xf]
    %v4321 = vld [vmem:[#allocation9 + $0xf0] sm:$0xf]
    %v4322 = vld [vmem:[#allocation9 + $0xf4] sm:$0xf]
    %v4323 = vld [vmem:[#allocation9 + $0xf8] sm:$0xf]
    %v4324 = vld [vmem:[#allocation9 + $0xfc] sm:$0xf]
    %v4325 = vld [vmem:[%s9] sm:$0x1]
    %v4327 = vlaneseq
    %v4328 = vshrl.u32 %v4327, 7
    %v4329 = vsub.s32 0, %v4328
    %v4330 = vrot.slane %v4325, %v4329
    %v4396 = vunpack.c.l.b16 %v4261
    %v4397 = vunpack.c.l.b16 %v4262
    %v4398 = vunpack.c.l.b16 %v4263
    %v4399 = vunpack.c.l.b16 %v4264
    %v4400 = vunpack.c.l.b16 %v4265
    %v4401 = vunpack.c.l.b16 %v4266
    %v4402 = vunpack.c.l.b16 %v4267
    %v4403 = vunpack.c.l.b16 %v4268
    %v4404 = vunpack.c.l.b16 %v4269
    %v4405 = vunpack.c.l.b16 %v4270
    %v4406 = vunpack.c.l.b16 %v4271
    %v4407 = vunpack.c.l.b16 %v4272
    %v4408 = vunpack.c.l.b16 %v4273
    %v4409 = vunpack.c.l.b16 %v4274
    %v4410 = vunpack.c.l.b16 %v4275
    %v4411 = vunpack.c.l.b16 %v4276
    %v4412 = vunpack.c.l.b16 %v4277
    %v4413 = vunpack.c.l.b16 %v4278
    %v4414 = vunpack.c.l.b16 %v4279
    %v4415 = vunpack.c.l.b16 %v4280
    %v4416 = vunpack.c.l.b16 %v4281
    %v4417 = vunpack.c.l.b16 %v4282
    %v4418 = vunpack.c.l.b16 %v4283
    %v4419 = vunpack.c.l.b16 %v4284
    %v4420 = vunpack.c.l.b16 %v4285
    %v4421 = vunpack.c.l.b16 %v4286
    %v4422 = vunpack.c.l.b16 %v4287
    %v4423 = vunpack.c.l.b16 %v4288
    %v4424 = vunpack.c.l.b16 %v4289
    %v4425 = vunpack.c.l.b16 %v4290
    %v4426 = vunpack.c.l.b16 %v4291
    %v4427 = vunpack.c.l.b16 %v4292
    %v4428 = vunpack.c.l.b16 %v4293
    %v4429 = vunpack.c.l.b16 %v4294
    %v4430 = vunpack.c.l.b16 %v4295
    %v4431 = vunpack.c.l.b16 %v4296
    %v4432 = vunpack.c.l.b16 %v4297
    %v4433 = vunpack.c.l.b16 %v4298
    %v4434 = vunpack.c.l.b16 %v4299
    %v4435 = vunpack.c.l.b16 %v4300
    %v4436 = vunpack.c.l.b16 %v4301
    %v4437 = vunpack.c.l.b16 %v4302
    %v4438 = vunpack.c.l.b16 %v4303
    %v4439 = vunpack.c.l.b16 %v4304
    %v4440 = vunpack.c.l.b16 %v4305
    %v4441 = vunpack.c.l.b16 %v4306
    %v4442 = vunpack.c.l.b16 %v4307
    %v4443 = vunpack.c.l.b16 %v4308
    %v4444 = vunpack.c.l.b16 %v4309
    %v4445 = vunpack.c.l.b16 %v4310
    %v4446 = vunpack.c.l.b16 %v4311
    %v4447 = vunpack.c.l.b16 %v4312
    %v4448 = vunpack.c.l.b16 %v4313
    %v4449 = vunpack.c.l.b16 %v4314
    %v4450 = vunpack.c.l.b16 %v4315
    %v4451 = vunpack.c.l.b16 %v4316
    %v4452 = vunpack.c.l.b16 %v4317
    %v4453 = vunpack.c.l.b16 %v4318
    %v4454 = vunpack.c.l.b16 %v4319
    %v4455 = vunpack.c.l.b16 %v4320
    %v4456 = vunpack.c.l.b16 %v4321
    %v4457 = vunpack.c.l.b16 %v4322
    %v4458 = vunpack.c.l.b16 %v4323
    %v4459 = vunpack.c.l.b16 %v4324
    %v4460 = vpack.c.b16 %v4397, %v4396
    %v4461 = vpack.c.b16 %v4399, %v4398
    %v4462 = vpack.c.b16 %v4401, %v4400
    %v4463 = vpack.c.b16 %v4403, %v4402
    %v4464 = vpack.c.b16 %v4405, %v4404
    %v4465 = vpack.c.b16 %v4407, %v4406
    %v4466 = vpack.c.b16 %v4409, %v4408
    %v4467 = vpack.c.b16 %v4411, %v4410
    %v4468 = vpack.c.b16 %v4413, %v4412
    %v4469 = vpack.c.b16 %v4415, %v4414
    %v4470 = vpack.c.b16 %v4417, %v4416
    %v4471 = vpack.c.b16 %v4419, %v4418
    %v4472 = vpack.c.b16 %v4421, %v4420
    %v4473 = vpack.c.b16 %v4423, %v4422
    %v4474 = vpack.c.b16 %v4425, %v4424
    %v4475 = vpack.c.b16 %v4427, %v4426
    %v4476 = vpack.c.b16 %v4429, %v4428
    %v4477 = vpack.c.b16 %v4431, %v4430
    %v4478 = vpack.c.b16 %v4433, %v4432
    %v4479 = vpack.c.b16 %v4435, %v4434
    %v4480 = vpack.c.b16 %v4437, %v4436
    %v4481 = vpack.c.b16 %v4439, %v4438
    %v4482 = vpack.c.b16 %v4441, %v4440
    %v4483 = vpack.c.b16 %v4443, %v4442
    %v4484 = vpack.c.b16 %v4445, %v4444
    %v4485 = vpack.c.b16 %v4447, %v4446
    %v4486 = vpack.c.b16 %v4449, %v4448
    %v4487 = vpack.c.b16 %v4451, %v4450
    %v4488 = vpack.c.b16 %v4453, %v4452
    %v4489 = vpack.c.b16 %v4455, %v4454
    %v4490 = vpack.c.b16 %v4457, %v4456
    %v4491 = vpack.c.b16 %v4459, %v4458
    %4524 = vmatprep.subr.bf16.mxu0 0
    %4525 = vmatpush1.bf16.msra.mxu0 %v4460
    %4526 = vmatprep.subr.bf16.mxu0 0
    %4527 = vmatpush1.bf16.msra.mxu0 %v4461
    %4528 = vmatprep.subr.bf16.mxu0 0
    %4529 = vmatpush1.bf16.msra.mxu0 %v4462
    %4530 = vmatprep.subr.bf16.mxu0 0
    %4531 = vmatpush1.bf16.msra.mxu0 %v4463
    %4532 = vmatprep.subr.bf16.mxu0 0
    %4533 = vmatpush1.bf16.msra.mxu0 %v4464
    %4534 = vmatprep.subr.bf16.mxu0 0
    %4535 = vmatpush1.bf16.msra.mxu0 %v4465
    %4536 = vmatprep.subr.bf16.mxu0 0
    %4537 = vmatpush1.bf16.msra.mxu0 %v4466
    %4538 = vmatprep.subr.bf16.mxu0 0
    %4539 = vmatpush1.bf16.msra.mxu0 %v4467
    %4540 = vmatprep.subr.bf16.mxu0 0
    %4541 = vmatpush1.bf16.msra.mxu0 %v4468
    %4542 = vmatprep.subr.bf16.mxu0 0
    %4543 = vmatpush1.bf16.msra.mxu0 %v4469
    %4544 = vmatprep.subr.bf16.mxu0 0
    %4545 = vmatpush1.bf16.msra.mxu0 %v4470
    %4546 = vmatprep.subr.bf16.mxu0 0
    %4547 = vmatpush1.bf16.msra.mxu0 %v4471
    %4548 = vmatprep.subr.bf16.mxu0 0
    %4549 = vmatpush1.bf16.msra.mxu0 %v4472
    %4550 = vmatprep.subr.bf16.mxu0 0
    %4551 = vmatpush1.bf16.msra.mxu0 %v4473
    %4552 = vmatprep.subr.bf16.mxu0 0
    %4553 = vmatpush1.bf16.msra.mxu0 %v4474
    %4554 = vmatprep.subr.bf16.mxu0 0
    %4555 = vmatpush1.bf16.msra.mxu0 %v4475
    %4556 = vmatprep.mubr.bf16.mxu0 %v4258
    %4557 = vmatmul.mubr.bf16.gmra.mrb[0].mxu0 %v4257
    %v4558 = vpop.f32.mrb[0].mxu0
    %v4559 = vadd.f32 %v4330, %v4558
    %v4560 = vpop.f32.mrb[0].mxu0
    %v4561 = vpop.f32.mrb[0].mxu0
    %v4562 = vpop.f32.mrb[0].mxu0
    %4563 = vdwg.mxu0
    %4564 = vmatprep.subr.bf16.mxu0 0
    %4565 = vmatpush1.bf16.msra.mxu0 %v4476
    %4566 = vmatprep.subr.bf16.mxu0 0
    %4567 = vmatpush1.bf16.msra.mxu0 %v4477
    %4568 = vmatprep.subr.bf16.mxu0 0
    %4569 = vmatpush1.bf16.msra.mxu0 %v4478
    %4570 = vmatprep.subr.bf16.mxu0 0
    %4571 = vmatpush1.bf16.msra.mxu0 %v4479
    %4572 = vmatprep.subr.bf16.mxu0 0
    %4573 = vmatpush1.bf16.msra.mxu0 %v4480
    %4574 = vmatprep.subr.bf16.mxu0 0
    %4575 = vmatpush1.bf16.msra.mxu0 %v4481
    %4576 = vmatprep.subr.bf16.mxu0 0
    %4577 = vmatpush1.bf16.msra.mxu0 %v4482
    %4578 = vmatprep.subr.bf16.mxu0 0
    %4579 = vmatpush1.bf16.msra.mxu0 %v4483
    %4580 = vmatprep.subr.bf16.mxu0 0
    %4581 = vmatpush1.bf16.msra.mxu0 %v4484
    %4582 = vmatprep.subr.bf16.mxu0 0
    %4583 = vmatpush1.bf16.msra.mxu0 %v4485
    %4584 = vmatprep.subr.bf16.mxu0 0
    %4585 = vmatpush1.bf16.msra.mxu0 %v4486
    %4586 = vmatprep.subr.bf16.mxu0 0
    %4587 = vmatpush1.bf16.msra.mxu0 %v4487
    %4588 = vmatprep.subr.bf16.mxu0 0
    %4589 = vmatpush1.bf16.msra.mxu0 %v4488
    %4590 = vmatprep.subr.bf16.mxu0 0
    %4591 = vmatpush1.bf16.msra.mxu0 %v4489
    %4592 = vmatprep.subr.bf16.mxu0 0
    %4593 = vmatpush1.bf16.msra.mxu0 %v4490
    %4594 = vmatprep.subr.bf16.mxu0 0
    %4595 = vmatpush1.bf16.msra.mxu0 %v4491
    %4596 = vmatprep.mubr.bf16.mxu0 %v4260
    %4597 = vmatmul.mubr.bf16.gmra.mrb[0].mxu0 %v4259
    %v4598 = vpop.f32.mrb[0].mxu0
    %v4599 = vadd.f32 %v4559, %v4598
    %v4600 = vpop.f32.mrb[0].mxu0
    %v4601 = vpop.f32.mrb[0].mxu0
    %v4602 = vpop.f32.mrb[0].mxu0
    %4603 = vdwg.mxu0
    %4604 = vst [vmem:[%s10] sm:$0x3] %v4599
    // Predicated region
    $region62: #{discriminator_forward.1} parent=1 // pred_check
      _
    $region63: #{discriminator_forward.1} parent=1 // pred_check_branch
      %4606 = sbr.rel (0) target = $region65
    $region64: #{discriminator_forward.1} parent=1 // pred_region
      _
    $region65: #{discriminator_forward.1} parent=1 // pred_fallthru
      _
    // Predicated region
    $region66: #{discriminator_forward.1} parent=1 // pred_check
      _
    $region67: #{discriminator_forward.1} parent=1 // pred_check_branch
      %4608 = sbr.rel (0) target = $region69
    $region68: #{discriminator_forward.1} parent=1 // pred_region
      _
    $region69: #{discriminator_forward.1} parent=1 // pred_fallthru
      _
    %4609 = vsyncpa [#allocation3], 1
    %4610 = vsyncpa [#allocation5], 1
    %4611 = vsyncpa [#allocation8], 1

</llo_original>
